<compile_context>
chip_gen: v7x
topology: tpu7x:2x2x1
jax: 0.10.0
libtpu: 0.0.40
codegen_flags: <defaults>
</compile_context>

<pallas_src>
import functools

import jax
import jax.numpy as jnp
from jax import lax
from jax.experimental import pallas as pl
from jax.experimental.pallas import tpu as pltpu

_LANES = 128


def _round_up(x, m):
    return (x + m - 1) // m * m


def _pick_row_tile(h, cap=32, floor=8):
    """Largest divisor of h that is <= cap; fall back to whole-height tiles."""
    best = 1
    for t in range(1, min(h, cap) + 1):
        if h % t == 0:
            best = t
    if best < floor:
        # TODO(synk): masked-tail handling for awkward (e.g. prime) heights;
        # fall back to a single whole-height tile for now.
        return h
    return best


def _pick_row_chunk(rows, cap=4096):
    """Largest divisor of `rows` <= cap that is a multiple of 8 (or rows itself)."""
    for t in range(min(rows, cap), 0, -1):
        if rows % t == 0 and (t % 8 == 0 or t == rows):
            return t
    # TODO(synk): ragged row counts fall back to one big block.
    return rows


def _conv_stats_kernel(xpad_hbm, wdw_ref, wpw_ref, y_ref, stats_ref,
                       xbuf, sem, *, ksize):
    """Depthwise KxK + pointwise 1x1 + partial BN stats for one (batch, row-tile).

    xpad_hbm : (N, Hp, Wp, Cp_in)        zero-padded NHWC image, left in HBM
    wdw_ref  : (KH*KW, Cp_in)            depthwise taps (f32, lane-dense)
    wpw_ref  : (Cp_in, Cp_out)           pointwise weights (bf16)
    y_ref    : (1, TILE_H, W, Cp_out)    conv output tile (lane-dense store)
    stats_ref: (1, 2, Cp_out)            per-tile [sum, centered sum-of-squares]
    xbuf     : (2, TILE_H+KH-1, Wp, Cp_in)  double-buffered halo-row scratch
    sem      : (2,) DMA semaphores
    """
    KH, KW = ksize
    _, TILE_H, W, Cp_out = y_ref.shape
    Cp_in = xbuf.shape[-1]
    halo_rows = TILE_H + KH - 1

    n = pl.program_id(0)
    h = pl.program_id(1)
    n_ht = pl.num_programs(1)
    slot = lax.rem(h, 2)

    def halo_copy(h_tile, buf_slot):
        row0 = pl.multiple_of(h_tile * TILE_H, TILE_H)
        return pltpu.make_async_copy(
            xpad_hbm.at[n, pl.ds(row0, halo_rows), :, :],
            xbuf.at[buf_slot], sem.at[buf_slot])

    # First row-tile of each batch element issues its own fetch (waited below).
    @pl.when(h == 0)
    def _():
        halo_copy(h, slot).start()

    # Wait for the current tile's halo rows (prefetched by the previous step,
    # or just issued above for h == 0).
    halo_copy(h, slot).wait()

    # Prefetch the next row-tile of the same batch element into the other slot.
    @pl.when(h + 1 < n_ht)
    def _():
        halo_copy(h + 1, 1 - slot).start()

    # ---- depthwise KxK: lane-dense shifted MACs, taps read directly from the ref ----
    xcur = xbuf.at[slot]                          # (halo_rows, Wp, Cp_in) view
    wdw = wdw_ref[...]                            # (KH*KW, Cp_in) f32
    acc = jnp.zeros((TILE_H, W, Cp_in), jnp.float32)
    for kh in range(KH):
        for kw in range(KW):
            tap = xcur[kh:kh + TILE_H, kw:kw + W, :].astype(jnp.float32)
            acc = acc + tap * wdw[kh * KW + kw]

    # ---- pointwise 1x1: bf16 operands on the MXU, f32 accumulation ----
    y2d = jnp.dot(acc.astype(jnp.bfloat16).reshape(TILE_H * W, Cp_in),
                  wpw_ref[...],
                  preferred_element_type=jnp.float32)        # (TILE_H*W, Cp_out) f32

    y_ref[...] = y2d.reshape(1, TILE_H, W, Cp_out).astype(y_ref.dtype)

    # ---- partial BN statistics (centered, f32, taken before the bf16 store) ----
    cnt = jnp.float32(TILE_H * W)
    s1 = jnp.sum(y2d, axis=0, keepdims=True)                 # (1, Cp_out)
    mu = s1 / cnt
    s2c = jnp.sum((y2d - mu) ** 2, axis=0, keepdims=True)    # (1, Cp_out)
    stats_ref[...] = jnp.concatenate([s1, s2c], axis=0).reshape(1, 2, Cp_out)


def _bn_apply_kernel(y_ref, scale_ref, shift_ref, out_ref):
    """out = y * scale + shift   (scale/shift are the fused BN per-channel vectors)."""
    out_ref[...] = (y_ref[...].astype(jnp.float32) * scale_ref[...]
                    + shift_ref[...]).astype(out_ref.dtype)


def separable_conv2d_bn(x_nchw, w_dw, w_pw, gamma, beta, eps=1e-5,
                        interm_dtype=jnp.bfloat16):
    """x_nchw: (N, Cin, H, W); w_dw: (Cin, 1, KH, KW); w_pw: (Cout, Cin, 1, 1)."""
    N, Cin, H, W = x_nchw.shape
    KH, KW = w_dw.shape[2], w_dw.shape[3]
    Cout = w_pw.shape[0]
    pad = KH // 2
    # TODO(synk): stride > 1 not implemented (module default stride=1 is used).

    # Lane-dense channel padding (no-op for production channel counts >= 128).
    Cp_in = _round_up(Cin, _LANES)
    Cp_out = _round_up(Cout, _LANES)

    TILE_H = _pick_row_tile(H)
    n_ht = H // TILE_H
    Hp, Wp = H + 2 * pad, W + 2 * pad
    halo_rows = TILE_H + KH - 1

    # ---- layout glue in plain XLA: NCHW->NHWC, spatial + channel zero-pad ----
    # x stays in its native dtype (no f32 upcast => no extra HBM read bytes).
    x_nhwc = jnp.transpose(x_nchw, (0, 2, 3, 1))
    xpad = jnp.pad(x_nhwc, ((0, 0), (pad, pad), (pad, pad), (0, Cp_in - Cin)))
    wdw = jnp.transpose(w_dw[:, 0, :, :], (1, 2, 0)).reshape(KH * KW, Cin)
    wdw = jnp.pad(wdw, ((0, 0), (0, Cp_in - Cin))).astype(jnp.float32)
    wpw = jnp.pad(jnp.transpose(w_pw[:, :, 0, 0], (1, 0)),
                  ((0, Cp_in - Cin), (0, Cp_out - Cout))).astype(jnp.bfloat16)

    conv_params = pltpu.CompilerParams(
        # Batch axis megacore-sharded; row-tile axis sequential (prefetch chain).
        dimension_semantics=("parallel", "arbitrary"),
        vmem_limit_bytes=32 * 1024 * 1024,       # halo tiling keeps us far below this
    )
    xbytes = jnp.dtype(xpad.dtype).itemsize
    conv_cost = pl.CostEstimate(
        flops=2 * N * H * W * Cp_in * (KH * KW + Cp_out),
        transcendentals=0,
        bytes_accessed=(N * n_ht * halo_rows * Wp * Cp_in * xbytes
                        + 4 * wdw.size + 2 * wpw.size
                        + 2 * N * H * W * Cp_out             # bf16 y writeback
                        + 4 * N * n_ht * 2 * Cp_out),
    )

    # ---- pass 1: depthwise + pointwise conv, plus per-tile BN partial stats ----
    y, stats = pl.pallas_call(
        functools.partial(_conv_stats_kernel, ksize=(KH, KW)),
        grid=(N, n_ht),
        in_specs=[
            pl.BlockSpec(memory_space=pl.ANY),               # xpad stays in HBM
            pl.BlockSpec((KH * KW, Cp_in), lambda n, h: (0, 0)),
            pl.BlockSpec((Cp_in, Cp_out), lambda n, h: (0, 0)),
        ],
        out_specs=[
            pl.BlockSpec((1, TILE_H, W, Cp_out), lambda n, h: (n, h, 0, 0)),
            pl.BlockSpec((1, 2, Cp_out), lambda n, h: (n * n_ht + h, 0, 0)),
        ],
        out_shape=[
            jax.ShapeDtypeStruct((N, H, W, Cp_out), interm_dtype),
            jax.ShapeDtypeStruct((N * n_ht, 2, Cp_out), jnp.float32),
        ],
        scratch_shapes=[
            pltpu.VMEM((2, halo_rows, Wp, Cp_in), xpad.dtype),
            pltpu.SemaphoreType.DMA((2,)),
        ],
        compiler_params=conv_params,
        cost_estimate=conv_cost,
    )(xpad, wdw, wpw)

    # ---- fold global batch stats into per-channel scale/shift (tiny, plain XLA) ----
    cnt_tile = jnp.float32(TILE_H * W)
    total = jnp.float32(N * H * W)
    s1_t = stats[:, 0, :]                                    # (N*n_ht, Cp_out)
    s2c_t = stats[:, 1, :]
    mean = jnp.sum(s1_t, axis=0) / total
    mu_t = s1_t / cnt_tile
    ss = jnp.sum(s2c_t, axis=0) + cnt_tile * jnp.sum((mu_t - mean) ** 2, axis=0)
    var = ss / total                                         # biased var (BN training)
    gamma_p = jnp.pad(gamma.astype(jnp.float32), (0, Cp_out - Cout))
    beta_p = jnp.pad(beta.astype(jnp.float32), (0, Cp_out - Cout))
    scale = gamma_p * lax.rsqrt(var + eps)
    shift = beta_p - mean * scale

    # ---- pass 2: fused BN scale/shift on a flat, lane-dense (rows, C) view ----
    rows = N * H * W
    TILE_R = _pick_row_chunk(rows)
    y2 = y.reshape(rows, Cp_out)                             # free reshape (row-major)
    bn_params = pltpu.CompilerParams(
        dimension_semantics=("parallel",),
        vmem_limit_bytes=32 * 1024 * 1024,
    )
    obytes = jnp.dtype(x_nchw.dtype).itemsize
    bn_cost = pl.CostEstimate(
        flops=2 * rows * Cp_out,
        transcendentals=0,
        bytes_accessed=rows * Cp_out * (jnp.dtype(interm_dtype).itemsize + obytes)
                       + 8 * Cp_out,
    )
    out2 = pl.pallas_call(
        _bn_apply_kernel,
        grid=(rows // TILE_R,),
        in_specs=[
            pl.BlockSpec((TILE_R, Cp_out), lambda i: (i, 0)),
            pl.BlockSpec((1, Cp_out), lambda i: (0, 0)),
            pl.BlockSpec((1, Cp_out), lambda i: (0, 0)),
        ],
        out_specs=pl.BlockSpec((TILE_R, Cp_out), lambda i: (i, 0)),
        out_shape=jax.ShapeDtypeStruct((rows, Cp_out), x_nchw.dtype),
        compiler_params=bn_params,
        cost_estimate=bn_cost,
    )(y2, scale.reshape(1, Cp_out), shift.reshape(1, Cp_out))

    # strip channel padding, back to NCHW
    # TODO(synk): return NHWC (skipping this transpose) when the consumer allows it.
    out_nhwc = out2.reshape(N, H, W, Cp_out)[..., :Cout]
    return jnp.transpose(out_nhwc, (0, 3, 1, 2))


def _reference(x_nchw, w_dw, w_pw, gamma, beta):
    """Pure-JAX NCHW reference mirroring the PyTorch module (training-mode BN)."""
    Cin = x_nchw.shape[1]
    dn = lax.conv_dimension_numbers(x_nchw.shape, w_dw.shape, ("NCHW", "OIHW", "NCHW"))
    y = lax.conv_general_dilated(x_nchw, w_dw, window_strides=(1, 1),
                                 padding="SAME", dimension_numbers=dn,
                                 feature_group_count=Cin)
    dn2 = lax.conv_dimension_numbers(y.shape, w_pw.shape, ("NCHW", "OIHW", "NCHW"))
    y = lax.conv_general_dilated(y, w_pw, window_strides=(1, 1),
                                 padding="VALID", dimension_numbers=dn2)
    mean = jnp.mean(y, axis=(0, 2, 3), keepdims=True)
    var = jnp.mean((y - mean) ** 2, axis=(0, 2, 3), keepdims=True)
    return (y - mean) * lax.rsqrt(var + 1e-5) * gamma.reshape(1, -1, 1, 1) \
        + beta.reshape(1, -1, 1, 1)


if __name__ == "__main__":
    N, Cin, Cout, H, W, K = 2, 4, 8, 16, 16, 3
    key = jax.random.PRNGKey(0)
    kx, kd, kp, kg, kb = jax.random.split(key, 5)

    x = jax.random.normal(kx, (N, Cin, H, W), jnp.float32)
    w_dw = 0.1 * jax.random.normal(kd, (Cin, 1, K, K), jnp.float32)      # depthwise weight
    w_pw = 0.1 * jax.random.normal(kp, (Cout, Cin, 1, 1), jnp.float32)   # pointwise weight
    gamma = 1.0 + 0.1 * jax.random.normal(kg, (Cout,), jnp.float32)      # BN weight
    beta = 0.1 * jax.random.normal(kb, (Cout,), jnp.float32)             # BN bias

    out = jax.jit(separable_conv2d_bn)(x, w_dw, w_pw, gamma, beta)
    out = jax.block_until_ready(out)

    ref = _reference(x, w_dw, w_pw, gamma, beta)
    assert out.shape == (N, Cout, H, W)
    # bf16 MXU operands + bf16 intermediate => ~1e-2 worst-case deviation vs the
    # all-f32 reference; tolerance set accordingly.
    assert jnp.allclose(out, ref, atol=2e-2, rtol=2e-2), "mismatch vs JAX reference"

    print("KERNEL_OK")
</pallas_src>

<mosaic_0001>
module attributes {stable_mosaic.version = 11 : i64} {
  func.func @_conv_stats_kernel(%arg0: i32, %arg1: i32, %arg2: memref<2x18x18x128xf32, #tpu.memory_space<any>>, %arg3: memref<9x128xf32, #tpu.memory_space<vmem>>, %arg4: memref<128x128xbf16, #tpu.memory_space<vmem>>, %arg5: memref<1x16x16x128xbf16, #tpu.memory_space<vmem>>, %arg6: memref<1x2x128xf32, #tpu.memory_space<vmem>>, %arg7: memref<2x18x18x128xf32, #tpu.memory_space<vmem>>, %arg8: memref<2x!tpu.dma_semaphore, #tpu.memory_space<semaphore_mem>>) attributes {dimension_semantics = [#tpu.dimension_semantics<parallel>, #tpu.dimension_semantics<arbitrary>], iteration_bounds = array<i64: 2, 1>, scalar_prefetch = 0 : i64, scratch_operands = 2 : i64, tpu.core_type = #tpu.core_type<tc>, window_params = [{}, {pipeline_mode = #tpu.pipeline_mode<synchronous>, transform_indices = @transform_1, window_bounds = array<i64: 9, 128>}, {pipeline_mode = #tpu.pipeline_mode<synchronous>, transform_indices = @transform_2, window_bounds = array<i64: 128, 128>}, {transform_indices = @transform_3, window_bounds = array<i64: 1, 16, 16, 128>}, {transform_indices = @transform_4, window_bounds = array<i64: 1, 2, 128>}]} {
    %c2_i32 = arith.constant 2 : i32
    %0 = arith.remsi %arg1, %c2_i32 : i32
    %c0_i32 = arith.constant 0 : i32
    %1 = arith.cmpi eq, %arg1, %c0_i32 : i32
    %2 = arith.extui %1 : i1 to i32
    %c0_i32_0 = arith.constant 0 : i32
    %3 = arith.cmpi ne, %2, %c0_i32_0 : i32
    scf.if %3 {
      %c16_i32_74 = arith.constant 16 : i32
      %118 = arith.muli %arg1, %c16_i32_74 : i32
      %119 = tpu.assume_multiple %118, 16 : i32
      %c0_i32_75 = arith.constant 0 : i32
      %c0_i32_76 = arith.constant 0 : i32
      %120 = tpu.memref_slice %arg2[%arg0, %119, %c0_i32_75, %c0_i32_76] : memref<2x18x18x128xf32, #tpu.memory_space<any>> -> memref<1x18x18x128xf32, #tpu.memory_space<any>>
      %121 = tpu.memref_squeeze %120 : memref<1x18x18x128xf32, #tpu.memory_space<any>> -> memref<18x18x128xf32, #tpu.memory_space<any>>
      %c0_i32_77 = arith.constant 0 : i32
      %c0_i32_78 = arith.constant 0 : i32
      %c0_i32_79 = arith.constant 0 : i32
      %122 = tpu.memref_slice %arg7[%0, %c0_i32_77, %c0_i32_78, %c0_i32_79] : memref<2x18x18x128xf32, #tpu.memory_space<vmem>> -> memref<1x18x18x128xf32, #tpu.memory_space<vmem>>
      %123 = tpu.memref_squeeze %122 : memref<1x18x18x128xf32, #tpu.memory_space<vmem>> -> memref<18x18x128xf32, #tpu.memory_space<vmem>>
      %124 = tpu.memref_slice %arg8[%0] : memref<2x!tpu.dma_semaphore, #tpu.memory_space<semaphore_mem>> -> memref<1x!tpu.dma_semaphore, #tpu.memory_space<semaphore_mem>>
      %125 = tpu.memref_squeeze %124 : memref<1x!tpu.dma_semaphore, #tpu.memory_space<semaphore_mem>> -> memref<!tpu.dma_semaphore, #tpu.memory_space<semaphore_mem>>
      tpu.enqueue_dma source(%121 : memref<18x18x128xf32, #tpu.memory_space<any>>) target(%123 : memref<18x18x128xf32, #tpu.memory_space<vmem>>) target_semaphore(%125 : memref<!tpu.dma_semaphore, #tpu.memory_space<semaphore_mem>>)
    } else {
    }
    %c16_i32 = arith.constant 16 : i32
    %4 = arith.muli %arg1, %c16_i32 : i32
    %5 = tpu.assume_multiple %4, 16 : i32
    %c0_i32_1 = arith.constant 0 : i32
    %c0_i32_2 = arith.constant 0 : i32
    %6 = tpu.memref_slice %arg2[%arg0, %5, %c0_i32_1, %c0_i32_2] : memref<2x18x18x128xf32, #tpu.memory_space<any>> -> memref<1x18x18x128xf32, #tpu.memory_space<any>>
    %7 = tpu.memref_squeeze %6 : memref<1x18x18x128xf32, #tpu.memory_space<any>> -> memref<18x18x128xf32, #tpu.memory_space<any>>
    %c0_i32_3 = arith.constant 0 : i32
    %c0_i32_4 = arith.constant 0 : i32
    %c0_i32_5 = arith.constant 0 : i32
    %8 = tpu.memref_slice %arg7[%0, %c0_i32_3, %c0_i32_4, %c0_i32_5] : memref<2x18x18x128xf32, #tpu.memory_space<vmem>> -> memref<1x18x18x128xf32, #tpu.memory_space<vmem>>
    %9 = tpu.memref_squeeze %8 : memref<1x18x18x128xf32, #tpu.memory_space<vmem>> -> memref<18x18x128xf32, #tpu.memory_space<vmem>>
    %10 = tpu.memref_slice %arg8[%0] : memref<2x!tpu.dma_semaphore, #tpu.memory_space<semaphore_mem>> -> memref<1x!tpu.dma_semaphore, #tpu.memory_space<semaphore_mem>>
    %11 = tpu.memref_squeeze %10 : memref<1x!tpu.dma_semaphore, #tpu.memory_space<semaphore_mem>> -> memref<!tpu.dma_semaphore, #tpu.memory_space<semaphore_mem>>
    tpu.wait_dma2 semaphore(%11 : memref<!tpu.dma_semaphore, #tpu.memory_space<semaphore_mem>>) src(%7 : memref<18x18x128xf32, #tpu.memory_space<any>>) dst(%9 : memref<18x18x128xf32, #tpu.memory_space<vmem>>)
    %c1_i32 = arith.constant 1 : i32
    %12 = arith.addi %arg1, %c1_i32 : i32
    %c1_i32_6 = arith.constant 1 : i32
    %13 = arith.cmpi slt, %12, %c1_i32_6 : i32
    %14 = arith.extui %13 : i1 to i32
    %c0_i32_7 = arith.constant 0 : i32
    %15 = arith.cmpi ne, %14, %c0_i32_7 : i32
    scf.if %15 {
      %c1_i32_74 = arith.constant 1 : i32
      %118 = arith.addi %arg1, %c1_i32_74 : i32
      %c1_i32_75 = arith.constant 1 : i32
      %119 = arith.subi %c1_i32_75, %0 : i32
      %c16_i32_76 = arith.constant 16 : i32
      %120 = arith.muli %118, %c16_i32_76 : i32
      %121 = tpu.assume_multiple %120, 16 : i32
      %c0_i32_77 = arith.constant 0 : i32
      %c0_i32_78 = arith.constant 0 : i32
      %122 = tpu.memref_slice %arg2[%arg0, %121, %c0_i32_77, %c0_i32_78] : memref<2x18x18x128xf32, #tpu.memory_space<any>> -> memref<1x18x18x128xf32, #tpu.memory_space<any>>
      %123 = tpu.memref_squeeze %122 : memref<1x18x18x128xf32, #tpu.memory_space<any>> -> memref<18x18x128xf32, #tpu.memory_space<any>>
      %c0_i32_79 = arith.constant 0 : i32
      %c0_i32_80 = arith.constant 0 : i32
      %c0_i32_81 = arith.constant 0 : i32
      %124 = tpu.memref_slice %arg7[%119, %c0_i32_79, %c0_i32_80, %c0_i32_81] : memref<2x18x18x128xf32, #tpu.memory_space<vmem>> -> memref<1x18x18x128xf32, #tpu.memory_space<vmem>>
      %125 = tpu.memref_squeeze %124 : memref<1x18x18x128xf32, #tpu.memory_space<vmem>> -> memref<18x18x128xf32, #tpu.memory_space<vmem>>
      %126 = tpu.memref_slice %arg8[%119] : memref<2x!tpu.dma_semaphore, #tpu.memory_space<semaphore_mem>> -> memref<1x!tpu.dma_semaphore, #tpu.memory_space<semaphore_mem>>
      %127 = tpu.memref_squeeze %126 : memref<1x!tpu.dma_semaphore, #tpu.memory_space<semaphore_mem>> -> memref<!tpu.dma_semaphore, #tpu.memory_space<semaphore_mem>>
      tpu.enqueue_dma source(%123 : memref<18x18x128xf32, #tpu.memory_space<any>>) target(%125 : memref<18x18x128xf32, #tpu.memory_space<vmem>>) target_semaphore(%127 : memref<!tpu.dma_semaphore, #tpu.memory_space<semaphore_mem>>)
    } else {
    }
    %c0 = arith.constant 0 : index
    %c0_8 = arith.constant 0 : index
    %16 = vector.load %arg3[%c0, %c0_8] : memref<9x128xf32, #tpu.memory_space<vmem>>, vector<9x128xf32>
    %cst = arith.constant 0.000000e+00 : f32
    %17 = vector.broadcast %cst : f32 to vector<16x16x128xf32>
    %c0_i32_9 = arith.constant 0 : i32
    %c0_i32_10 = arith.constant 0 : i32
    %c0_i32_11 = arith.constant 0 : i32
    %18 = tpu.memref_slice %arg7[%0, %c0_i32_9, %c0_i32_10, %c0_i32_11] : memref<2x18x18x128xf32, #tpu.memory_space<vmem>> -> memref<1x18x18x128xf32, #tpu.memory_space<vmem>>
    %19 = tpu.memref_squeeze %18 : memref<1x18x18x128xf32, #tpu.memory_space<vmem>> -> memref<18x18x128xf32, #tpu.memory_space<vmem>>
    %c0_12 = arith.constant 0 : index
    %c0_13 = arith.constant 0 : index
    %c0_14 = arith.constant 0 : index
    %20 = vector.load %19[%c0_12, %c0_13, %c0_14] : memref<18x18x128xf32, #tpu.memory_space<vmem>>, vector<16x16x128xf32>
    %21 = vector.extract_strided_slice %16 {offsets = [0, 0], sizes = [1, 128], strides = [1, 1]} : vector<9x128xf32> to vector<1x128xf32>
    %22 = vector.shape_cast %21 : vector<1x128xf32> to vector<128xf32>
    %23 = vector.shape_cast %22 : vector<128xf32> to vector<1x1x128xf32>
    %24 = vector.broadcast %23 : vector<1x1x128xf32> to vector<16x16x128xf32>
    %25 = arith.mulf %20, %24 : vector<16x16x128xf32>
    %26 = arith.addf %17, %25 : vector<16x16x128xf32>
    %c0_i32_15 = arith.constant 0 : i32
    %c0_i32_16 = arith.constant 0 : i32
    %c0_i32_17 = arith.constant 0 : i32
    %27 = tpu.memref_slice %arg7[%0, %c0_i32_15, %c0_i32_16, %c0_i32_17] : memref<2x18x18x128xf32, #tpu.memory_space<vmem>> -> memref<1x18x18x128xf32, #tpu.memory_space<vmem>>
    %28 = tpu.memref_squeeze %27 : memref<1x18x18x128xf32, #tpu.memory_space<vmem>> -> memref<18x18x128xf32, #tpu.memory_space<vmem>>
    %c0_18 = arith.constant 0 : index
    %c1 = arith.constant 1 : index
    %c0_19 = arith.constant 0 : index
    %29 = vector.load %28[%c0_18, %c1, %c0_19] : memref<18x18x128xf32, #tpu.memory_space<vmem>>, vector<16x16x128xf32>
    %30 = vector.extract_strided_slice %16 {offsets = [1, 0], sizes = [1, 128], strides = [1, 1]} : vector<9x128xf32> to vector<1x128xf32>
    %31 = vector.shape_cast %30 : vector<1x128xf32> to vector<128xf32>
    %32 = vector.shape_cast %31 : vector<128xf32> to vector<1x1x128xf32>
    %33 = vector.broadcast %32 : vector<1x1x128xf32> to vector<16x16x128xf32>
    %34 = arith.mulf %29, %33 : vector<16x16x128xf32>
    %35 = arith.addf %26, %34 : vector<16x16x128xf32>
    %c0_i32_20 = arith.constant 0 : i32
    %c0_i32_21 = arith.constant 0 : i32
    %c0_i32_22 = arith.constant 0 : i32
    %36 = tpu.memref_slice %arg7[%0, %c0_i32_20, %c0_i32_21, %c0_i32_22] : memref<2x18x18x128xf32, #tpu.memory_space<vmem>> -> memref<1x18x18x128xf32, #tpu.memory_space<vmem>>
    %37 = tpu.memref_squeeze %36 : memref<1x18x18x128xf32, #tpu.memory_space<vmem>> -> memref<18x18x128xf32, #tpu.memory_space<vmem>>
    %c0_23 = arith.constant 0 : index
    %c2 = arith.constant 2 : index
    %c0_24 = arith.constant 0 : index
    %38 = vector.load %37[%c0_23, %c2, %c0_24] : memref<18x18x128xf32, #tpu.memory_space<vmem>>, vector<16x16x128xf32>
    %39 = vector.extract_strided_slice %16 {offsets = [2, 0], sizes = [1, 128], strides = [1, 1]} : vector<9x128xf32> to vector<1x128xf32>
    %40 = vector.shape_cast %39 : vector<1x128xf32> to vector<128xf32>
    %41 = vector.shape_cast %40 : vector<128xf32> to vector<1x1x128xf32>
    %42 = vector.broadcast %41 : vector<1x1x128xf32> to vector<16x16x128xf32>
    %43 = arith.mulf %38, %42 : vector<16x16x128xf32>
    %44 = arith.addf %35, %43 : vector<16x16x128xf32>
    %c0_i32_25 = arith.constant 0 : i32
    %c0_i32_26 = arith.constant 0 : i32
    %c0_i32_27 = arith.constant 0 : i32
    %45 = tpu.memref_slice %arg7[%0, %c0_i32_25, %c0_i32_26, %c0_i32_27] : memref<2x18x18x128xf32, #tpu.memory_space<vmem>> -> memref<1x18x18x128xf32, #tpu.memory_space<vmem>>
    %46 = tpu.memref_squeeze %45 : memref<1x18x18x128xf32, #tpu.memory_space<vmem>> -> memref<18x18x128xf32, #tpu.memory_space<vmem>>
    %c1_28 = arith.constant 1 : index
    %c0_29 = arith.constant 0 : index
    %c0_30 = arith.constant 0 : index
    %47 = vector.load %46[%c1_28, %c0_29, %c0_30] : memref<18x18x128xf32, #tpu.memory_space<vmem>>, vector<16x16x128xf32>
    %48 = vector.extract_strided_slice %16 {offsets = [3, 0], sizes = [1, 128], strides = [1, 1]} : vector<9x128xf32> to vector<1x128xf32>
    %49 = vector.shape_cast %48 : vector<1x128xf32> to vector<128xf32>
    %50 = vector.shape_cast %49 : vector<128xf32> to vector<1x1x128xf32>
    %51 = vector.broadcast %50 : vector<1x1x128xf32> to vector<16x16x128xf32>
    %52 = arith.mulf %47, %51 : vector<16x16x128xf32>
    %53 = arith.addf %44, %52 : vector<16x16x128xf32>
    %c0_i32_31 = arith.constant 0 : i32
    %c0_i32_32 = arith.constant 0 : i32
    %c0_i32_33 = arith.constant 0 : i32
    %54 = tpu.memref_slice %arg7[%0, %c0_i32_31, %c0_i32_32, %c0_i32_33] : memref<2x18x18x128xf32, #tpu.memory_space<vmem>> -> memref<1x18x18x128xf32, #tpu.memory_space<vmem>>
    %55 = tpu.memref_squeeze %54 : memref<1x18x18x128xf32, #tpu.memory_space<vmem>> -> memref<18x18x128xf32, #tpu.memory_space<vmem>>
    %c1_34 = arith.constant 1 : index
    %c1_35 = arith.constant 1 : index
    %c0_36 = arith.constant 0 : index
    %56 = vector.load %55[%c1_34, %c1_35, %c0_36] : memref<18x18x128xf32, #tpu.memory_space<vmem>>, vector<16x16x128xf32>
    %57 = vector.extract_strided_slice %16 {offsets = [4, 0], sizes = [1, 128], strides = [1, 1]} : vector<9x128xf32> to vector<1x128xf32>
    %58 = vector.shape_cast %57 : vector<1x128xf32> to vector<128xf32>
    %59 = vector.shape_cast %58 : vector<128xf32> to vector<1x1x128xf32>
    %60 = vector.broadcast %59 : vector<1x1x128xf32> to vector<16x16x128xf32>
    %61 = arith.mulf %56, %60 : vector<16x16x128xf32>
    %62 = arith.addf %53, %61 : vector<16x16x128xf32>
    %c0_i32_37 = arith.constant 0 : i32
    %c0_i32_38 = arith.constant 0 : i32
    %c0_i32_39 = arith.constant 0 : i32
    %63 = tpu.memref_slice %arg7[%0, %c0_i32_37, %c0_i32_38, %c0_i32_39] : memref<2x18x18x128xf32, #tpu.memory_space<vmem>> -> memref<1x18x18x128xf32, #tpu.memory_space<vmem>>
    %64 = tpu.memref_squeeze %63 : memref<1x18x18x128xf32, #tpu.memory_space<vmem>> -> memref<18x18x128xf32, #tpu.memory_space<vmem>>
    %c1_40 = arith.constant 1 : index
    %c2_41 = arith.constant 2 : index
    %c0_42 = arith.constant 0 : index
    %65 = vector.load %64[%c1_40, %c2_41, %c0_42] : memref<18x18x128xf32, #tpu.memory_space<vmem>>, vector<16x16x128xf32>
    %66 = vector.extract_strided_slice %16 {offsets = [5, 0], sizes = [1, 128], strides = [1, 1]} : vector<9x128xf32> to vector<1x128xf32>
    %67 = vector.shape_cast %66 : vector<1x128xf32> to vector<128xf32>
    %68 = vector.shape_cast %67 : vector<128xf32> to vector<1x1x128xf32>
    %69 = vector.broadcast %68 : vector<1x1x128xf32> to vector<16x16x128xf32>
    %70 = arith.mulf %65, %69 : vector<16x16x128xf32>
    %71 = arith.addf %62, %70 : vector<16x16x128xf32>
    %c0_i32_43 = arith.constant 0 : i32
    %c0_i32_44 = arith.constant 0 : i32
    %c0_i32_45 = arith.constant 0 : i32
    %72 = tpu.memref_slice %arg7[%0, %c0_i32_43, %c0_i32_44, %c0_i32_45] : memref<2x18x18x128xf32, #tpu.memory_space<vmem>> -> memref<1x18x18x128xf32, #tpu.memory_space<vmem>>
    %73 = tpu.memref_squeeze %72 : memref<1x18x18x128xf32, #tpu.memory_space<vmem>> -> memref<18x18x128xf32, #tpu.memory_space<vmem>>
    %c2_46 = arith.constant 2 : index
    %c0_47 = arith.constant 0 : index
    %c0_48 = arith.constant 0 : index
    %74 = vector.load %73[%c2_46, %c0_47, %c0_48] : memref<18x18x128xf32, #tpu.memory_space<vmem>>, vector<16x16x128xf32>
    %75 = vector.extract_strided_slice %16 {offsets = [6, 0], sizes = [1, 128], strides = [1, 1]} : vector<9x128xf32> to vector<1x128xf32>
    %76 = vector.shape_cast %75 : vector<1x128xf32> to vector<128xf32>
    %77 = vector.shape_cast %76 : vector<128xf32> to vector<1x1x128xf32>
    %78 = vector.broadcast %77 : vector<1x1x128xf32> to vector<16x16x128xf32>
    %79 = arith.mulf %74, %78 : vector<16x16x128xf32>
    %80 = arith.addf %71, %79 : vector<16x16x128xf32>
    %c0_i32_49 = arith.constant 0 : i32
    %c0_i32_50 = arith.constant 0 : i32
    %c0_i32_51 = arith.constant 0 : i32
    %81 = tpu.memref_slice %arg7[%0, %c0_i32_49, %c0_i32_50, %c0_i32_51] : memref<2x18x18x128xf32, #tpu.memory_space<vmem>> -> memref<1x18x18x128xf32, #tpu.memory_space<vmem>>
    %82 = tpu.memref_squeeze %81 : memref<1x18x18x128xf32, #tpu.memory_space<vmem>> -> memref<18x18x128xf32, #tpu.memory_space<vmem>>
    %c2_52 = arith.constant 2 : index
    %c1_53 = arith.constant 1 : index
    %c0_54 = arith.constant 0 : index
    %83 = vector.load %82[%c2_52, %c1_53, %c0_54] : memref<18x18x128xf32, #tpu.memory_space<vmem>>, vector<16x16x128xf32>
    %84 = vector.extract_strided_slice %16 {offsets = [7, 0], sizes = [1, 128], strides = [1, 1]} : vector<9x128xf32> to vector<1x128xf32>
    %85 = vector.shape_cast %84 : vector<1x128xf32> to vector<128xf32>
    %86 = vector.shape_cast %85 : vector<128xf32> to vector<1x1x128xf32>
    %87 = vector.broadcast %86 : vector<1x1x128xf32> to vector<16x16x128xf32>
    %88 = arith.mulf %83, %87 : vector<16x16x128xf32>
    %89 = arith.addf %80, %88 : vector<16x16x128xf32>
    %c0_i32_55 = arith.constant 0 : i32
    %c0_i32_56 = arith.constant 0 : i32
    %c0_i32_57 = arith.constant 0 : i32
    %90 = tpu.memref_slice %arg7[%0, %c0_i32_55, %c0_i32_56, %c0_i32_57] : memref<2x18x18x128xf32, #tpu.memory_space<vmem>> -> memref<1x18x18x128xf32, #tpu.memory_space<vmem>>
    %91 = tpu.memref_squeeze %90 : memref<1x18x18x128xf32, #tpu.memory_space<vmem>> -> memref<18x18x128xf32, #tpu.memory_space<vmem>>
    %c2_58 = arith.constant 2 : index
    %c2_59 = arith.constant 2 : index
    %c0_60 = arith.constant 0 : index
    %92 = vector.load %91[%c2_58, %c2_59, %c0_60] : memref<18x18x128xf32, #tpu.memory_space<vmem>>, vector<16x16x128xf32>
    %93 = vector.extract_strided_slice %16 {offsets = [8, 0], sizes = [1, 128], strides = [1, 1]} : vector<9x128xf32> to vector<1x128xf32>
    %94 = vector.shape_cast %93 : vector<1x128xf32> to vector<128xf32>
    %95 = vector.shape_cast %94 : vector<128xf32> to vector<1x1x128xf32>
    %96 = vector.broadcast %95 : vector<1x1x128xf32> to vector<16x16x128xf32>
    %97 = arith.mulf %92, %96 : vector<16x16x128xf32>
    %98 = arith.addf %89, %97 : vector<16x16x128xf32>
    %99 = arith.truncf %98 : vector<16x16x128xf32> to vector<16x16x128xbf16>
    %100 = vector.shape_cast %99 : vector<16x16x128xbf16> to vector<256x128xbf16>
    %c0_61 = arith.constant 0 : index
    %c0_62 = arith.constant 0 : index
    %101 = vector.load %arg4[%c0_61, %c0_62] : memref<128x128xbf16, #tpu.memory_space<vmem>>, vector<128x128xbf16>
    %cst_63 = arith.constant dense<0.000000e+00> : vector<256x128xf32>
    %102 = tpu.matmul %100, %101, %cst_63 {dimension_numbers = #tpu.dot_dimension_numbers<[1], [0], [0], [1], [0, 0, 1, 1], [], []>} : vector<256x128xbf16>, vector<128x128xbf16>, vector<256x128xf32> -> vector<256x128xf32>
    %103 = vector.shape_cast %102 : vector<256x128xf32> to vector<1x16x16x128xf32>
    %104 = arith.truncf %103 : vector<1x16x16x128xf32> to vector<1x16x16x128xbf16>
    %c0_64 = arith.constant 0 : index
    %c0_65 = arith.constant 0 : index
    %c0_66 = arith.constant 0 : index
    %c0_67 = arith.constant 0 : index
    %105 = vector.load %arg5[%c0_64, %c0_65, %c0_66, %c0_67] : memref<1x16x16x128xbf16, #tpu.memory_space<vmem>>, vector<1x16x16x128xbf16>
    tpu.vector_store %arg5[%c0_64, %c0_65, %c0_66, %c0_67], %104 {strides = array<i32>} : memref<1x16x16x128xbf16, #tpu.memory_space<vmem>>, vector<1x16x16x128xbf16>,
    %cst_68 = arith.constant dense<0.000000e+00> : vector<128xf32>
    %106 = vector.multi_reduction <add>, %102, %cst_68 [0] : vector<256x128xf32> to vector<128xf32>
    %107 = vector.shape_cast %106 : vector<128xf32> to vector<1x128xf32>
    %cst_69 = arith.constant 2.560000e+02 : f32
    %108 = vector.broadcast %cst_69 : f32 to vector<1x128xf32>
    %109 = arith.divf %107, %108 : vector<1x128xf32>
    %110 = vector.broadcast %109 : vector<1x128xf32> to vector<256x128xf32>
    %111 = arith.subf %102, %110 : vector<256x128xf32>
    %112 = arith.mulf %111, %111 : vector<256x128xf32>
    %cst_70 = arith.constant dense<0.000000e+00> : vector<128xf32>
    %113 = vector.multi_reduction <add>, %112, %cst_70 [0] : vector<256x128xf32> to vector<128xf32>
    %114 = vector.shape_cast %113 : vector<128xf32> to vector<1x128xf32>
    %115 = tpu.concatenate %107, %114 in 0 : vector<1x128xf32>, vector<1x128xf32> -> vector<2x128xf32>
    %116 = vector.shape_cast %115 : vector<2x128xf32> to vector<1x2x128xf32>
    %c0_71 = arith.constant 0 : index
    %c0_72 = arith.constant 0 : index
    %c0_73 = arith.constant 0 : index
    %117 = vector.load %arg6[%c0_71, %c0_72, %c0_73] : memref<1x2x128xf32, #tpu.memory_space<vmem>>, vector<1x2x128xf32>
    tpu.vector_store %arg6[%c0_71, %c0_72, %c0_73], %116 {strides = array<i32>} : memref<1x2x128xf32, #tpu.memory_space<vmem>>, vector<1x2x128xf32>,
    return
  }
  func.func @transform_1(%arg0: i32, %arg1: i32) -> (i32, i32) {
    %c0_i32 = arith.constant 0 : i32
    %c0_i32_0 = arith.constant 0 : i32
    %c0_i32_1 = arith.constant 0 : i32
    return %c0_i32, %c0_i32_0 : i32, i32
  }
  func.func @transform_2(%arg0: i32, %arg1: i32) -> (i32, i32) {
    %c0_i32 = arith.constant 0 : i32
    %c0_i32_0 = arith.constant 0 : i32
    %c0_i32_1 = arith.constant 0 : i32
    return %c0_i32, %c0_i32_0 : i32, i32
  }
  func.func @transform_3(%arg0: i32, %arg1: i32) -> (i32, i32, i32, i32) {
    %c0_i32 = arith.constant 0 : i32
    %c0_i32_0 = arith.constant 0 : i32
    %c0_i32_1 = arith.constant 0 : i32
    return %arg0, %arg1, %c0_i32, %c0_i32_0 : i32, i32, i32, i32
  }
  func.func @transform_4(%arg0: i32, %arg1: i32) -> (i32, i32, i32) {
    %c1_i32 = arith.constant 1 : i32
    %0 = arith.muli %arg0, %c1_i32 : i32
    %1 = arith.addi %0, %arg1 : i32
    %c0_i32 = arith.constant 0 : i32
    %c0_i32_0 = arith.constant 0 : i32
    %c0_i32_1 = arith.constant 0 : i32
    return %1, %c0_i32, %c0_i32_0 : i32, i32, i32
  }
}

module attributes {stable_mosaic.version = 11 : i64} {
  func.func @_bn_apply_kernel(%arg0: i32, %arg1: memref<512x128xbf16, #tpu.memory_space<vmem>>, %arg2: memref<1x128xf32, #tpu.memory_space<vmem>>, %arg3: memref<1x128xf32, #tpu.memory_space<vmem>>, %arg4: memref<512x128xf32, #tpu.memory_space<vmem>>) attributes {dimension_semantics = [#tpu.dimension_semantics<parallel>], iteration_bounds = array<i64: 1>, scalar_prefetch = 0 : i64, scratch_operands = 0 : i64, tpu.core_type = #tpu.core_type<tc>, window_params = [{transform_indices = @transform_0, window_bounds = array<i64: 512, 128>}, {pipeline_mode = #tpu.pipeline_mode<synchronous>, transform_indices = @transform_1, window_bounds = array<i64: 1, 128>}, {pipeline_mode = #tpu.pipeline_mode<synchronous>, transform_indices = @transform_2, window_bounds = array<i64: 1, 128>}, {transform_indices = @transform_3, window_bounds = array<i64: 512, 128>}]} {
    %c0 = arith.constant 0 : index
    %c0_0 = arith.constant 0 : index
    %0 = vector.load %arg1[%c0, %c0_0] : memref<512x128xbf16, #tpu.memory_space<vmem>>, vector<512x128xbf16>
    %1 = arith.extf %0 : vector<512x128xbf16> to vector<512x128xf32>
    %c0_1 = arith.constant 0 : index
    %c0_2 = arith.constant 0 : index
    %2 = vector.load %arg2[%c0_1, %c0_2] : memref<1x128xf32, #tpu.memory_space<vmem>>, vector<1x128xf32>
    %3 = vector.broadcast %2 : vector<1x128xf32> to vector<512x128xf32>
    %4 = arith.mulf %1, %3 : vector<512x128xf32>
    %c0_3 = arith.constant 0 : index
    %c0_4 = arith.constant 0 : index
    %5 = vector.load %arg3[%c0_3, %c0_4] : memref<1x128xf32, #tpu.memory_space<vmem>>, vector<1x128xf32>
    %6 = vector.broadcast %5 : vector<1x128xf32> to vector<512x128xf32>
    %7 = arith.addf %4, %6 : vector<512x128xf32>
    %c0_5 = arith.constant 0 : index
    %c0_6 = arith.constant 0 : index
    %8 = vector.load %arg4[%c0_5, %c0_6] : memref<512x128xf32, #tpu.memory_space<vmem>>, vector<512x128xf32>
    tpu.vector_store %arg4[%c0_5, %c0_6], %7 {strides = array<i32>} : memref<512x128xf32, #tpu.memory_space<vmem>>, vector<512x128xf32>,
    return
  }
  func.func @transform_0(%arg0: i32) -> (i32, i32) {
    %c0_i32 = arith.constant 0 : i32
    %c0_i32_0 = arith.constant 0 : i32
    return %arg0, %c0_i32 : i32, i32
  }
  func.func @transform_1(%arg0: i32) -> (i32, i32) {
    %c0_i32 = arith.constant 0 : i32
    %c0_i32_0 = arith.constant 0 : i32
    %c0_i32_1 = arith.constant 0 : i32
    return %c0_i32, %c0_i32_0 : i32, i32
  }
  func.func @transform_2(%arg0: i32) -> (i32, i32) {
    %c0_i32 = arith.constant 0 : i32
    %c0_i32_0 = arith.constant 0 : i32
    %c0_i32_1 = arith.constant 0 : i32
    return %c0_i32, %c0_i32_0 : i32, i32
  }
  func.func @transform_3(%arg0: i32) -> (i32, i32) {
    %c0_i32 = arith.constant 0 : i32
    %c0_i32_0 = arith.constant 0 : i32
    return %arg0, %c0_i32 : i32, i32
  }
}

</mosaic_0001>

<llo_original>
// kernel: separable_conv2d_bn.3
$region0: #{separable_conv2d_bn.3}
  #allocation0 [shape = 'u32[]', space=smem, size = 0x4, offset = 0x4, fixed_abs, tag = 'smem constant byte address 0x4 - core index']
  #allocation1 [shape = 'u32[144,128]{1,0:T(1,128)}', space=vmem, size = 0x12000, scoped, tag = 'internal scratch']
  %s0 = inlined_call_operand.vmem [shape: bf16[512,128], index: 0, kind: input, shape index: {}]
  %s1 = inlined_call_operand.vmem [shape: f32[1,128], index: 1, kind: input, shape index: {}]
  %s2 = inlined_call_operand.vmem [shape: f32[1,128], index: 2, kind: input, shape index: {}]
  %s3 = inlined_call_operand.vmem [shape: f32[512,128], index: 3, kind: output, shape index: {}]
  %s4 = sld [smem:[#allocation0]]
  $region22: #{separable_conv2d_bn.3} parent=0
    _
  %s6 = ssub.s32 1, %s4
  %s7 = scalar_select 0, %s6, %s4
  // Predicated region
  $region2: #{separable_conv2d_bn.3} parent=0 // pred_check
    _
  $region3: #{separable_conv2d_bn.3} parent=0 // pred_check_branch
    %9 = sbr.rel (0) target = $region5
  $region4: #{separable_conv2d_bn.3} parent=0 // pred_region
    _
  $region5: #{separable_conv2d_bn.3} parent=0 // pred_fallthru
    _
  // Predicated region
  $region6: #{separable_conv2d_bn.3} parent=0 // pred_check
    _
  $region7: #{separable_conv2d_bn.3} parent=0 // pred_check_branch
    %11 = sbr.rel (0) target = $region9
  $region8: #{separable_conv2d_bn.3} parent=0 // pred_region
    _
  $region9: #{separable_conv2d_bn.3} parent=0 // pred_fallthru
    _
  // Predicated region
  $region10: #{separable_conv2d_bn.3} parent=0 // pred_check
    _
  $region11: #{separable_conv2d_bn.3} parent=0 // pred_check_branch
    %13 = sbr.rel (0) target = $region13
  $region12: #{separable_conv2d_bn.3} parent=0 // pred_region
    _
  $region13: #{separable_conv2d_bn.3} parent=0 // pred_fallthru
    _
  %v14 = vld [vmem:[%s0] sm:$0xf]
  %v15 = vld [vmem:[%s0 + $0x4] sm:$0xf]
  %v16 = vld [vmem:[%s0 + $0x8] sm:$0xf]
  %v17 = vld [vmem:[%s0 + $0xc] sm:$0xf]
  %v18 = vld [vmem:[%s0 + $0x10] sm:$0xf]
  %v19 = vld [vmem:[%s0 + $0x14] sm:$0xf]
  %v20 = vld [vmem:[%s0 + $0x18] sm:$0xf]
  %v21 = vld [vmem:[%s0 + $0x1c] sm:$0xf]
  %v22 = vld [vmem:[%s0 + $0x20] sm:$0xf]
  %v23 = vld [vmem:[%s0 + $0x24] sm:$0xf]
  %v24 = vld [vmem:[%s0 + $0x28] sm:$0xf]
  %v25 = vld [vmem:[%s0 + $0x2c] sm:$0xf]
  %v26 = vld [vmem:[%s0 + $0x30] sm:$0xf]
  %v27 = vld [vmem:[%s0 + $0x34] sm:$0xf]
  %v28 = vld [vmem:[%s0 + $0x38] sm:$0xf]
  %v29 = vld [vmem:[%s0 + $0x3c] sm:$0xf]
  %v30 = vld [vmem:[%s0 + $0x40] sm:$0xf]
  %v31 = vld [vmem:[%s0 + $0x44] sm:$0xf]
  %v32 = vld [vmem:[%s0 + $0x48] sm:$0xf]
  %v33 = vld [vmem:[%s0 + $0x4c] sm:$0xf]
  %v34 = vld [vmem:[%s0 + $0x50] sm:$0xf]
  %v35 = vld [vmem:[%s0 + $0x54] sm:$0xf]
  %v36 = vld [vmem:[%s0 + $0x58] sm:$0xf]
  %v37 = vld [vmem:[%s0 + $0x5c] sm:$0xf]
  %v38 = vld [vmem:[%s0 + $0x60] sm:$0xf]
  %v39 = vld [vmem:[%s0 + $0x64] sm:$0xf]
  %v40 = vld [vmem:[%s0 + $0x68] sm:$0xf]
  %v41 = vld [vmem:[%s0 + $0x6c] sm:$0xf]
  %v42 = vld [vmem:[%s0 + $0x70] sm:$0xf]
  %v43 = vld [vmem:[%s0 + $0x74] sm:$0xf]
  %v44 = vld [vmem:[%s0 + $0x78] sm:$0xf]
  %v45 = vld [vmem:[%s0 + $0x7c] sm:$0xf]
  %v46 = vld [vmem:[%s0 + $0x80] sm:$0xf]
  %v47 = vld [vmem:[%s0 + $0x84] sm:$0xf]
  %v48 = vld [vmem:[%s0 + $0x88] sm:$0xf]
  %v49 = vld [vmem:[%s0 + $0x8c] sm:$0xf]
  %v50 = vld [vmem:[%s0 + $0x90] sm:$0xf]
  %v51 = vld [vmem:[%s0 + $0x94] sm:$0xf]
  %v52 = vld [vmem:[%s0 + $0x98] sm:$0xf]
  %v53 = vld [vmem:[%s0 + $0x9c] sm:$0xf]
  %v54 = vld [vmem:[%s0 + $0xa0] sm:$0xf]
  %v55 = vld [vmem:[%s0 + $0xa4] sm:$0xf]
  %v56 = vld [vmem:[%s0 + $0xa8] sm:$0xf]
  %v57 = vld [vmem:[%s0 + $0xac] sm:$0xf]
  %v58 = vld [vmem:[%s0 + $0xb0] sm:$0xf]
  %v59 = vld [vmem:[%s0 + $0xb4] sm:$0xf]
  %v60 = vld [vmem:[%s0 + $0xb8] sm:$0xf]
  %v61 = vld [vmem:[%s0 + $0xbc] sm:$0xf]
  %v62 = vld [vmem:[%s0 + $0xc0] sm:$0xf]
  %v63 = vld [vmem:[%s0 + $0xc4] sm:$0xf]
  %v64 = vld [vmem:[%s0 + $0xc8] sm:$0xf]
  %v65 = vld [vmem:[%s0 + $0xcc] sm:$0xf]
  %v66 = vld [vmem:[%s0 + $0xd0] sm:$0xf]
  %v67 = vld [vmem:[%s0 + $0xd4] sm:$0xf]
  %v68 = vld [vmem:[%s0 + $0xd8] sm:$0xf]
  %v69 = vld [vmem:[%s0 + $0xdc] sm:$0xf]
  %v70 = vld [vmem:[%s0 + $0xe0] sm:$0xf]
  %v71 = vld [vmem:[%s0 + $0xe4] sm:$0xf]
  %v72 = vld [vmem:[%s0 + $0xe8] sm:$0xf]
  %v73 = vld [vmem:[%s0 + $0xec] sm:$0xf]
  %v74 = vld [vmem:[%s0 + $0xf0] sm:$0xf]
  %v75 = vld [vmem:[%s0 + $0xf4] sm:$0xf]
  %v76 = vld [vmem:[%s0 + $0xf8] sm:$0xf]
  %v77 = vld [vmem:[%s0 + $0xfc] sm:$0xf]
  %v78 = vunpack.c.l.bf16 %v14
  %v79 = vunpack.c.l.bf16 %v15
  %v80 = vunpack.c.l.bf16 %v16
  %v81 = vunpack.c.l.bf16 %v17
  %v82 = vunpack.c.l.bf16 %v18
  %v83 = vunpack.c.l.bf16 %v19
  %v84 = vunpack.c.l.bf16 %v20
  %v85 = vunpack.c.l.bf16 %v21
  %v86 = vunpack.c.l.bf16 %v22
  %v87 = vunpack.c.l.bf16 %v23
  %v88 = vunpack.c.l.bf16 %v24
  %v89 = vunpack.c.l.bf16 %v25
  %v90 = vunpack.c.l.bf16 %v26
  %v91 = vunpack.c.l.bf16 %v27
  %v92 = vunpack.c.l.bf16 %v28
  %v93 = vunpack.c.l.bf16 %v29
  %v94 = vunpack.c.l.bf16 %v30
  %v95 = vunpack.c.l.bf16 %v31
  %v96 = vunpack.c.l.bf16 %v32
  %v97 = vunpack.c.l.bf16 %v33
  %v98 = vunpack.c.l.bf16 %v34
  %v99 = vunpack.c.l.bf16 %v35
  %v100 = vunpack.c.l.bf16 %v36
  %v101 = vunpack.c.l.bf16 %v37
  %v102 = vunpack.c.l.bf16 %v38
  %v103 = vunpack.c.l.bf16 %v39
  %v104 = vunpack.c.l.bf16 %v40
  %v105 = vunpack.c.l.bf16 %v41
  %v106 = vunpack.c.l.bf16 %v42
  %v107 = vunpack.c.l.bf16 %v43
  %v108 = vunpack.c.l.bf16 %v44
  %v109 = vunpack.c.l.bf16 %v45
  %v110 = vunpack.c.l.bf16 %v46
  %v111 = vunpack.c.l.bf16 %v47
  %v112 = vunpack.c.l.bf16 %v48
  %v113 = vunpack.c.l.bf16 %v49
  %v114 = vunpack.c.l.bf16 %v50
  %v115 = vunpack.c.l.bf16 %v51
  %v116 = vunpack.c.l.bf16 %v52
  %v117 = vunpack.c.l.bf16 %v53
  %v118 = vunpack.c.l.bf16 %v54
  %v119 = vunpack.c.l.bf16 %v55
  %v120 = vunpack.c.l.bf16 %v56
  %v121 = vunpack.c.l.bf16 %v57
  %v122 = vunpack.c.l.bf16 %v58
  %v123 = vunpack.c.l.bf16 %v59
  %v124 = vunpack.c.l.bf16 %v60
  %v125 = vunpack.c.l.bf16 %v61
  %v126 = vunpack.c.l.bf16 %v62
  %v127 = vunpack.c.l.bf16 %v63
  %v128 = vunpack.c.l.bf16 %v64
  %v129 = vunpack.c.l.bf16 %v65
  %v130 = vunpack.c.l.bf16 %v66
  %v131 = vunpack.c.l.bf16 %v67
  %v132 = vunpack.c.l.bf16 %v68
  %v133 = vunpack.c.l.bf16 %v69
  %v134 = vunpack.c.l.bf16 %v70
  %v135 = vunpack.c.l.bf16 %v71
  %v136 = vunpack.c.l.bf16 %v72
  %v137 = vunpack.c.l.bf16 %v73
  %v138 = vunpack.c.l.bf16 %v74
  %v139 = vunpack.c.l.bf16 %v75
  %v140 = vunpack.c.l.bf16 %v76
  %v141 = vunpack.c.l.bf16 %v77
  %v142 = vld [vmem:[%s1] sm:$0x1]
  %v144 = vlaneseq
  %v145 = vshrl.u32 %v144, 7
  %v146 = vsub.s32 0, %v145
  %v147 = vrot.slane %v142, %v146
  %v149 = vmul.f32 %v78, %v147
  %v150 = vmul.f32 %v79, %v147
  %v151 = vmul.f32 %v80, %v147
  %v152 = vmul.f32 %v81, %v147
  %v153 = vmul.f32 %v82, %v147
  %v154 = vmul.f32 %v83, %v147
  %v155 = vmul.f32 %v84, %v147
  %v156 = vmul.f32 %v85, %v147
  %v157 = vmul.f32 %v86, %v147
  %v158 = vmul.f32 %v87, %v147
  %v159 = vmul.f32 %v88, %v147
  %v160 = vmul.f32 %v89, %v147
  %v161 = vmul.f32 %v90, %v147
  %v162 = vmul.f32 %v91, %v147
  %v163 = vmul.f32 %v92, %v147
  %v164 = vmul.f32 %v93, %v147
  %v165 = vmul.f32 %v94, %v147
  %v166 = vmul.f32 %v95, %v147
  %v167 = vmul.f32 %v96, %v147
  %v168 = vmul.f32 %v97, %v147
  %v169 = vmul.f32 %v98, %v147
  %v170 = vmul.f32 %v99, %v147
  %v171 = vmul.f32 %v100, %v147
  %v172 = vmul.f32 %v101, %v147
  %v173 = vmul.f32 %v102, %v147
  %v174 = vmul.f32 %v103, %v147
  %v175 = vmul.f32 %v104, %v147
  %v176 = vmul.f32 %v105, %v147
  %v177 = vmul.f32 %v106, %v147
  %v178 = vmul.f32 %v107, %v147
  %v179 = vmul.f32 %v108, %v147
  %v180 = vmul.f32 %v109, %v147
  %v181 = vmul.f32 %v110, %v147
  %v182 = vmul.f32 %v111, %v147
  %v183 = vmul.f32 %v112, %v147
  %v184 = vmul.f32 %v113, %v147
  %v185 = vmul.f32 %v114, %v147
  %v186 = vmul.f32 %v115, %v147
  %v187 = vmul.f32 %v116, %v147
  %v188 = vmul.f32 %v117, %v147
  %v189 = vmul.f32 %v118, %v147
  %v190 = vmul.f32 %v119, %v147
  %v191 = vmul.f32 %v120, %v147
  %v192 = vmul.f32 %v121, %v147
  %v193 = vmul.f32 %v122, %v147
  %v194 = vmul.f32 %v123, %v147
  %v195 = vmul.f32 %v124, %v147
  %v196 = vmul.f32 %v125, %v147
  %v197 = vmul.f32 %v126, %v147
  %v198 = vmul.f32 %v127, %v147
  %v199 = vmul.f32 %v128, %v147
  %v200 = vmul.f32 %v129, %v147
  %v201 = vmul.f32 %v130, %v147
  %v202 = vmul.f32 %v131, %v147
  %v203 = vmul.f32 %v132, %v147
  %v204 = vmul.f32 %v133, %v147
  %v205 = vmul.f32 %v134, %v147
  %v206 = vmul.f32 %v135, %v147
  %v207 = vmul.f32 %v136, %v147
  %v208 = vmul.f32 %v137, %v147
  %v209 = vmul.f32 %v138, %v147
  %v210 = vmul.f32 %v139, %v147
  %v211 = vmul.f32 %v140, %v147
  %v212 = vmul.f32 %v141, %v147
  %v213 = vld [vmem:[%s2] sm:$0x1]
  %v215 = vlaneseq
  %v216 = vshrl.u32 %v215, 7
  %v217 = vsub.s32 0, %v216
  %v218 = vrot.slane %v213, %v217
  %v220 = vadd.f32 %v149, %v218
  %v221 = vadd.f32 %v150, %v218
  %v222 = vadd.f32 %v151, %v218
  %v223 = vadd.f32 %v152, %v218
  %v224 = vadd.f32 %v153, %v218
  %v225 = vadd.f32 %v154, %v218
  %v226 = vadd.f32 %v155, %v218
  %v227 = vadd.f32 %v156, %v218
  %v228 = vadd.f32 %v157, %v218
  %v229 = vadd.f32 %v158, %v218
  %v230 = vadd.f32 %v159, %v218
  %v231 = vadd.f32 %v160, %v218
  %v232 = vadd.f32 %v161, %v218
  %v233 = vadd.f32 %v162, %v218
  %v234 = vadd.f32 %v163, %v218
  %v235 = vadd.f32 %v164, %v218
  %v236 = vadd.f32 %v165, %v218
  %v237 = vadd.f32 %v166, %v218
  %v238 = vadd.f32 %v167, %v218
  %v239 = vadd.f32 %v168, %v218
  %v240 = vadd.f32 %v169, %v218
  %v241 = vadd.f32 %v170, %v218
  %v242 = vadd.f32 %v171, %v218
  %v243 = vadd.f32 %v172, %v218
  %v244 = vadd.f32 %v173, %v218
  %v245 = vadd.f32 %v174, %v218
  %v246 = vadd.f32 %v175, %v218
  %v247 = vadd.f32 %v176, %v218
  %v248 = vadd.f32 %v177, %v218
  %v249 = vadd.f32 %v178, %v218
  %v250 = vadd.f32 %v179, %v218
  %v251 = vadd.f32 %v180, %v218
  %v252 = vadd.f32 %v181, %v218
  %v253 = vadd.f32 %v182, %v218
  %v254 = vadd.f32 %v183, %v218
  %v255 = vadd.f32 %v184, %v218
  %v256 = vadd.f32 %v185, %v218
  %v257 = vadd.f32 %v186, %v218
  %v258 = vadd.f32 %v187, %v218
  %v259 = vadd.f32 %v188, %v218
  %v260 = vadd.f32 %v189, %v218
  %v261 = vadd.f32 %v190, %v218
  %v262 = vadd.f32 %v191, %v218
  %v263 = vadd.f32 %v192, %v218
  %v264 = vadd.f32 %v193, %v218
  %v265 = vadd.f32 %v194, %v218
  %v266 = vadd.f32 %v195, %v218
  %v267 = vadd.f32 %v196, %v218
  %v268 = vadd.f32 %v197, %v218
  %v269 = vadd.f32 %v198, %v218
  %v270 = vadd.f32 %v199, %v218
  %v271 = vadd.f32 %v200, %v218
  %v272 = vadd.f32 %v201, %v218
  %v273 = vadd.f32 %v202, %v218
  %v274 = vadd.f32 %v203, %v218
  %v275 = vadd.f32 %v204, %v218
  %v276 = vadd.f32 %v205, %v218
  %v277 = vadd.f32 %v206, %v218
  %v278 = vadd.f32 %v207, %v218
  %v279 = vadd.f32 %v208, %v218
  %v280 = vadd.f32 %v209, %v218
  %v281 = vadd.f32 %v210, %v218
  %v282 = vadd.f32 %v211, %v218
  %v283 = vadd.f32 %v212, %v218
  %284 = vst [vmem:[%s3] sm:$0xff] %v220
  %285 = vst [vmem:[%s3 + $0x8] sm:$0xff] %v221
  %286 = vst [vmem:[%s3 + $0x10] sm:$0xff] %v222
  %287 = vst [vmem:[%s3 + $0x18] sm:$0xff] %v223
  %288 = vst [vmem:[%s3 + $0x20] sm:$0xff] %v224
  %289 = vst [vmem:[%s3 + $0x28] sm:$0xff] %v225
  %290 = vst [vmem:[%s3 + $0x30] sm:$0xff] %v226
  %291 = vst [vmem:[%s3 + $0x38] sm:$0xff] %v227
  %292 = vst [vmem:[%s3 + $0x40] sm:$0xff] %v228
  %293 = vst [vmem:[%s3 + $0x48] sm:$0xff] %v229
  %294 = vst [vmem:[%s3 + $0x50] sm:$0xff] %v230
  %295 = vst [vmem:[%s3 + $0x58] sm:$0xff] %v231
  %296 = vst [vmem:[%s3 + $0x60] sm:$0xff] %v232
  %297 = vst [vmem:[%s3 + $0x68] sm:$0xff] %v233
  %298 = vst [vmem:[%s3 + $0x70] sm:$0xff] %v234
  %299 = vst [vmem:[%s3 + $0x78] sm:$0xff] %v235
  %300 = vst [vmem:[%s3 + $0x80] sm:$0xff] %v236
  %301 = vst [vmem:[%s3 + $0x88] sm:$0xff] %v237
  %302 = vst [vmem:[%s3 + $0x90] sm:$0xff] %v238
  %303 = vst [vmem:[%s3 + $0x98] sm:$0xff] %v239
  %304 = vst [vmem:[%s3 + $0xa0] sm:$0xff] %v240
  %305 = vst [vmem:[%s3 + $0xa8] sm:$0xff] %v241
  %306 = vst [vmem:[%s3 + $0xb0] sm:$0xff] %v242
  %307 = vst [vmem:[%s3 + $0xb8] sm:$0xff] %v243
  %308 = vst [vmem:[%s3 + $0xc0] sm:$0xff] %v244
  %309 = vst [vmem:[%s3 + $0xc8] sm:$0xff] %v245
  %310 = vst [vmem:[%s3 + $0xd0] sm:$0xff] %v246
  %311 = vst [vmem:[%s3 + $0xd8] sm:$0xff] %v247
  %312 = vst [vmem:[%s3 + $0xe0] sm:$0xff] %v248
  %313 = vst [vmem:[%s3 + $0xe8] sm:$0xff] %v249
  %314 = vst [vmem:[%s3 + $0xf0] sm:$0xff] %v250
  %315 = vst [vmem:[%s3 + $0xf8] sm:$0xff] %v251
  %316 = vst [vmem:[%s3 + $0x100] sm:$0xff] %v252
  %317 = vst [vmem:[%s3 + $0x108] sm:$0xff] %v253
  %318 = vst [vmem:[%s3 + $0x110] sm:$0xff] %v254
  %319 = vst [vmem:[%s3 + $0x118] sm:$0xff] %v255
  %320 = vst [vmem:[%s3 + $0x120] sm:$0xff] %v256
  %321 = vst [vmem:[%s3 + $0x128] sm:$0xff] %v257
  %322 = vst [vmem:[%s3 + $0x130] sm:$0xff] %v258
  %323 = vst [vmem:[%s3 + $0x138] sm:$0xff] %v259
  %324 = vst [vmem:[%s3 + $0x140] sm:$0xff] %v260
  %325 = vst [vmem:[%s3 + $0x148] sm:$0xff] %v261
  %326 = vst [vmem:[%s3 + $0x150] sm:$0xff] %v262
  %327 = vst [vmem:[%s3 + $0x158] sm:$0xff] %v263
  %328 = vst [vmem:[%s3 + $0x160] sm:$0xff] %v264
  %329 = vst [vmem:[%s3 + $0x168] sm:$0xff] %v265
  %330 = vst [vmem:[%s3 + $0x170] sm:$0xff] %v266
  %331 = vst [vmem:[%s3 + $0x178] sm:$0xff] %v267
  %332 = vst [vmem:[%s3 + $0x180] sm:$0xff] %v268
  %333 = vst [vmem:[%s3 + $0x188] sm:$0xff] %v269
  %334 = vst [vmem:[%s3 + $0x190] sm:$0xff] %v270
  %335 = vst [vmem:[%s3 + $0x198] sm:$0xff] %v271
  %336 = vst [vmem:[%s3 + $0x1a0] sm:$0xff] %v272
  %337 = vst [vmem:[%s3 + $0x1a8] sm:$0xff] %v273
  %338 = vst [vmem:[%s3 + $0x1b0] sm:$0xff] %v274
  %339 = vst [vmem:[%s3 + $0x1b8] sm:$0xff] %v275
  %340 = vst [vmem:[%s3 + $0x1c0] sm:$0xff] %v276
  %341 = vst [vmem:[%s3 + $0x1c8] sm:$0xff] %v277
  %342 = vst [vmem:[%s3 + $0x1d0] sm:$0xff] %v278
  %343 = vst [vmem:[%s3 + $0x1d8] sm:$0xff] %v279
  %344 = vst [vmem:[%s3 + $0x1e0] sm:$0xff] %v280
  %345 = vst [vmem:[%s3 + $0x1e8] sm:$0xff] %v281
  %346 = vst [vmem:[%s3 + $0x1f0] sm:$0xff] %v282
  %347 = vst [vmem:[%s3 + $0x1f8] sm:$0xff] %v283
  // Predicated region
  $region14: #{separable_conv2d_bn.3} parent=0 // pred_check
    _
  $region15: #{separable_conv2d_bn.3} parent=0 // pred_check_branch
    %349 = sbr.rel (0) target = $region17
  $region16: #{separable_conv2d_bn.3} parent=0 // pred_region
    _
  $region17: #{separable_conv2d_bn.3} parent=0 // pred_fallthru
    _
  // Predicated region
  $region18: #{separable_conv2d_bn.3} parent=0 // pred_check
    _
  $region19: #{separable_conv2d_bn.3} parent=0 // pred_check_branch
    %351 = sbr.rel (0) target = $region21
  $region20: #{separable_conv2d_bn.3} parent=0 // pred_region
    _
  $region21: #{separable_conv2d_bn.3} parent=0 // pred_fallthru
    _

// kernel: separable_conv2d_bn.2
$region0: #{separable_conv2d_bn.2}
  #allocation0 [shape = 'u32[]', space=smem, size = 0x4, offset = 0x4, fixed_abs, tag = 'smem constant byte address 0x4 - core index']
  #allocation1 [shape = 'u32[144,128]{1,0:T(1,128)}', space=vmem, size = 0x12000, scoped, tag = 'internal scratch']
  #allocation2 [shape = 'f32[2,18,18,128]{3,2,1,0:T(8,128)}', space=vmem, size = 0x6c000, scoped, tag = 'scratch operand']
  #allocation3 [shape = 's32[2]{0}', space=sflag, size = 0x8, scoped, tag = 'scratch operand']
  #allocation4 [shape = 's32[]', space=sflag, size = 0x4, offset = 0, fixed_abs, tag = 'sflag constant byte address 0x0 - dummy sync flag']
  #allocation5 [shape = 's32[]', space=sflag, size = 0x4, offset = 0, fixed_abs, tag = 'sflag constant byte address 0x0 - dummy sync flag']
  %s0 = inlined_call_operand.vmem [shape: f32[2,18,18,128], index: 0, kind: input, shape index: {}]
  %s1 = inlined_call_operand.vmem [shape: f32[9,128], index: 1, kind: input, shape index: {}]
  %s2 = inlined_call_operand.vmem [shape: bf16[128,128], index: 2, kind: input, shape index: {}]
  %s3 = inlined_call_operand.vmem [shape: bf16[2,16,16,128], index: 3, kind: output, shape index: {0}]
  %s4 = inlined_call_operand.vmem [shape: f32[2,2,128], index: 4, kind: output, shape index: {1}]
  %5 = xla_tuple %s3, %s4
  %s6 = sld [smem:[#allocation0]]
  $region131: #{separable_conv2d_bn.2} parent=0
    _
  %s8 = ssub.s32 1, %s6
  %s9 = scalar_select 0, %s8, %s6
  loop: start=0, step=1, limit=4
  $region2: #{separable_conv2d_bn.2} parent=0 // loop_pre_header
    _
  $region3: #{separable_conv2d_bn.2} parent=0 // loop_header
    %s11 = sphi 0, %s15
    %p12 = scmp.ge.s32.totalorder %s11, 4
    %s18 = sphi 0, %s30
    %s19 = sphi 0, %s26
    %s20 = sphi 0, %s18
    %s21 = sphi 0, %s19
    %s22 = sphi 0, %s20
    %s23 = sphi 0, %s21
    %s31 = sphi 0, %s31
    %s33 = sphi 0, %s31
    %s34 = sphi 0, %s33
    %s48 = sphi 0, %s34
    %s52 = sphi 0, %s52
    %s54 = sphi 0, %s52
    %s55 = sphi 0, %s54
    %s69 = sphi 0, %s55
    %s77 = sphi 0, %s79
    %s80 = sphi 0, %s77
    %s81 = sphi 0, %s80
    %s97 = sphi 0, %s81
    %s105 = sphi 0, %s107
    %s108 = sphi 0, %s105
    %s109 = sphi 0, %s108
    %s125 = sphi 0, %s109
  $region4: #{separable_conv2d_bn.2} parent=0 // loop_header_branch
    %14 = sbr.rel (%p12) target = $region8
  $region5: #{separable_conv2d_bn.2} parent=0 // loop_body
    %s16 = ssub.s32 %s11, 1
    %s17 = ssub.s32 %s11, 2
    %s24 = sadd.s32 1, %s19
    %p25 = scmp.ge.s32.totalorder %s24, 1
    %s26 = scalar_select %p25, 0, %s24
    %s27 = sadd.s32 1, %s18
    %s28 = scalar_select %p25, %s27, %s18
    %p29 = scmp.ge.s32.totalorder %s28, 2
    %s30 = scalar_select %p29, 0, %s28
    %s32 = sadd.s32 %s31, 1
    %p35 = scmp.eq.s32.totalorder %s11, 1
    %p36 = scmp.ne.s32.totalorder %s31, %s33
    %p37 = scmp.eq.s32.totalorder %s11, 0
    %p38 = por %p36, %p37
    %p39 = scmp.ne.s32.totalorder %s31, %s33
    %p40 = scmp.eq.s32.totalorder %s16, 1
    %p41 = por %p39, %p40
    %p42 = scmp.ne.s32.totalorder %s33, %s34
    %p43 = scmp.eq.s32.totalorder %s16, 0
    %p44 = por %p42, %p43
    %p45 = scmp.ne.s32.totalorder %s33, %s34
    %p46 = scmp.eq.s32.totalorder %s17, 1
    %p47 = por %p45, %p46
    %p49 = scmp.ne.s32.totalorder %s34, %s48
    %p50 = scmp.eq.s32.totalorder %s17, 0
    %p51 = por %p49, %p50
    %s53 = sadd.s32 %s52, 1
    %p56 = scmp.eq.s32.totalorder %s11, 1
    %p57 = scmp.ne.s32.totalorder %s52, %s54
    %p58 = scmp.eq.s32.totalorder %s11, 0
    %p59 = por %p57, %p58
    %p60 = scmp.ne.s32.totalorder %s52, %s54
    %p61 = scmp.eq.s32.totalorder %s16, 1
    %p62 = por %p60, %p61
    %p63 = scmp.ne.s32.totalorder %s54, %s55
    %p64 = scmp.eq.s32.totalorder %s16, 0
    %p65 = por %p63, %p64
    %p66 = scmp.ne.s32.totalorder %s54, %s55
    %p67 = scmp.eq.s32.totalorder %s17, 1
    %p68 = por %p66, %p67
    %p70 = scmp.ne.s32.totalorder %s55, %s69
    %p71 = scmp.eq.s32.totalorder %s17, 0
    %p72 = por %p70, %p71
    %s73 = ssub.s32 %s18, %s30
    %s74 = ssub.s32 %s19, %s26
    %s75 = sor.u32 %s73, %s74
    %p76 = scmp.eq.s32.totalorder %s75, 0
    %s78 = sadd.s32 %s77, 1
    %s79 = scalar_select %p76, %s77, %s78
    %p82 = pneg %p76
    %p83 = scmp.eq.s32.totalorder %s11, 1
    %p84 = por %p82, %p83
    %p85 = scmp.ne.s32.totalorder %s77, %s80
    %p86 = scmp.eq.s32.totalorder %s11, 0
    %p87 = por %p85, %p86
    %p88 = scmp.ne.s32.totalorder %s77, %s80
    %p89 = scmp.eq.s32.totalorder %s16, 1
    %p90 = por %p88, %p89
    %p91 = scmp.ne.s32.totalorder %s80, %s81
    %p92 = scmp.eq.s32.totalorder %s16, 0
    %p93 = por %p91, %p92
    %p94 = scmp.ne.s32.totalorder %s80, %s81
    %p95 = scmp.eq.s32.totalorder %s17, 1
    %p96 = por %p94, %p95
    %p98 = scmp.ne.s32.totalorder %s81, %s97
    %p99 = scmp.eq.s32.totalorder %s17, 0
    %p100 = por %p98, %p99
    %s101 = sadd.s32 %s18, %s19
    %s102 = sadd.s32 %s30, %s26
    %s103 = ssub.s32 %s101, %s102
    %p104 = scmp.eq.s32.totalorder %s103, 0
    %s106 = sadd.s32 %s105, 1
    %s107 = scalar_select %p104, %s105, %s106
    %p110 = pneg %p104
    %p111 = scmp.eq.s32.totalorder %s11, 1
    %p112 = por %p110, %p111
    %p113 = scmp.ne.s32.totalorder %s105, %s108
    %p114 = scmp.eq.s32.totalorder %s11, 0
    %p115 = por %p113, %p114
    %p116 = scmp.ne.s32.totalorder %s105, %s108
    %p117 = scmp.eq.s32.totalorder %s16, 1
    %p118 = por %p116, %p117
    %p119 = scmp.ne.s32.totalorder %s108, %s109
    %p120 = scmp.eq.s32.totalorder %s16, 0
    %p121 = por %p119, %p120
    %p122 = scmp.ne.s32.totalorder %s108, %s109
    %p123 = scmp.eq.s32.totalorder %s17, 1
    %p124 = por %p122, %p123
    %p126 = scmp.ne.s32.totalorder %s109, %s125
    %p127 = scmp.eq.s32.totalorder %s17, 0
    %p128 = por %p126, %p127
    %p129 = scmp.le.s32.totalorder 1, %s11
    %p130 = scmp.lt.s32.totalorder %s11, 3
    %p131 = pnand %p129, %p130
    %p132 = pneg %p131
    // Predicated region
    $region9: #{separable_conv2d_bn.2} parent=5 // pred_check
      _
    $region10: #{separable_conv2d_bn.2} parent=5 // pred_check_branch
      %134 = sbr.rel (%p131) target = $region12
    $region11: #{separable_conv2d_bn.2} parent=5 // pred_region
      %s135 = ssub.s32 %s11, 1
      // Predicated region
      $region13: #{separable_conv2d_bn.2} parent=11 // pred_check
        %p136 = pneg %p44
      $region14: #{separable_conv2d_bn.2} parent=11 // pred_check_branch
        %138 = sbr.rel (%p136) target = $region16
      $region15: #{separable_conv2d_bn.2} parent=11 // pred_region
        _
      $region16: #{separable_conv2d_bn.2} parent=11 // pred_fallthru
        _
      // Predicated region
      $region17: #{separable_conv2d_bn.2} parent=11 // pred_check
        %p139 = pneg %p65
      $region18: #{separable_conv2d_bn.2} parent=11 // pred_check_branch
        %141 = sbr.rel (%p139) target = $region20
      $region19: #{separable_conv2d_bn.2} parent=11 // pred_region
        _
      $region20: #{separable_conv2d_bn.2} parent=11 // pred_fallthru
        _
    $region12: #{separable_conv2d_bn.2} parent=5 // pred_fallthru
      _
    %p142 = scmp.lt.s32.totalorder %s11, 2
    // Predicated region
    $region21: #{separable_conv2d_bn.2} parent=5 // pred_check
      %p143 = pneg %p142
    $region22: #{separable_conv2d_bn.2} parent=5 // pred_check_branch
      %145 = sbr.rel (%p143) target = $region24
    $region23: #{separable_conv2d_bn.2} parent=5 // pred_region
      _
    $region24: #{separable_conv2d_bn.2} parent=5 // pred_fallthru
      _
    %p146 = scmp.le.s32.totalorder 1, %s11
    %p147 = scmp.lt.s32.totalorder %s11, 3
    %p148 = pnand %p146, %p147
    %p149 = pneg %p148
    // Predicated region
    $region25: #{separable_conv2d_bn.2} parent=5 // pred_check
      _
    $region26: #{separable_conv2d_bn.2} parent=5 // pred_check_branch
      %151 = sbr.rel (%p148) target = $region28
    $region27: #{separable_conv2d_bn.2} parent=5 // pred_region
      %s152 = ssub.s32 %s11, 1
      %p153 = pneg %p44
      %p154 = pneg %p41
      %p155 = pneg %p65
      %p156 = pneg %p62
      %p157 = pneg %p93
      %p158 = pneg %p90
      %s159 = smul.u32 16, %s21
      %p160 = scmp.lt.s32.totalorder %s20, 1
      %s161 = scalar_select %p160, %s20, 1
      %p162 = scmp.lt.s32.totalorder %s159, 15
      %s163 = scalar_select %p162, %s159, 15
      %s164 = smul.addr %s163, 2
      %s165 = smul.addr %s161, 32
      %s166 = sadd.s32 %s164, %s165
      %s167 = smul.addr %s166, 4
      %s168 = scalar_lea.vmem %s3, %s167
      %p169 = pneg %p121
      %p170 = pneg %p118
      %s171 = sadd.s32 %s20, %s21
      %p172 = scmp.lt.s32.totalorder %s171, 1
      %s173 = scalar_select %p172, %s171, 1
      %s174 = smul.addr %s173, 2
      %s175 = scalar_lea.vmem %s4, %s174
      %s176 = smul.u32 16, %s21
      %p177 = scmp.lt.s32.totalorder %s20, 1
      %s178 = scalar_select %p177, %s20, 1
      %p179 = scmp.lt.s32.totalorder %s176, 15
      %s180 = scalar_select %p179, %s176, 15
      %s181 = smul.addr %s180, 2
      %s182 = smul.addr %s178, 32
      %s183 = sadd.s32 %s181, %s182
      %s184 = smul.addr %s183, 4
      %s185 = scalar_lea.vmem %s3, %s184
      %s186 = smul.u32 16, %s21
      %s187 = sadd.s32 %s20, %s21
      %p188 = scmp.lt.s32.totalorder %s187, 1
      %s189 = scalar_select %p188, %s187, 1
      %s190 = smul.addr %s189, 2
      %s191 = scalar_lea.vmem %s4, %s190
      %s192 = sadd.s32 %s20, %s21
      %p194 = scmp.lt.s32.totalorder %s21, 0
      %s195 = ssub.s32 0, %s21
      %s196 = scalar_select %p194, %s195, %s21
      %s197 = sand.u32 %s196, 1
      %s198 = ssub.s32 0, %s197
      %s199 = scalar_select %p194, %s198, %s197
      %p200 = scmp.eq.s32.totalorder %s21, 0
      // Predicated region
      $region29: #{separable_conv2d_bn.2} parent=27 // pred_check
        %p201 = pneg %p200
      $region30: #{separable_conv2d_bn.2} parent=27 // pred_check_branch
        %203 = sbr.rel (%p201) target = $region32
      $region31: #{separable_conv2d_bn.2} parent=27 // pred_region
        %s204 = smul.u32 %s21, 16
        %s205 = smul.u32 %s204, 24
        %s206 = smul.u32 %s20, 432
        %s207 = sadd.s32 %s205, %s206
        %s208 = scalar_lea.vmem %s0, %s207
        %s209 = smul.u32 %s199, 432
        %s210 = scalar_lea.vmem [#allocation2], %s209
        %s211 = scalar_lea.sflag [#allocation3], %s199
        %p213 = scmp.lt.u32.totalorder 18, 8
        %p214 = pneg %p213
        // Predicated region
        $region33: #{separable_conv2d_bn.2} parent=31 // pred_check
          _
        $region34: #{separable_conv2d_bn.2} parent=31 // pred_check_branch
          %216 = sbr.rel (%p213) target = $region36
        $region35: #{separable_conv2d_bn.2} parent=31 // pred_region
          %s265 = sand.u32 18, 7
          %p266 = scmp.eq.s32.totalorder %s265, 0
          %p267 = pneg %p266
          // Predicated region
          $region48: #{separable_conv2d_bn.2} parent=35 // pred_check
            _
          $region49: #{separable_conv2d_bn.2} parent=35 // pred_check_branch
            %269 = sbr.rel (%p266) target = $region51
          $region50: #{separable_conv2d_bn.2} parent=35 // pred_region
            %s270 = sand.u32 18, 7
            %s271 = ssub.s32 18, %s270
            %s272 = scalar_lea.vmem %s208, %s271
            %s273 = ssub.s32 18, %s270
            %s274 = scalar_lea.vmem %s210, %s273 [#allocation2]
            loop: start=0, step=1, limit=1
            $region52: #{separable_conv2d_bn.2} parent=50 // loop_pre_header
              _
            $region53: #{separable_conv2d_bn.2} parent=50 // loop_header
              %s276 = sphi 0, %s280
              %p277 = scmp.ge.s32.totalorder %s276, 1
              %s281 = sphi %s208, %s208
              %s282 = sphi %s210, %s210
            $region54: #{separable_conv2d_bn.2} parent=50 // loop_header_branch
              %279 = sbr.rel (%p277) target = $region58
            $region55: #{separable_conv2d_bn.2} parent=50 // loop_body
              %v283 = vld [vmem:[%s281] sm:$0xff]
              %284 = vst [vmem:[%s282] sm:$0xff] %v283
              %v285 = vld [vmem:[%s281 + $0x8] sm:$0xff]
              %286 = vst [vmem:[%s282 + $0x8] sm:$0xff] %v285
              %v287 = vld [vmem:[%s281 + $0x18] sm:$0xff]
              %288 = vst [vmem:[%s282 + $0x18] sm:$0xff] %v287
              %v289 = vld [vmem:[%s281 + $0x20] sm:$0xff]
              %290 = vst [vmem:[%s282 + $0x20] sm:$0xff] %v289
              %v291 = vld [vmem:[%s281 + $0x30] sm:$0xff]
              %292 = vst [vmem:[%s282 + $0x30] sm:$0xff] %v291
              %v293 = vld [vmem:[%s281 + $0x38] sm:$0xff]
              %294 = vst [vmem:[%s282 + $0x38] sm:$0xff] %v293
              %v295 = vld [vmem:[%s281 + $0x48] sm:$0xff]
              %296 = vst [vmem:[%s282 + $0x48] sm:$0xff] %v295
              %v297 = vld [vmem:[%s281 + $0x50] sm:$0xff]
              %298 = vst [vmem:[%s282 + $0x50] sm:$0xff] %v297
              %v299 = vld [vmem:[%s281 + $0x60] sm:$0xff]
              %300 = vst [vmem:[%s282 + $0x60] sm:$0xff] %v299
              %v301 = vld [vmem:[%s281 + $0x68] sm:$0xff]
              %302 = vst [vmem:[%s282 + $0x68] sm:$0xff] %v301
              %v303 = vld [vmem:[%s281 + $0x78] sm:$0xff]
              %304 = vst [vmem:[%s282 + $0x78] sm:$0xff] %v303
              %v305 = vld [vmem:[%s281 + $0x80] sm:$0xff]
              %306 = vst [vmem:[%s282 + $0x80] sm:$0xff] %v305
              %v307 = vld [vmem:[%s281 + $0x90] sm:$0xff]
              %308 = vst [vmem:[%s282 + $0x90] sm:$0xff] %v307
              %v309 = vld [vmem:[%s281 + $0x98] sm:$0xff]
              %310 = vst [vmem:[%s282 + $0x98] sm:$0xff] %v309
              %v311 = vld [vmem:[%s281 + $0xa8] sm:$0xff]
              %312 = vst [vmem:[%s282 + $0xa8] sm:$0xff] %v311
              %v313 = vld [vmem:[%s281 + $0xb0] sm:$0xff]
              %314 = vst [vmem:[%s282 + $0xb0] sm:$0xff] %v313
              %v315 = vld [vmem:[%s281 + $0xc0] sm:$0xff]
              %316 = vst [vmem:[%s282 + $0xc0] sm:$0xff] %v315
              %v317 = vld [vmem:[%s281 + $0xc8] sm:$0xff]
              %318 = vst [vmem:[%s282 + $0xc8] sm:$0xff] %v317
              %v319 = vld [vmem:[%s281 + $0xd8] sm:$0xff]
              %320 = vst [vmem:[%s282 + $0xd8] sm:$0xff] %v319
              %v321 = vld [vmem:[%s281 + $0xe0] sm:$0xff]
              %322 = vst [vmem:[%s282 + $0xe0] sm:$0xff] %v321
              %v323 = vld [vmem:[%s281 + $0xf0] sm:$0xff]
              %324 = vst [vmem:[%s282 + $0xf0] sm:$0xff] %v323
              %v325 = vld [vmem:[%s281 + $0xf8] sm:$0xff]
              %326 = vst [vmem:[%s282 + $0xf8] sm:$0xff] %v325
              %v327 = vld [vmem:[%s281 + $0x108] sm:$0xff]
              %328 = vst [vmem:[%s282 + $0x108] sm:$0xff] %v327
              %v329 = vld [vmem:[%s281 + $0x110] sm:$0xff]
              %330 = vst [vmem:[%s282 + $0x110] sm:$0xff] %v329
              %v331 = vld [vmem:[%s281 + $0x120] sm:$0xff]
              %332 = vst [vmem:[%s282 + $0x120] sm:$0xff] %v331
              %v333 = vld [vmem:[%s281 + $0x128] sm:$0xff]
              %334 = vst [vmem:[%s282 + $0x128] sm:$0xff] %v333
              %v335 = vld [vmem:[%s281 + $0x138] sm:$0xff]
              %336 = vst [vmem:[%s282 + $0x138] sm:$0xff] %v335
              %v337 = vld [vmem:[%s281 + $0x140] sm:$0xff]
              %338 = vst [vmem:[%s282 + $0x140] sm:$0xff] %v337
              %v339 = vld [vmem:[%s281 + $0x150] sm:$0xff]
              %340 = vst [vmem:[%s282 + $0x150] sm:$0xff] %v339
              %v341 = vld [vmem:[%s281 + $0x158] sm:$0xff]
              %342 = vst [vmem:[%s282 + $0x158] sm:$0xff] %v341
              %v343 = vld [vmem:[%s281 + $0x168] sm:$0xff]
              %344 = vst [vmem:[%s282 + $0x168] sm:$0xff] %v343
              %v345 = vld [vmem:[%s281 + $0x170] sm:$0xff]
              %346 = vst [vmem:[%s282 + $0x170] sm:$0xff] %v345
              %v347 = vld [vmem:[%s281 + $0x180] sm:$0xff]
              %348 = vst [vmem:[%s282 + $0x180] sm:$0xff] %v347
              %v349 = vld [vmem:[%s281 + $0x188] sm:$0xff]
              %350 = vst [vmem:[%s282 + $0x188] sm:$0xff] %v349
              %v351 = vld [vmem:[%s281 + $0x198] sm:$0xff]
              %352 = vst [vmem:[%s282 + $0x198] sm:$0xff] %v351
              %v353 = vld [vmem:[%s281 + $0x1a0] sm:$0xff]
              %354 = vst [vmem:[%s282 + $0x1a0] sm:$0xff] %v353
            $region56: #{separable_conv2d_bn.2} parent=50 // loop_footer
              %s280 = sadd.s32 1, %s276
            $region57: #{separable_conv2d_bn.2} parent=50 // loop_footer_branch
              %275 = sbr.rel target = $region53
            $region58: #{separable_conv2d_bn.2} parent=50 // loop_exit
              _
            %s355 = sshllo.u32 0, %s270
            loop: start=0, step=1, limit=1
            $region59: #{separable_conv2d_bn.2} parent=50 // loop_pre_header
              _
            $region60: #{separable_conv2d_bn.2} parent=50 // loop_header
              %s357 = sphi 0, %s361
              %p358 = scmp.ge.s32.totalorder %s357, 1
              %s362 = sphi %s272, %s272
              %s363 = sphi %s274, %s274
            $region61: #{separable_conv2d_bn.2} parent=50 // loop_header_branch
              %360 = sbr.rel (%p358) target = $region65
            $region62: #{separable_conv2d_bn.2} parent=50 // loop_body
              %v364 = vld [vmem:[%s362] sm:%s355]
              %365 = vst [vmem:[%s363] sm:%s355] %v364
              %v366 = vld [vmem:[%s362 + $0x18] sm:%s355]
              %367 = vst [vmem:[%s363 + $0x18] sm:%s355] %v366
              %v368 = vld [vmem:[%s362 + $0x30] sm:%s355]
              %369 = vst [vmem:[%s363 + $0x30] sm:%s355] %v368
              %v370 = vld [vmem:[%s362 + $0x48] sm:%s355]
              %371 = vst [vmem:[%s363 + $0x48] sm:%s355] %v370
              %v372 = vld [vmem:[%s362 + $0x60] sm:%s355]
              %373 = vst [vmem:[%s363 + $0x60] sm:%s355] %v372
              %v374 = vld [vmem:[%s362 + $0x78] sm:%s355]
              %375 = vst [vmem:[%s363 + $0x78] sm:%s355] %v374
              %v376 = vld [vmem:[%s362 + $0x90] sm:%s355]
              %377 = vst [vmem:[%s363 + $0x90] sm:%s355] %v376
              %v378 = vld [vmem:[%s362 + $0xa8] sm:%s355]
              %379 = vst [vmem:[%s363 + $0xa8] sm:%s355] %v378
              %v380 = vld [vmem:[%s362 + $0xc0] sm:%s355]
              %381 = vst [vmem:[%s363 + $0xc0] sm:%s355] %v380
              %v382 = vld [vmem:[%s362 + $0xd8] sm:%s355]
              %383 = vst [vmem:[%s363 + $0xd8] sm:%s355] %v382
              %v384 = vld [vmem:[%s362 + $0xf0] sm:%s355]
              %385 = vst [vmem:[%s363 + $0xf0] sm:%s355] %v384
              %v386 = vld [vmem:[%s362 + $0x108] sm:%s355]
              %387 = vst [vmem:[%s363 + $0x108] sm:%s355] %v386
              %v388 = vld [vmem:[%s362 + $0x120] sm:%s355]
              %389 = vst [vmem:[%s363 + $0x120] sm:%s355] %v388
              %v390 = vld [vmem:[%s362 + $0x138] sm:%s355]
              %391 = vst [vmem:[%s363 + $0x138] sm:%s355] %v390
              %v392 = vld [vmem:[%s362 + $0x150] sm:%s355]
              %393 = vst [vmem:[%s363 + $0x150] sm:%s355] %v392
              %v394 = vld [vmem:[%s362 + $0x168] sm:%s355]
              %395 = vst [vmem:[%s363 + $0x168] sm:%s355] %v394
              %v396 = vld [vmem:[%s362 + $0x180] sm:%s355]
              %397 = vst [vmem:[%s363 + $0x180] sm:%s355] %v396
              %v398 = vld [vmem:[%s362 + $0x198] sm:%s355]
              %399 = vst [vmem:[%s363 + $0x198] sm:%s355] %v398
            $region63: #{separable_conv2d_bn.2} parent=50 // loop_footer
              %s361 = sadd.s32 1, %s357
            $region64: #{separable_conv2d_bn.2} parent=50 // loop_footer_branch
              %356 = sbr.rel target = $region60
            $region65: #{separable_conv2d_bn.2} parent=50 // loop_exit
              _
          $region51: #{separable_conv2d_bn.2} parent=35 // pred_fallthru
            _
        $region36: #{separable_conv2d_bn.2} parent=31 // pred_fallthru
          _
        // Predicated region
        $region37: #{separable_conv2d_bn.2} parent=31 // pred_check
          %p217 = pneg %p213
        $region38: #{separable_conv2d_bn.2} parent=31 // pred_check_branch
          %219 = sbr.rel (%p217) target = $region40
        $region39: #{separable_conv2d_bn.2} parent=31 // pred_region
          %s220 = sshllo.u32 0, 18
          loop: start=0, step=1, limit=1
          $region41: #{separable_conv2d_bn.2} parent=39 // loop_pre_header
            _
          $region42: #{separable_conv2d_bn.2} parent=39 // loop_header
            %s222 = sphi 0, %s226
            %p223 = scmp.ge.s32.totalorder %s222, 1
            %s227 = sphi %s208, %s208
            %s228 = sphi %s210, %s210
          $region43: #{separable_conv2d_bn.2} parent=39 // loop_header_branch
            %225 = sbr.rel (%p223) target = $region47
          $region44: #{separable_conv2d_bn.2} parent=39 // loop_body
            %v229 = vld [vmem:[%s227] sm:%s220]
            %230 = vst [vmem:[%s228] sm:%s220] %v229
            %v231 = vld [vmem:[%s227 + $0x18] sm:%s220]
            %232 = vst [vmem:[%s228 + $0x18] sm:%s220] %v231
            %v233 = vld [vmem:[%s227 + $0x30] sm:%s220]
            %234 = vst [vmem:[%s228 + $0x30] sm:%s220] %v233
            %v235 = vld [vmem:[%s227 + $0x48] sm:%s220]
            %236 = vst [vmem:[%s228 + $0x48] sm:%s220] %v235
            %v237 = vld [vmem:[%s227 + $0x60] sm:%s220]
            %238 = vst [vmem:[%s228 + $0x60] sm:%s220] %v237
            %v239 = vld [vmem:[%s227 + $0x78] sm:%s220]
            %240 = vst [vmem:[%s228 + $0x78] sm:%s220] %v239
            %v241 = vld [vmem:[%s227 + $0x90] sm:%s220]
            %242 = vst [vmem:[%s228 + $0x90] sm:%s220] %v241
            %v243 = vld [vmem:[%s227 + $0xa8] sm:%s220]
            %244 = vst [vmem:[%s228 + $0xa8] sm:%s220] %v243
            %v245 = vld [vmem:[%s227 + $0xc0] sm:%s220]
            %246 = vst [vmem:[%s228 + $0xc0] sm:%s220] %v245
            %v247 = vld [vmem:[%s227 + $0xd8] sm:%s220]
            %248 = vst [vmem:[%s228 + $0xd8] sm:%s220] %v247
            %v249 = vld [vmem:[%s227 + $0xf0] sm:%s220]
            %250 = vst [vmem:[%s228 + $0xf0] sm:%s220] %v249
            %v251 = vld [vmem:[%s227 + $0x108] sm:%s220]
            %252 = vst [vmem:[%s228 + $0x108] sm:%s220] %v251
            %v253 = vld [vmem:[%s227 + $0x120] sm:%s220]
            %254 = vst [vmem:[%s228 + $0x120] sm:%s220] %v253
            %v255 = vld [vmem:[%s227 + $0x138] sm:%s220]
            %256 = vst [vmem:[%s228 + $0x138] sm:%s220] %v255
            %v257 = vld [vmem:[%s227 + $0x150] sm:%s220]
            %258 = vst [vmem:[%s228 + $0x150] sm:%s220] %v257
            %v259 = vld [vmem:[%s227 + $0x168] sm:%s220]
            %260 = vst [vmem:[%s228 + $0x168] sm:%s220] %v259
            %v261 = vld [vmem:[%s227 + $0x180] sm:%s220]
            %262 = vst [vmem:[%s228 + $0x180] sm:%s220] %v261
            %v263 = vld [vmem:[%s227 + $0x198] sm:%s220]
            %264 = vst [vmem:[%s228 + $0x198] sm:%s220] %v263
          $region45: #{separable_conv2d_bn.2} parent=39 // loop_footer
            %s226 = sadd.s32 1, %s222
          $region46: #{separable_conv2d_bn.2} parent=39 // loop_footer_branch
            %221 = sbr.rel target = $region42
          $region47: #{separable_conv2d_bn.2} parent=39 // loop_exit
            _
        $region40: #{separable_conv2d_bn.2} parent=31 // pred_fallthru
          _
        // Predicated region
        $region66: #{separable_conv2d_bn.2} parent=31 // pred_check
          _
        $region67: #{separable_conv2d_bn.2} parent=31 // pred_check_branch
          %402 = sbr.rel (0) target = $region69
        $region68: #{separable_conv2d_bn.2} parent=31 // pred_region
          %403 = vsyncadd %s211, 5184
        $region69: #{separable_conv2d_bn.2} parent=31 // pred_fallthru
          _
      $region32: #{separable_conv2d_bn.2} parent=27 // pred_fallthru
        _
      %s404 = smul.u32 %s21, 16
      %s405 = smul.u32 %s199, 432
      %s406 = scalar_lea.vmem [#allocation2], %s405
      %s407 = scalar_lea.sflag [#allocation3], %s199
      %s408 = smul.u32 18, 18
      %s409 = smul.u32 %s408, 1
      %s410 = sshll.u32 %s409, 4
      %411 = dma.done %s407, %s410
      %s412 = sadd.s32 %s21, 1
      %p413 = scmp.lt.s32.totalorder %s412, 1
      // Predicated region
      $region70: #{separable_conv2d_bn.2} parent=27 // pred_check
        %p414 = pneg %p413
      $region71: #{separable_conv2d_bn.2} parent=27 // pred_check_branch
        %416 = sbr.rel (%p414) target = $region73
      $region72: #{separable_conv2d_bn.2} parent=27 // pred_region
        %s417 = ssub.s32 1, %s199
        %s418 = smul.u32 %s412, 16
        %s419 = smul.u32 %s418, 24
        %s420 = smul.u32 %s20, 432
        %s421 = sadd.s32 %s419, %s420
        %s422 = scalar_lea.vmem %s0, %s421
        %s423 = smul.u32 %s417, 432
        %s424 = scalar_lea.vmem [#allocation2], %s423
        %s425 = scalar_lea.sflag [#allocation3], %s417
        %p427 = scmp.lt.u32.totalorder 18, 8
        %p428 = pneg %p427
        // Predicated region
        $region74: #{separable_conv2d_bn.2} parent=72 // pred_check
          _
        $region75: #{separable_conv2d_bn.2} parent=72 // pred_check_branch
          %430 = sbr.rel (%p427) target = $region77
        $region76: #{separable_conv2d_bn.2} parent=72 // pred_region
          %s479 = sand.u32 18, 7
          %p480 = scmp.eq.s32.totalorder %s479, 0
          %p481 = pneg %p480
          // Predicated region
          $region89: #{separable_conv2d_bn.2} parent=76 // pred_check
            _
          $region90: #{separable_conv2d_bn.2} parent=76 // pred_check_branch
            %483 = sbr.rel (%p480) target = $region92
          $region91: #{separable_conv2d_bn.2} parent=76 // pred_region
            %s484 = sand.u32 18, 7
            %s485 = ssub.s32 18, %s484
            %s486 = scalar_lea.vmem %s422, %s485
            %s487 = ssub.s32 18, %s484
            %s488 = scalar_lea.vmem %s424, %s487 [#allocation2]
            loop: start=0, step=1, limit=1
            $region93: #{separable_conv2d_bn.2} parent=91 // loop_pre_header
              _
            $region94: #{separable_conv2d_bn.2} parent=91 // loop_header
              %s490 = sphi 0, %s494
              %p491 = scmp.ge.s32.totalorder %s490, 1
              %s495 = sphi %s422, %s422
              %s496 = sphi %s424, %s424
            $region95: #{separable_conv2d_bn.2} parent=91 // loop_header_branch
              %493 = sbr.rel (%p491) target = $region99
            $region96: #{separable_conv2d_bn.2} parent=91 // loop_body
              %v497 = vld [vmem:[%s495] sm:$0xff]
              %498 = vst [vmem:[%s496] sm:$0xff] %v497
              %v499 = vld [vmem:[%s495 + $0x8] sm:$0xff]
              %500 = vst [vmem:[%s496 + $0x8] sm:$0xff] %v499
              %v501 = vld [vmem:[%s495 + $0x18] sm:$0xff]
              %502 = vst [vmem:[%s496 + $0x18] sm:$0xff] %v501
              %v503 = vld [vmem:[%s495 + $0x20] sm:$0xff]
              %504 = vst [vmem:[%s496 + $0x20] sm:$0xff] %v503
              %v505 = vld [vmem:[%s495 + $0x30] sm:$0xff]
              %506 = vst [vmem:[%s496 + $0x30] sm:$0xff] %v505
              %v507 = vld [vmem:[%s495 + $0x38] sm:$0xff]
              %508 = vst [vmem:[%s496 + $0x38] sm:$0xff] %v507
              %v509 = vld [vmem:[%s495 + $0x48] sm:$0xff]
              %510 = vst [vmem:[%s496 + $0x48] sm:$0xff] %v509
              %v511 = vld [vmem:[%s495 + $0x50] sm:$0xff]
              %512 = vst [vmem:[%s496 + $0x50] sm:$0xff] %v511
              %v513 = vld [vmem:[%s495 + $0x60] sm:$0xff]
              %514 = vst [vmem:[%s496 + $0x60] sm:$0xff] %v513
              %v515 = vld [vmem:[%s495 + $0x68] sm:$0xff]
              %516 = vst [vmem:[%s496 + $0x68] sm:$0xff] %v515
              %v517 = vld [vmem:[%s495 + $0x78] sm:$0xff]
              %518 = vst [vmem:[%s496 + $0x78] sm:$0xff] %v517
              %v519 = vld [vmem:[%s495 + $0x80] sm:$0xff]
              %520 = vst [vmem:[%s496 + $0x80] sm:$0xff] %v519
              %v521 = vld [vmem:[%s495 + $0x90] sm:$0xff]
              %522 = vst [vmem:[%s496 + $0x90] sm:$0xff] %v521
              %v523 = vld [vmem:[%s495 + $0x98] sm:$0xff]
              %524 = vst [vmem:[%s496 + $0x98] sm:$0xff] %v523
              %v525 = vld [vmem:[%s495 + $0xa8] sm:$0xff]
              %526 = vst [vmem:[%s496 + $0xa8] sm:$0xff] %v525
              %v527 = vld [vmem:[%s495 + $0xb0] sm:$0xff]
              %528 = vst [vmem:[%s496 + $0xb0] sm:$0xff] %v527
              %v529 = vld [vmem:[%s495 + $0xc0] sm:$0xff]
              %530 = vst [vmem:[%s496 + $0xc0] sm:$0xff] %v529
              %v531 = vld [vmem:[%s495 + $0xc8] sm:$0xff]
              %532 = vst [vmem:[%s496 + $0xc8] sm:$0xff] %v531
              %v533 = vld [vmem:[%s495 + $0xd8] sm:$0xff]
              %534 = vst [vmem:[%s496 + $0xd8] sm:$0xff] %v533
              %v535 = vld [vmem:[%s495 + $0xe0] sm:$0xff]
              %536 = vst [vmem:[%s496 + $0xe0] sm:$0xff] %v535
              %v537 = vld [vmem:[%s495 + $0xf0] sm:$0xff]
              %538 = vst [vmem:[%s496 + $0xf0] sm:$0xff] %v537
              %v539 = vld [vmem:[%s495 + $0xf8] sm:$0xff]
              %540 = vst [vmem:[%s496 + $0xf8] sm:$0xff] %v539
              %v541 = vld [vmem:[%s495 + $0x108] sm:$0xff]
              %542 = vst [vmem:[%s496 + $0x108] sm:$0xff] %v541
              %v543 = vld [vmem:[%s495 + $0x110] sm:$0xff]
              %544 = vst [vmem:[%s496 + $0x110] sm:$0xff] %v543
              %v545 = vld [vmem:[%s495 + $0x120] sm:$0xff]
              %546 = vst [vmem:[%s496 + $0x120] sm:$0xff] %v545
              %v547 = vld [vmem:[%s495 + $0x128] sm:$0xff]
              %548 = vst [vmem:[%s496 + $0x128] sm:$0xff] %v547
              %v549 = vld [vmem:[%s495 + $0x138] sm:$0xff]
              %550 = vst [vmem:[%s496 + $0x138] sm:$0xff] %v549
              %v551 = vld [vmem:[%s495 + $0x140] sm:$0xff]
              %552 = vst [vmem:[%s496 + $0x140] sm:$0xff] %v551
              %v553 = vld [vmem:[%s495 + $0x150] sm:$0xff]
              %554 = vst [vmem:[%s496 + $0x150] sm:$0xff] %v553
              %v555 = vld [vmem:[%s495 + $0x158] sm:$0xff]
              %556 = vst [vmem:[%s496 + $0x158] sm:$0xff] %v555
              %v557 = vld [vmem:[%s495 + $0x168] sm:$0xff]
              %558 = vst [vmem:[%s496 + $0x168] sm:$0xff] %v557
              %v559 = vld [vmem:[%s495 + $0x170] sm:$0xff]
              %560 = vst [vmem:[%s496 + $0x170] sm:$0xff] %v559
              %v561 = vld [vmem:[%s495 + $0x180] sm:$0xff]
              %562 = vst [vmem:[%s496 + $0x180] sm:$0xff] %v561
              %v563 = vld [vmem:[%s495 + $0x188] sm:$0xff]
              %564 = vst [vmem:[%s496 + $0x188] sm:$0xff] %v563
              %v565 = vld [vmem:[%s495 + $0x198] sm:$0xff]
              %566 = vst [vmem:[%s496 + $0x198] sm:$0xff] %v565
              %v567 = vld [vmem:[%s495 + $0x1a0] sm:$0xff]
              %568 = vst [vmem:[%s496 + $0x1a0] sm:$0xff] %v567
            $region97: #{separable_conv2d_bn.2} parent=91 // loop_footer
              %s494 = sadd.s32 1, %s490
            $region98: #{separable_conv2d_bn.2} parent=91 // loop_footer_branch
              %489 = sbr.rel target = $region94
            $region99: #{separable_conv2d_bn.2} parent=91 // loop_exit
              _
            %s569 = sshllo.u32 0, %s484
            loop: start=0, step=1, limit=1
            $region100: #{separable_conv2d_bn.2} parent=91 // loop_pre_header
              _
            $region101: #{separable_conv2d_bn.2} parent=91 // loop_header
              %s571 = sphi 0, %s575
              %p572 = scmp.ge.s32.totalorder %s571, 1
              %s576 = sphi %s486, %s486
              %s577 = sphi %s488, %s488
            $region102: #{separable_conv2d_bn.2} parent=91 // loop_header_branch
              %574 = sbr.rel (%p572) target = $region106
            $region103: #{separable_conv2d_bn.2} parent=91 // loop_body
              %v578 = vld [vmem:[%s576] sm:%s569]
              %579 = vst [vmem:[%s577] sm:%s569] %v578
              %v580 = vld [vmem:[%s576 + $0x18] sm:%s569]
              %581 = vst [vmem:[%s577 + $0x18] sm:%s569] %v580
              %v582 = vld [vmem:[%s576 + $0x30] sm:%s569]
              %583 = vst [vmem:[%s577 + $0x30] sm:%s569] %v582
              %v584 = vld [vmem:[%s576 + $0x48] sm:%s569]
              %585 = vst [vmem:[%s577 + $0x48] sm:%s569] %v584
              %v586 = vld [vmem:[%s576 + $0x60] sm:%s569]
              %587 = vst [vmem:[%s577 + $0x60] sm:%s569] %v586
              %v588 = vld [vmem:[%s576 + $0x78] sm:%s569]
              %589 = vst [vmem:[%s577 + $0x78] sm:%s569] %v588
              %v590 = vld [vmem:[%s576 + $0x90] sm:%s569]
              %591 = vst [vmem:[%s577 + $0x90] sm:%s569] %v590
              %v592 = vld [vmem:[%s576 + $0xa8] sm:%s569]
              %593 = vst [vmem:[%s577 + $0xa8] sm:%s569] %v592
              %v594 = vld [vmem:[%s576 + $0xc0] sm:%s569]
              %595 = vst [vmem:[%s577 + $0xc0] sm:%s569] %v594
              %v596 = vld [vmem:[%s576 + $0xd8] sm:%s569]
              %597 = vst [vmem:[%s577 + $0xd8] sm:%s569] %v596
              %v598 = vld [vmem:[%s576 + $0xf0] sm:%s569]
              %599 = vst [vmem:[%s577 + $0xf0] sm:%s569] %v598
              %v600 = vld [vmem:[%s576 + $0x108] sm:%s569]
              %601 = vst [vmem:[%s577 + $0x108] sm:%s569] %v600
              %v602 = vld [vmem:[%s576 + $0x120] sm:%s569]
              %603 = vst [vmem:[%s577 + $0x120] sm:%s569] %v602
              %v604 = vld [vmem:[%s576 + $0x138] sm:%s569]
              %605 = vst [vmem:[%s577 + $0x138] sm:%s569] %v604
              %v606 = vld [vmem:[%s576 + $0x150] sm:%s569]
              %607 = vst [vmem:[%s577 + $0x150] sm:%s569] %v606
              %v608 = vld [vmem:[%s576 + $0x168] sm:%s569]
              %609 = vst [vmem:[%s577 + $0x168] sm:%s569] %v608
              %v610 = vld [vmem:[%s576 + $0x180] sm:%s569]
              %611 = vst [vmem:[%s577 + $0x180] sm:%s569] %v610
              %v612 = vld [vmem:[%s576 + $0x198] sm:%s569]
              %613 = vst [vmem:[%s577 + $0x198] sm:%s569] %v612
            $region104: #{separable_conv2d_bn.2} parent=91 // loop_footer
              %s575 = sadd.s32 1, %s571
            $region105: #{separable_conv2d_bn.2} parent=91 // loop_footer_branch
              %570 = sbr.rel target = $region101
            $region106: #{separable_conv2d_bn.2} parent=91 // loop_exit
              _
          $region92: #{separable_conv2d_bn.2} parent=76 // pred_fallthru
            _
        $region77: #{separable_conv2d_bn.2} parent=72 // pred_fallthru
          _
        // Predicated region
        $region78: #{separable_conv2d_bn.2} parent=72 // pred_check
          %p431 = pneg %p427
        $region79: #{separable_conv2d_bn.2} parent=72 // pred_check_branch
          %433 = sbr.rel (%p431) target = $region81
        $region80: #{separable_conv2d_bn.2} parent=72 // pred_region
          %s434 = sshllo.u32 0, 18
          loop: start=0, step=1, limit=1
          $region82: #{separable_conv2d_bn.2} parent=80 // loop_pre_header
            _
          $region83: #{separable_conv2d_bn.2} parent=80 // loop_header
            %s436 = sphi 0, %s440
            %p437 = scmp.ge.s32.totalorder %s436, 1
            %s441 = sphi %s422, %s422
            %s442 = sphi %s424, %s424
          $region84: #{separable_conv2d_bn.2} parent=80 // loop_header_branch
            %439 = sbr.rel (%p437) target = $region88
          $region85: #{separable_conv2d_bn.2} parent=80 // loop_body
            %v443 = vld [vmem:[%s441] sm:%s434]
            %444 = vst [vmem:[%s442] sm:%s434] %v443
            %v445 = vld [vmem:[%s441 + $0x18] sm:%s434]
            %446 = vst [vmem:[%s442 + $0x18] sm:%s434] %v445
            %v447 = vld [vmem:[%s441 + $0x30] sm:%s434]
            %448 = vst [vmem:[%s442 + $0x30] sm:%s434] %v447
            %v449 = vld [vmem:[%s441 + $0x48] sm:%s434]
            %450 = vst [vmem:[%s442 + $0x48] sm:%s434] %v449
            %v451 = vld [vmem:[%s441 + $0x60] sm:%s434]
            %452 = vst [vmem:[%s442 + $0x60] sm:%s434] %v451
            %v453 = vld [vmem:[%s441 + $0x78] sm:%s434]
            %454 = vst [vmem:[%s442 + $0x78] sm:%s434] %v453
            %v455 = vld [vmem:[%s441 + $0x90] sm:%s434]
            %456 = vst [vmem:[%s442 + $0x90] sm:%s434] %v455
            %v457 = vld [vmem:[%s441 + $0xa8] sm:%s434]
            %458 = vst [vmem:[%s442 + $0xa8] sm:%s434] %v457
            %v459 = vld [vmem:[%s441 + $0xc0] sm:%s434]
            %460 = vst [vmem:[%s442 + $0xc0] sm:%s434] %v459
            %v461 = vld [vmem:[%s441 + $0xd8] sm:%s434]
            %462 = vst [vmem:[%s442 + $0xd8] sm:%s434] %v461
            %v463 = vld [vmem:[%s441 + $0xf0] sm:%s434]
            %464 = vst [vmem:[%s442 + $0xf0] sm:%s434] %v463
            %v465 = vld [vmem:[%s441 + $0x108] sm:%s434]
            %466 = vst [vmem:[%s442 + $0x108] sm:%s434] %v465
            %v467 = vld [vmem:[%s441 + $0x120] sm:%s434]
            %468 = vst [vmem:[%s442 + $0x120] sm:%s434] %v467
            %v469 = vld [vmem:[%s441 + $0x138] sm:%s434]
            %470 = vst [vmem:[%s442 + $0x138] sm:%s434] %v469
            %v471 = vld [vmem:[%s441 + $0x150] sm:%s434]
            %472 = vst [vmem:[%s442 + $0x150] sm:%s434] %v471
            %v473 = vld [vmem:[%s441 + $0x168] sm:%s434]
            %474 = vst [vmem:[%s442 + $0x168] sm:%s434] %v473
            %v475 = vld [vmem:[%s441 + $0x180] sm:%s434]
            %476 = vst [vmem:[%s442 + $0x180] sm:%s434] %v475
            %v477 = vld [vmem:[%s441 + $0x198] sm:%s434]
            %478 = vst [vmem:[%s442 + $0x198] sm:%s434] %v477
          $region86: #{separable_conv2d_bn.2} parent=80 // loop_footer
            %s440 = sadd.s32 1, %s436
          $region87: #{separable_conv2d_bn.2} parent=80 // loop_footer_branch
            %435 = sbr.rel target = $region83
          $region88: #{separable_conv2d_bn.2} parent=80 // loop_exit
            _
        $region81: #{separable_conv2d_bn.2} parent=72 // pred_fallthru
          _
        // Predicated region
        $region107: #{separable_conv2d_bn.2} parent=72 // pred_check
          _
        $region108: #{separable_conv2d_bn.2} parent=72 // pred_check_branch
          %616 = sbr.rel (0) target = $region110
        $region109: #{separable_conv2d_bn.2} parent=72 // pred_region
          %617 = vsyncadd %s425, 5184
        $region110: #{separable_conv2d_bn.2} parent=72 // pred_fallthru
          _
      $region73: #{separable_conv2d_bn.2} parent=27 // pred_fallthru
        _
      %v618 = vld [vmem:[%s1] sm:$0xff]
      %v619 = vld [vmem:[%s1 + $0x8] sm:$0x1]
      %v620 = vld [vmem:[%s406] sm:$0xff]
      %v621 = vld [vmem:[%s406 + $0x8] sm:$0xff]
      %v622 = vld [vmem:[%s406 + $0x18] sm:$0xff]
      %v623 = vld [vmem:[%s406 + $0x20] sm:$0xff]
      %v624 = vld [vmem:[%s406 + $0x30] sm:$0xff]
      %v625 = vld [vmem:[%s406 + $0x38] sm:$0xff]
      %v626 = vld [vmem:[%s406 + $0x48] sm:$0xff]
      %v627 = vld [vmem:[%s406 + $0x50] sm:$0xff]
      %v628 = vld [vmem:[%s406 + $0x60] sm:$0xff]
      %v629 = vld [vmem:[%s406 + $0x68] sm:$0xff]
      %v630 = vld [vmem:[%s406 + $0x78] sm:$0xff]
      %v631 = vld [vmem:[%s406 + $0x80] sm:$0xff]
      %v632 = vld [vmem:[%s406 + $0x90] sm:$0xff]
      %v633 = vld [vmem:[%s406 + $0x98] sm:$0xff]
      %v634 = vld [vmem:[%s406 + $0xa8] sm:$0xff]
      %v635 = vld [vmem:[%s406 + $0xb0] sm:$0xff]
      %v636 = vld [vmem:[%s406 + $0xc0] sm:$0xff]
      %v637 = vld [vmem:[%s406 + $0xc8] sm:$0xff]
      %v638 = vld [vmem:[%s406 + $0xd8] sm:$0xff]
      %v639 = vld [vmem:[%s406 + $0xe0] sm:$0xff]
      %v640 = vld [vmem:[%s406 + $0xf0] sm:$0xff]
      %v641 = vld [vmem:[%s406 + $0xf8] sm:$0xff]
      %v642 = vld [vmem:[%s406 + $0x108] sm:$0xff]
      %v643 = vld [vmem:[%s406 + $0x110] sm:$0xff]
      %v644 = vld [vmem:[%s406 + $0x120] sm:$0xff]
      %v645 = vld [vmem:[%s406 + $0x128] sm:$0xff]
      %v646 = vld [vmem:[%s406 + $0x138] sm:$0xff]
      %v647 = vld [vmem:[%s406 + $0x140] sm:$0xff]
      %v648 = vld [vmem:[%s406 + $0x150] sm:$0xff]
      %v649 = vld [vmem:[%s406 + $0x158] sm:$0xff]
      %v650 = vld [vmem:[%s406 + $0x168] sm:$0xff]
      %v651 = vld [vmem:[%s406 + $0x170] sm:$0xff]
      %v652 = vlaneseq
      %v653 = vshrl.u32 %v652, 7
      %v654 = vsub.s32 0, %v653
      %v655 = vrot.slane %v618, %v654
      %v656 = vmul.f32 %v620, %v655
      %v657 = vmul.f32 %v621, %v655
      %v658 = vmul.f32 %v622, %v655
      %v659 = vmul.f32 %v623, %v655
      %v660 = vmul.f32 %v624, %v655
      %v661 = vmul.f32 %v625, %v655
      %v662 = vmul.f32 %v626, %v655
      %v663 = vmul.f32 %v627, %v655
      %v664 = vmul.f32 %v628, %v655
      %v665 = vmul.f32 %v629, %v655
      %v666 = vmul.f32 %v630, %v655
      %v667 = vmul.f32 %v631, %v655
      %v668 = vmul.f32 %v632, %v655
      %v669 = vmul.f32 %v633, %v655
      %v670 = vmul.f32 %v634, %v655
      %v671 = vmul.f32 %v635, %v655
      %v672 = vmul.f32 %v636, %v655
      %v673 = vmul.f32 %v637, %v655
      %v674 = vmul.f32 %v638, %v655
      %v675 = vmul.f32 %v639, %v655
      %v676 = vmul.f32 %v640, %v655
      %v677 = vmul.f32 %v641, %v655
      %v678 = vmul.f32 %v642, %v655
      %v679 = vmul.f32 %v643, %v655
      %v680 = vmul.f32 %v644, %v655
      %v681 = vmul.f32 %v645, %v655
      %v682 = vmul.f32 %v646, %v655
      %v683 = vmul.f32 %v647, %v655
      %v684 = vmul.f32 %v648, %v655
      %v685 = vmul.f32 %v649, %v655
      %v686 = vmul.f32 %v650, %v655
      %v687 = vmul.f32 %v651, %v655
      %v688 = vadd.f32 %v656, 0.0
      %v689 = vadd.f32 %v657, 0.0
      %v690 = vadd.f32 %v658, 0.0
      %v691 = vadd.f32 %v659, 0.0
      %v692 = vadd.f32 %v660, 0.0
      %v693 = vadd.f32 %v661, 0.0
      %v694 = vadd.f32 %v662, 0.0
      %v695 = vadd.f32 %v663, 0.0
      %v696 = vadd.f32 %v664, 0.0
      %v697 = vadd.f32 %v665, 0.0
      %v698 = vadd.f32 %v666, 0.0
      %v699 = vadd.f32 %v667, 0.0
      %v700 = vadd.f32 %v668, 0.0
      %v701 = vadd.f32 %v669, 0.0
      %v702 = vadd.f32 %v670, 0.0
      %v703 = vadd.f32 %v671, 0.0
      %v704 = vadd.f32 %v672, 0.0
      %v705 = vadd.f32 %v673, 0.0
      %v706 = vadd.f32 %v674, 0.0
      %v707 = vadd.f32 %v675, 0.0
      %v708 = vadd.f32 %v676, 0.0
      %v709 = vadd.f32 %v677, 0.0
      %v710 = vadd.f32 %v678, 0.0
      %v711 = vadd.f32 %v679, 0.0
      %v712 = vadd.f32 %v680, 0.0
      %v713 = vadd.f32 %v681, 0.0
      %v714 = vadd.f32 %v682, 0.0
      %v715 = vadd.f32 %v683, 0.0
      %v716 = vadd.f32 %v684, 0.0
      %v717 = vadd.f32 %v685, 0.0
      %v718 = vadd.f32 %v686, 0.0
      %v719 = vadd.f32 %v687, 0.0
      %v720 = vld [vmem:[%s406 + $0x1] sm:$0xff]
      %v721 = vld [vmem:[%s406 + $0x9] sm:$0xff]
      %v722 = vld [vmem:[%s406 + $0x19] sm:$0xff]
      %v723 = vld [vmem:[%s406 + $0x21] sm:$0xff]
      %v724 = vld [vmem:[%s406 + $0x31] sm:$0xff]
      %v725 = vld [vmem:[%s406 + $0x39] sm:$0xff]
      %v726 = vld [vmem:[%s406 + $0x49] sm:$0xff]
      %v727 = vld [vmem:[%s406 + $0x51] sm:$0xff]
      %v728 = vld [vmem:[%s406 + $0x61] sm:$0xff]
      %v729 = vld [vmem:[%s406 + $0x69] sm:$0xff]
      %v730 = vld [vmem:[%s406 + $0x79] sm:$0xff]
      %v731 = vld [vmem:[%s406 + $0x81] sm:$0xff]
      %v732 = vld [vmem:[%s406 + $0x91] sm:$0xff]
      %v733 = vld [vmem:[%s406 + $0x99] sm:$0xff]
      %v734 = vld [vmem:[%s406 + $0xa9] sm:$0xff]
      %v735 = vld [vmem:[%s406 + $0xb1] sm:$0xff]
      %v736 = vld [vmem:[%s406 + $0xc1] sm:$0xff]
      %v737 = vld [vmem:[%s406 + $0xc9] sm:$0xff]
      %v738 = vld [vmem:[%s406 + $0xd9] sm:$0xff]
      %v739 = vld [vmem:[%s406 + $0xe1] sm:$0xff]
      %v740 = vld [vmem:[%s406 + $0xf1] sm:$0xff]
      %v741 = vld [vmem:[%s406 + $0xf9] sm:$0xff]
      %v742 = vld [vmem:[%s406 + $0x109] sm:$0xff]
      %v743 = vld [vmem:[%s406 + $0x111] sm:$0xff]
      %v744 = vld [vmem:[%s406 + $0x121] sm:$0xff]
      %v745 = vld [vmem:[%s406 + $0x129] sm:$0xff]
      %v746 = vld [vmem:[%s406 + $0x139] sm:$0xff]
      %v747 = vld [vmem:[%s406 + $0x141] sm:$0xff]
      %v748 = vld [vmem:[%s406 + $0x151] sm:$0xff]
      %v749 = vld [vmem:[%s406 + $0x159] sm:$0xff]
      %v750 = vld [vmem:[%s406 + $0x169] sm:$0xff]
      %v751 = vld [vmem:[%s406 + $0x171] sm:$0xff]
      %v752 = vlaneseq
      %v753 = vshrl.u32 %v752, 7
      %v754 = vsub.s32 1, %v753
      %v755 = vrot.slane %v618, %v754
      %v756 = vmul.f32 %v720, %v755
      %v757 = vmul.f32 %v721, %v755
      %v758 = vmul.f32 %v722, %v755
      %v759 = vmul.f32 %v723, %v755
      %v760 = vmul.f32 %v724, %v755
      %v761 = vmul.f32 %v725, %v755
      %v762 = vmul.f32 %v726, %v755
      %v763 = vmul.f32 %v727, %v755
      %v764 = vmul.f32 %v728, %v755
      %v765 = vmul.f32 %v729, %v755
      %v766 = vmul.f32 %v730, %v755
      %v767 = vmul.f32 %v731, %v755
      %v768 = vmul.f32 %v732, %v755
      %v769 = vmul.f32 %v733, %v755
      %v770 = vmul.f32 %v734, %v755
      %v771 = vmul.f32 %v735, %v755
      %v772 = vmul.f32 %v736, %v755
      %v773 = vmul.f32 %v737, %v755
      %v774 = vmul.f32 %v738, %v755
      %v775 = vmul.f32 %v739, %v755
      %v776 = vmul.f32 %v740, %v755
      %v777 = vmul.f32 %v741, %v755
      %v778 = vmul.f32 %v742, %v755
      %v779 = vmul.f32 %v743, %v755
      %v780 = vmul.f32 %v744, %v755
      %v781 = vmul.f32 %v745, %v755
      %v782 = vmul.f32 %v746, %v755
      %v783 = vmul.f32 %v747, %v755
      %v784 = vmul.f32 %v748, %v755
      %v785 = vmul.f32 %v749, %v755
      %v786 = vmul.f32 %v750, %v755
      %v787 = vmul.f32 %v751, %v755
      %v788 = vadd.f32 %v688, %v756
      %v789 = vadd.f32 %v689, %v757
      %v790 = vadd.f32 %v690, %v758
      %v791 = vadd.f32 %v691, %v759
      %v792 = vadd.f32 %v692, %v760
      %v793 = vadd.f32 %v693, %v761
      %v794 = vadd.f32 %v694, %v762
      %v795 = vadd.f32 %v695, %v763
      %v796 = vadd.f32 %v696, %v764
      %v797 = vadd.f32 %v697, %v765
      %v798 = vadd.f32 %v698, %v766
      %v799 = vadd.f32 %v699, %v767
      %v800 = vadd.f32 %v700, %v768
      %v801 = vadd.f32 %v701, %v769
      %v802 = vadd.f32 %v702, %v770
      %v803 = vadd.f32 %v703, %v771
      %v804 = vadd.f32 %v704, %v772
      %v805 = vadd.f32 %v705, %v773
      %v806 = vadd.f32 %v706, %v774
      %v807 = vadd.f32 %v707, %v775
      %v808 = vadd.f32 %v708, %v776
      %v809 = vadd.f32 %v709, %v777
      %v810 = vadd.f32 %v710, %v778
      %v811 = vadd.f32 %v711, %v779
      %v812 = vadd.f32 %v712, %v780
      %v813 = vadd.f32 %v713, %v781
      %v814 = vadd.f32 %v714, %v782
      %v815 = vadd.f32 %v715, %v783
      %v816 = vadd.f32 %v716, %v784
      %v817 = vadd.f32 %v717, %v785
      %v818 = vadd.f32 %v718, %v786
      %v819 = vadd.f32 %v719, %v787
      %v820 = vld [vmem:[%s406 + $0x2] sm:$0xff]
      %v821 = vld [vmem:[%s406 + $0xa] sm:$0xff]
      %v822 = vld [vmem:[%s406 + $0x1a] sm:$0xff]
      %v823 = vld [vmem:[%s406 + $0x22] sm:$0xff]
      %v824 = vld [vmem:[%s406 + $0x32] sm:$0xff]
      %v825 = vld [vmem:[%s406 + $0x3a] sm:$0xff]
      %v826 = vld [vmem:[%s406 + $0x4a] sm:$0xff]
      %v827 = vld [vmem:[%s406 + $0x52] sm:$0xff]
      %v828 = vld [vmem:[%s406 + $0x62] sm:$0xff]
      %v829 = vld [vmem:[%s406 + $0x6a] sm:$0xff]
      %v830 = vld [vmem:[%s406 + $0x7a] sm:$0xff]
      %v831 = vld [vmem:[%s406 + $0x82] sm:$0xff]
      %v832 = vld [vmem:[%s406 + $0x92] sm:$0xff]
      %v833 = vld [vmem:[%s406 + $0x9a] sm:$0xff]
      %v834 = vld [vmem:[%s406 + $0xaa] sm:$0xff]
      %v835 = vld [vmem:[%s406 + $0xb2] sm:$0xff]
      %v836 = vld [vmem:[%s406 + $0xc2] sm:$0xff]
      %v837 = vld [vmem:[%s406 + $0xca] sm:$0xff]
      %v838 = vld [vmem:[%s406 + $0xda] sm:$0xff]
      %v839 = vld [vmem:[%s406 + $0xe2] sm:$0xff]
      %v840 = vld [vmem:[%s406 + $0xf2] sm:$0xff]
      %v841 = vld [vmem:[%s406 + $0xfa] sm:$0xff]
      %v842 = vld [vmem:[%s406 + $0x10a] sm:$0xff]
      %v843 = vld [vmem:[%s406 + $0x112] sm:$0xff]
      %v844 = vld [vmem:[%s406 + $0x122] sm:$0xff]
      %v845 = vld [vmem:[%s406 + $0x12a] sm:$0xff]
      %v846 = vld [vmem:[%s406 + $0x13a] sm:$0xff]
      %v847 = vld [vmem:[%s406 + $0x142] sm:$0xff]
      %v848 = vld [vmem:[%s406 + $0x152] sm:$0xff]
      %v849 = vld [vmem:[%s406 + $0x15a] sm:$0xff]
      %v850 = vld [vmem:[%s406 + $0x16a] sm:$0xff]
      %v851 = vld [vmem:[%s406 + $0x172] sm:$0xff]
      %v852 = vlaneseq
      %v853 = vshrl.u32 %v852, 7
      %v854 = vsub.s32 2, %v853
      %v855 = vrot.slane %v618, %v854
      %v856 = vmul.f32 %v820, %v855
      %v857 = vmul.f32 %v821, %v855
      %v858 = vmul.f32 %v822, %v855
      %v859 = vmul.f32 %v823, %v855
      %v860 = vmul.f32 %v824, %v855
      %v861 = vmul.f32 %v825, %v855
      %v862 = vmul.f32 %v826, %v855
      %v863 = vmul.f32 %v827, %v855
      %v864 = vmul.f32 %v828, %v855
      %v865 = vmul.f32 %v829, %v855
      %v866 = vmul.f32 %v830, %v855
      %v867 = vmul.f32 %v831, %v855
      %v868 = vmul.f32 %v832, %v855
      %v869 = vmul.f32 %v833, %v855
      %v870 = vmul.f32 %v834, %v855
      %v871 = vmul.f32 %v835, %v855
      %v872 = vmul.f32 %v836, %v855
      %v873 = vmul.f32 %v837, %v855
      %v874 = vmul.f32 %v838, %v855
      %v875 = vmul.f32 %v839, %v855
      %v876 = vmul.f32 %v840, %v855
      %v877 = vmul.f32 %v841, %v855
      %v878 = vmul.f32 %v842, %v855
      %v879 = vmul.f32 %v843, %v855
      %v880 = vmul.f32 %v844, %v855
      %v881 = vmul.f32 %v845, %v855
      %v882 = vmul.f32 %v846, %v855
      %v883 = vmul.f32 %v847, %v855
      %v884 = vmul.f32 %v848, %v855
      %v885 = vmul.f32 %v849, %v855
      %v886 = vmul.f32 %v850, %v855
      %v887 = vmul.f32 %v851, %v855
      %v888 = vadd.f32 %v788, %v856
      %v889 = vadd.f32 %v789, %v857
      %v890 = vadd.f32 %v790, %v858
      %v891 = vadd.f32 %v791, %v859
      %v892 = vadd.f32 %v792, %v860
      %v893 = vadd.f32 %v793, %v861
      %v894 = vadd.f32 %v794, %v862
      %v895 = vadd.f32 %v795, %v863
      %v896 = vadd.f32 %v796, %v864
      %v897 = vadd.f32 %v797, %v865
      %v898 = vadd.f32 %v798, %v866
      %v899 = vadd.f32 %v799, %v867
      %v900 = vadd.f32 %v800, %v868
      %v901 = vadd.f32 %v801, %v869
      %v902 = vadd.f32 %v802, %v870
      %v903 = vadd.f32 %v803, %v871
      %v904 = vadd.f32 %v804, %v872
      %v905 = vadd.f32 %v805, %v873
      %v906 = vadd.f32 %v806, %v874
      %v907 = vadd.f32 %v807, %v875
      %v908 = vadd.f32 %v808, %v876
      %v909 = vadd.f32 %v809, %v877
      %v910 = vadd.f32 %v810, %v878
      %v911 = vadd.f32 %v811, %v879
      %v912 = vadd.f32 %v812, %v880
      %v913 = vadd.f32 %v813, %v881
      %v914 = vadd.f32 %v814, %v882
      %v915 = vadd.f32 %v815, %v883
      %v916 = vadd.f32 %v816, %v884
      %v917 = vadd.f32 %v817, %v885
      %v918 = vadd.f32 %v818, %v886
      %v919 = vadd.f32 %v819, %v887
      %s920 = scalar_lea.vmem %s406, 24 [#allocation2]
      %v921 = vld [vmem:[%s920] sm:$0xff]
      %v922 = vld [vmem:[%s920 + $0x8] sm:$0xff]
      %v923 = vld [vmem:[%s920 + $0x18] sm:$0xff]
      %v924 = vld [vmem:[%s920 + $0x20] sm:$0xff]
      %v925 = vld [vmem:[%s920 + $0x30] sm:$0xff]
      %v926 = vld [vmem:[%s920 + $0x38] sm:$0xff]
      %v927 = vld [vmem:[%s920 + $0x48] sm:$0xff]
      %v928 = vld [vmem:[%s920 + $0x50] sm:$0xff]
      %v929 = vld [vmem:[%s920 + $0x60] sm:$0xff]
      %v930 = vld [vmem:[%s920 + $0x68] sm:$0xff]
      %v931 = vld [vmem:[%s920 + $0x78] sm:$0xff]
      %v932 = vld [vmem:[%s920 + $0x80] sm:$0xff]
      %v933 = vld [vmem:[%s920 + $0x90] sm:$0xff]
      %v934 = vld [vmem:[%s920 + $0x98] sm:$0xff]
      %v935 = vld [vmem:[%s920 + $0xa8] sm:$0xff]
      %v936 = vld [vmem:[%s920 + $0xb0] sm:$0xff]
      %v937 = vld [vmem:[%s920 + $0xc0] sm:$0xff]
      %v938 = vld [vmem:[%s920 + $0xc8] sm:$0xff]
      %v939 = vld [vmem:[%s920 + $0xd8] sm:$0xff]
      %v940 = vld [vmem:[%s920 + $0xe0] sm:$0xff]
      %v941 = vld [vmem:[%s920 + $0xf0] sm:$0xff]
      %v942 = vld [vmem:[%s920 + $0xf8] sm:$0xff]
      %v943 = vld [vmem:[%s920 + $0x108] sm:$0xff]
      %v944 = vld [vmem:[%s920 + $0x110] sm:$0xff]
      %v945 = vld [vmem:[%s920 + $0x120] sm:$0xff]
      %v946 = vld [vmem:[%s920 + $0x128] sm:$0xff]
      %v947 = vld [vmem:[%s920 + $0x138] sm:$0xff]
      %v948 = vld [vmem:[%s920 + $0x140] sm:$0xff]
      %v949 = vld [vmem:[%s920 + $0x150] sm:$0xff]
      %v950 = vld [vmem:[%s920 + $0x158] sm:$0xff]
      %v951 = vld [vmem:[%s920 + $0x168] sm:$0xff]
      %v952 = vld [vmem:[%s920 + $0x170] sm:$0xff]
      %v953 = vlaneseq
      %v954 = vshrl.u32 %v953, 7
      %v955 = vsub.s32 3, %v954
      %v956 = vrot.slane %v618, %v955
      %v957 = vmul.f32 %v921, %v956
      %v958 = vmul.f32 %v922, %v956
      %v959 = vmul.f32 %v923, %v956
      %v960 = vmul.f32 %v924, %v956
      %v961 = vmul.f32 %v925, %v956
      %v962 = vmul.f32 %v926, %v956
      %v963 = vmul.f32 %v927, %v956
      %v964 = vmul.f32 %v928, %v956
      %v965 = vmul.f32 %v929, %v956
      %v966 = vmul.f32 %v930, %v956
      %v967 = vmul.f32 %v931, %v956
      %v968 = vmul.f32 %v932, %v956
      %v969 = vmul.f32 %v933, %v956
      %v970 = vmul.f32 %v934, %v956
      %v971 = vmul.f32 %v935, %v956
      %v972 = vmul.f32 %v936, %v956
      %v973 = vmul.f32 %v937, %v956
      %v974 = vmul.f32 %v938, %v956
      %v975 = vmul.f32 %v939, %v956
      %v976 = vmul.f32 %v940, %v956
      %v977 = vmul.f32 %v941, %v956
      %v978 = vmul.f32 %v942, %v956
      %v979 = vmul.f32 %v943, %v956
      %v980 = vmul.f32 %v944, %v956
      %v981 = vmul.f32 %v945, %v956
      %v982 = vmul.f32 %v946, %v956
      %v983 = vmul.f32 %v947, %v956
      %v984 = vmul.f32 %v948, %v956
      %v985 = vmul.f32 %v949, %v956
      %v986 = vmul.f32 %v950, %v956
      %v987 = vmul.f32 %v951, %v956
      %v988 = vmul.f32 %v952, %v956
      %v989 = vadd.f32 %v888, %v957
      %v990 = vadd.f32 %v889, %v958
      %v991 = vadd.f32 %v890, %v959
      %v992 = vadd.f32 %v891, %v960
      %v993 = vadd.f32 %v892, %v961
      %v994 = vadd.f32 %v893, %v962
      %v995 = vadd.f32 %v894, %v963
      %v996 = vadd.f32 %v895, %v964
      %v997 = vadd.f32 %v896, %v965
      %v998 = vadd.f32 %v897, %v966
      %v999 = vadd.f32 %v898, %v967
      %v1000 = vadd.f32 %v899, %v968
      %v1001 = vadd.f32 %v900, %v969
      %v1002 = vadd.f32 %v901, %v970
      %v1003 = vadd.f32 %v902, %v971
      %v1004 = vadd.f32 %v903, %v972
      %v1005 = vadd.f32 %v904, %v973
      %v1006 = vadd.f32 %v905, %v974
      %v1007 = vadd.f32 %v906, %v975
      %v1008 = vadd.f32 %v907, %v976
      %v1009 = vadd.f32 %v908, %v977
      %v1010 = vadd.f32 %v909, %v978
      %v1011 = vadd.f32 %v910, %v979
      %v1012 = vadd.f32 %v911, %v980
      %v1013 = vadd.f32 %v912, %v981
      %v1014 = vadd.f32 %v913, %v982
      %v1015 = vadd.f32 %v914, %v983
      %v1016 = vadd.f32 %v915, %v984
      %v1017 = vadd.f32 %v916, %v985
      %v1018 = vadd.f32 %v917, %v986
      %v1019 = vadd.f32 %v918, %v987
      %v1020 = vadd.f32 %v919, %v988
      %v1021 = vld [vmem:[%s920 + $0x1] sm:$0xff]
      %v1022 = vld [vmem:[%s920 + $0x9] sm:$0xff]
      %v1023 = vld [vmem:[%s920 + $0x19] sm:$0xff]
      %v1024 = vld [vmem:[%s920 + $0x21] sm:$0xff]
      %v1025 = vld [vmem:[%s920 + $0x31] sm:$0xff]
      %v1026 = vld [vmem:[%s920 + $0x39] sm:$0xff]
      %v1027 = vld [vmem:[%s920 + $0x49] sm:$0xff]
      %v1028 = vld [vmem:[%s920 + $0x51] sm:$0xff]
      %v1029 = vld [vmem:[%s920 + $0x61] sm:$0xff]
      %v1030 = vld [vmem:[%s920 + $0x69] sm:$0xff]
      %v1031 = vld [vmem:[%s920 + $0x79] sm:$0xff]
      %v1032 = vld [vmem:[%s920 + $0x81] sm:$0xff]
      %v1033 = vld [vmem:[%s920 + $0x91] sm:$0xff]
      %v1034 = vld [vmem:[%s920 + $0x99] sm:$0xff]
      %v1035 = vld [vmem:[%s920 + $0xa9] sm:$0xff]
      %v1036 = vld [vmem:[%s920 + $0xb1] sm:$0xff]
      %v1037 = vld [vmem:[%s920 + $0xc1] sm:$0xff]
      %v1038 = vld [vmem:[%s920 + $0xc9] sm:$0xff]
      %v1039 = vld [vmem:[%s920 + $0xd9] sm:$0xff]
      %v1040 = vld [vmem:[%s920 + $0xe1] sm:$0xff]
      %v1041 = vld [vmem:[%s920 + $0xf1] sm:$0xff]
      %v1042 = vld [vmem:[%s920 + $0xf9] sm:$0xff]
      %v1043 = vld [vmem:[%s920 + $0x109] sm:$0xff]
      %v1044 = vld [vmem:[%s920 + $0x111] sm:$0xff]
      %v1045 = vld [vmem:[%s920 + $0x121] sm:$0xff]
      %v1046 = vld [vmem:[%s920 + $0x129] sm:$0xff]
      %v1047 = vld [vmem:[%s920 + $0x139] sm:$0xff]
      %v1048 = vld [vmem:[%s920 + $0x141] sm:$0xff]
      %v1049 = vld [vmem:[%s920 + $0x151] sm:$0xff]
      %v1050 = vld [vmem:[%s920 + $0x159] sm:$0xff]
      %v1051 = vld [vmem:[%s920 + $0x169] sm:$0xff]
      %v1052 = vld [vmem:[%s920 + $0x171] sm:$0xff]
      %v1053 = vlaneseq
      %v1054 = vshrl.u32 %v1053, 7
      %v1055 = vsub.s32 4, %v1054
      %v1056 = vrot.slane %v618, %v1055
      %v1057 = vmul.f32 %v1021, %v1056
      %v1058 = vmul.f32 %v1022, %v1056
      %v1059 = vmul.f32 %v1023, %v1056
      %v1060 = vmul.f32 %v1024, %v1056
      %v1061 = vmul.f32 %v1025, %v1056
      %v1062 = vmul.f32 %v1026, %v1056
      %v1063 = vmul.f32 %v1027, %v1056
      %v1064 = vmul.f32 %v1028, %v1056
      %v1065 = vmul.f32 %v1029, %v1056
      %v1066 = vmul.f32 %v1030, %v1056
      %v1067 = vmul.f32 %v1031, %v1056
      %v1068 = vmul.f32 %v1032, %v1056
      %v1069 = vmul.f32 %v1033, %v1056
      %v1070 = vmul.f32 %v1034, %v1056
      %v1071 = vmul.f32 %v1035, %v1056
      %v1072 = vmul.f32 %v1036, %v1056
      %v1073 = vmul.f32 %v1037, %v1056
      %v1074 = vmul.f32 %v1038, %v1056
      %v1075 = vmul.f32 %v1039, %v1056
      %v1076 = vmul.f32 %v1040, %v1056
      %v1077 = vmul.f32 %v1041, %v1056
      %v1078 = vmul.f32 %v1042, %v1056
      %v1079 = vmul.f32 %v1043, %v1056
      %v1080 = vmul.f32 %v1044, %v1056
      %v1081 = vmul.f32 %v1045, %v1056
      %v1082 = vmul.f32 %v1046, %v1056
      %v1083 = vmul.f32 %v1047, %v1056
      %v1084 = vmul.f32 %v1048, %v1056
      %v1085 = vmul.f32 %v1049, %v1056
      %v1086 = vmul.f32 %v1050, %v1056
      %v1087 = vmul.f32 %v1051, %v1056
      %v1088 = vmul.f32 %v1052, %v1056
      %v1089 = vadd.f32 %v989, %v1057
      %v1090 = vadd.f32 %v990, %v1058
      %v1091 = vadd.f32 %v991, %v1059
      %v1092 = vadd.f32 %v992, %v1060
      %v1093 = vadd.f32 %v993, %v1061
      %v1094 = vadd.f32 %v994, %v1062
      %v1095 = vadd.f32 %v995, %v1063
      %v1096 = vadd.f32 %v996, %v1064
      %v1097 = vadd.f32 %v997, %v1065
      %v1098 = vadd.f32 %v998, %v1066
      %v1099 = vadd.f32 %v999, %v1067
      %v1100 = vadd.f32 %v1000, %v1068
      %v1101 = vadd.f32 %v1001, %v1069
      %v1102 = vadd.f32 %v1002, %v1070
      %v1103 = vadd.f32 %v1003, %v1071
      %v1104 = vadd.f32 %v1004, %v1072
      %v1105 = vadd.f32 %v1005, %v1073
      %v1106 = vadd.f32 %v1006, %v1074
      %v1107 = vadd.f32 %v1007, %v1075
      %v1108 = vadd.f32 %v1008, %v1076
      %v1109 = vadd.f32 %v1009, %v1077
      %v1110 = vadd.f32 %v1010, %v1078
      %v1111 = vadd.f32 %v1011, %v1079
      %v1112 = vadd.f32 %v1012, %v1080
      %v1113 = vadd.f32 %v1013, %v1081
      %v1114 = vadd.f32 %v1014, %v1082
      %v1115 = vadd.f32 %v1015, %v1083
      %v1116 = vadd.f32 %v1016, %v1084
      %v1117 = vadd.f32 %v1017, %v1085
      %v1118 = vadd.f32 %v1018, %v1086
      %v1119 = vadd.f32 %v1019, %v1087
      %v1120 = vadd.f32 %v1020, %v1088
      %v1121 = vld [vmem:[%s920 + $0x2] sm:$0xff]
      %v1122 = vld [vmem:[%s920 + $0xa] sm:$0xff]
      %v1123 = vld [vmem:[%s920 + $0x1a] sm:$0xff]
      %v1124 = vld [vmem:[%s920 + $0x22] sm:$0xff]
      %v1125 = vld [vmem:[%s920 + $0x32] sm:$0xff]
      %v1126 = vld [vmem:[%s920 + $0x3a] sm:$0xff]
      %v1127 = vld [vmem:[%s920 + $0x4a] sm:$0xff]
      %v1128 = vld [vmem:[%s920 + $0x52] sm:$0xff]
      %v1129 = vld [vmem:[%s920 + $0x62] sm:$0xff]
      %v1130 = vld [vmem:[%s920 + $0x6a] sm:$0xff]
      %v1131 = vld [vmem:[%s920 + $0x7a] sm:$0xff]
      %v1132 = vld [vmem:[%s920 + $0x82] sm:$0xff]
      %v1133 = vld [vmem:[%s920 + $0x92] sm:$0xff]
      %v1134 = vld [vmem:[%s920 + $0x9a] sm:$0xff]
      %v1135 = vld [vmem:[%s920 + $0xaa] sm:$0xff]
      %v1136 = vld [vmem:[%s920 + $0xb2] sm:$0xff]
      %v1137 = vld [vmem:[%s920 + $0xc2] sm:$0xff]
      %v1138 = vld [vmem:[%s920 + $0xca] sm:$0xff]
      %v1139 = vld [vmem:[%s920 + $0xda] sm:$0xff]
      %v1140 = vld [vmem:[%s920 + $0xe2] sm:$0xff]
      %v1141 = vld [vmem:[%s920 + $0xf2] sm:$0xff]
      %v1142 = vld [vmem:[%s920 + $0xfa] sm:$0xff]
      %v1143 = vld [vmem:[%s920 + $0x10a] sm:$0xff]
      %v1144 = vld [vmem:[%s920 + $0x112] sm:$0xff]
      %v1145 = vld [vmem:[%s920 + $0x122] sm:$0xff]
      %v1146 = vld [vmem:[%s920 + $0x12a] sm:$0xff]
      %v1147 = vld [vmem:[%s920 + $0x13a] sm:$0xff]
      %v1148 = vld [vmem:[%s920 + $0x142] sm:$0xff]
      %v1149 = vld [vmem:[%s920 + $0x152] sm:$0xff]
      %v1150 = vld [vmem:[%s920 + $0x15a] sm:$0xff]
      %v1151 = vld [vmem:[%s920 + $0x16a] sm:$0xff]
      %v1152 = vld [vmem:[%s920 + $0x172] sm:$0xff]
      %v1153 = vlaneseq
      %v1154 = vshrl.u32 %v1153, 7
      %v1155 = vsub.s32 5, %v1154
      %v1156 = vrot.slane %v618, %v1155
      %v1157 = vmul.f32 %v1121, %v1156
      %v1158 = vmul.f32 %v1122, %v1156
      %v1159 = vmul.f32 %v1123, %v1156
      %v1160 = vmul.f32 %v1124, %v1156
      %v1161 = vmul.f32 %v1125, %v1156
      %v1162 = vmul.f32 %v1126, %v1156
      %v1163 = vmul.f32 %v1127, %v1156
      %v1164 = vmul.f32 %v1128, %v1156
      %v1165 = vmul.f32 %v1129, %v1156
      %v1166 = vmul.f32 %v1130, %v1156
      %v1167 = vmul.f32 %v1131, %v1156
      %v1168 = vmul.f32 %v1132, %v1156
      %v1169 = vmul.f32 %v1133, %v1156
      %v1170 = vmul.f32 %v1134, %v1156
      %v1171 = vmul.f32 %v1135, %v1156
      %v1172 = vmul.f32 %v1136, %v1156
      %v1173 = vmul.f32 %v1137, %v1156
      %v1174 = vmul.f32 %v1138, %v1156
      %v1175 = vmul.f32 %v1139, %v1156
      %v1176 = vmul.f32 %v1140, %v1156
      %v1177 = vmul.f32 %v1141, %v1156
      %v1178 = vmul.f32 %v1142, %v1156
      %v1179 = vmul.f32 %v1143, %v1156
      %v1180 = vmul.f32 %v1144, %v1156
      %v1181 = vmul.f32 %v1145, %v1156
      %v1182 = vmul.f32 %v1146, %v1156
      %v1183 = vmul.f32 %v1147, %v1156
      %v1184 = vmul.f32 %v1148, %v1156
      %v1185 = vmul.f32 %v1149, %v1156
      %v1186 = vmul.f32 %v1150, %v1156
      %v1187 = vmul.f32 %v1151, %v1156
      %v1188 = vmul.f32 %v1152, %v1156
      %v1189 = vadd.f32 %v1089, %v1157
      %v1190 = vadd.f32 %v1090, %v1158
      %v1191 = vadd.f32 %v1091, %v1159
      %v1192 = vadd.f32 %v1092, %v1160
      %v1193 = vadd.f32 %v1093, %v1161
      %v1194 = vadd.f32 %v1094, %v1162
      %v1195 = vadd.f32 %v1095, %v1163
      %v1196 = vadd.f32 %v1096, %v1164
      %v1197 = vadd.f32 %v1097, %v1165
      %v1198 = vadd.f32 %v1098, %v1166
      %v1199 = vadd.f32 %v1099, %v1167
      %v1200 = vadd.f32 %v1100, %v1168
      %v1201 = vadd.f32 %v1101, %v1169
      %v1202 = vadd.f32 %v1102, %v1170
      %v1203 = vadd.f32 %v1103, %v1171
      %v1204 = vadd.f32 %v1104, %v1172
      %v1205 = vadd.f32 %v1105, %v1173
      %v1206 = vadd.f32 %v1106, %v1174
      %v1207 = vadd.f32 %v1107, %v1175
      %v1208 = vadd.f32 %v1108, %v1176
      %v1209 = vadd.f32 %v1109, %v1177
      %v1210 = vadd.f32 %v1110, %v1178
      %v1211 = vadd.f32 %v1111, %v1179
      %v1212 = vadd.f32 %v1112, %v1180
      %v1213 = vadd.f32 %v1113, %v1181
      %v1214 = vadd.f32 %v1114, %v1182
      %v1215 = vadd.f32 %v1115, %v1183
      %v1216 = vadd.f32 %v1116, %v1184
      %v1217 = vadd.f32 %v1117, %v1185
      %v1218 = vadd.f32 %v1118, %v1186
      %v1219 = vadd.f32 %v1119, %v1187
      %v1220 = vadd.f32 %v1120, %v1188
      %s1221 = scalar_lea.vmem %s406, 48 [#allocation2]
      %v1222 = vld [vmem:[%s1221] sm:$0xff]
      %v1223 = vld [vmem:[%s1221 + $0x8] sm:$0xff]
      %v1224 = vld [vmem:[%s1221 + $0x18] sm:$0xff]
      %v1225 = vld [vmem:[%s1221 + $0x20] sm:$0xff]
      %v1226 = vld [vmem:[%s1221 + $0x30] sm:$0xff]
      %v1227 = vld [vmem:[%s1221 + $0x38] sm:$0xff]
      %v1228 = vld [vmem:[%s1221 + $0x48] sm:$0xff]
      %v1229 = vld [vmem:[%s1221 + $0x50] sm:$0xff]
      %v1230 = vld [vmem:[%s1221 + $0x60] sm:$0xff]
      %v1231 = vld [vmem:[%s1221 + $0x68] sm:$0xff]
      %v1232 = vld [vmem:[%s1221 + $0x78] sm:$0xff]
      %v1233 = vld [vmem:[%s1221 + $0x80] sm:$0xff]
      %v1234 = vld [vmem:[%s1221 + $0x90] sm:$0xff]
      %v1235 = vld [vmem:[%s1221 + $0x98] sm:$0xff]
      %v1236 = vld [vmem:[%s1221 + $0xa8] sm:$0xff]
      %v1237 = vld [vmem:[%s1221 + $0xb0] sm:$0xff]
      %v1238 = vld [vmem:[%s1221 + $0xc0] sm:$0xff]
      %v1239 = vld [vmem:[%s1221 + $0xc8] sm:$0xff]
      %v1240 = vld [vmem:[%s1221 + $0xd8] sm:$0xff]
      %v1241 = vld [vmem:[%s1221 + $0xe0] sm:$0xff]
      %v1242 = vld [vmem:[%s1221 + $0xf0] sm:$0xff]
      %v1243 = vld [vmem:[%s1221 + $0xf8] sm:$0xff]
      %v1244 = vld [vmem:[%s1221 + $0x108] sm:$0xff]
      %v1245 = vld [vmem:[%s1221 + $0x110] sm:$0xff]
      %v1246 = vld [vmem:[%s1221 + $0x120] sm:$0xff]
      %v1247 = vld [vmem:[%s1221 + $0x128] sm:$0xff]
      %v1248 = vld [vmem:[%s1221 + $0x138] sm:$0xff]
      %v1249 = vld [vmem:[%s1221 + $0x140] sm:$0xff]
      %v1250 = vld [vmem:[%s1221 + $0x150] sm:$0xff]
      %v1251 = vld [vmem:[%s1221 + $0x158] sm:$0xff]
      %v1252 = vld [vmem:[%s1221 + $0x168] sm:$0xff]
      %v1253 = vld [vmem:[%s1221 + $0x170] sm:$0xff]
      %v1254 = vlaneseq
      %v1255 = vshrl.u32 %v1254, 7
      %v1256 = vsub.s32 6, %v1255
      %v1257 = vrot.slane %v618, %v1256
      %v1258 = vmul.f32 %v1222, %v1257
      %v1259 = vmul.f32 %v1223, %v1257
      %v1260 = vmul.f32 %v1224, %v1257
      %v1261 = vmul.f32 %v1225, %v1257
      %v1262 = vmul.f32 %v1226, %v1257
      %v1263 = vmul.f32 %v1227, %v1257
      %v1264 = vmul.f32 %v1228, %v1257
      %v1265 = vmul.f32 %v1229, %v1257
      %v1266 = vmul.f32 %v1230, %v1257
      %v1267 = vmul.f32 %v1231, %v1257
      %v1268 = vmul.f32 %v1232, %v1257
      %v1269 = vmul.f32 %v1233, %v1257
      %v1270 = vmul.f32 %v1234, %v1257
      %v1271 = vmul.f32 %v1235, %v1257
      %v1272 = vmul.f32 %v1236, %v1257
      %v1273 = vmul.f32 %v1237, %v1257
      %v1274 = vmul.f32 %v1238, %v1257
      %v1275 = vmul.f32 %v1239, %v1257
      %v1276 = vmul.f32 %v1240, %v1257
      %v1277 = vmul.f32 %v1241, %v1257
      %v1278 = vmul.f32 %v1242, %v1257
      %v1279 = vmul.f32 %v1243, %v1257
      %v1280 = vmul.f32 %v1244, %v1257
      %v1281 = vmul.f32 %v1245, %v1257
      %v1282 = vmul.f32 %v1246, %v1257
      %v1283 = vmul.f32 %v1247, %v1257
      %v1284 = vmul.f32 %v1248, %v1257
      %v1285 = vmul.f32 %v1249, %v1257
      %v1286 = vmul.f32 %v1250, %v1257
      %v1287 = vmul.f32 %v1251, %v1257
      %v1288 = vmul.f32 %v1252, %v1257
      %v1289 = vmul.f32 %v1253, %v1257
      %v1290 = vadd.f32 %v1189, %v1258
      %v1291 = vadd.f32 %v1190, %v1259
      %v1292 = vadd.f32 %v1191, %v1260
      %v1293 = vadd.f32 %v1192, %v1261
      %v1294 = vadd.f32 %v1193, %v1262
      %v1295 = vadd.f32 %v1194, %v1263
      %v1296 = vadd.f32 %v1195, %v1264
      %v1297 = vadd.f32 %v1196, %v1265
      %v1298 = vadd.f32 %v1197, %v1266
      %v1299 = vadd.f32 %v1198, %v1267
      %v1300 = vadd.f32 %v1199, %v1268
      %v1301 = vadd.f32 %v1200, %v1269
      %v1302 = vadd.f32 %v1201, %v1270
      %v1303 = vadd.f32 %v1202, %v1271
      %v1304 = vadd.f32 %v1203, %v1272
      %v1305 = vadd.f32 %v1204, %v1273
      %v1306 = vadd.f32 %v1205, %v1274
      %v1307 = vadd.f32 %v1206, %v1275
      %v1308 = vadd.f32 %v1207, %v1276
      %v1309 = vadd.f32 %v1208, %v1277
      %v1310 = vadd.f32 %v1209, %v1278
      %v1311 = vadd.f32 %v1210, %v1279
      %v1312 = vadd.f32 %v1211, %v1280
      %v1313 = vadd.f32 %v1212, %v1281
      %v1314 = vadd.f32 %v1213, %v1282
      %v1315 = vadd.f32 %v1214, %v1283
      %v1316 = vadd.f32 %v1215, %v1284
      %v1317 = vadd.f32 %v1216, %v1285
      %v1318 = vadd.f32 %v1217, %v1286
      %v1319 = vadd.f32 %v1218, %v1287
      %v1320 = vadd.f32 %v1219, %v1288
      %v1321 = vadd.f32 %v1220, %v1289
      %v1322 = vld [vmem:[%s1221 + $0x1] sm:$0xff]
      %v1323 = vld [vmem:[%s1221 + $0x9] sm:$0xff]
      %v1324 = vld [vmem:[%s1221 + $0x19] sm:$0xff]
      %v1325 = vld [vmem:[%s1221 + $0x21] sm:$0xff]
      %v1326 = vld [vmem:[%s1221 + $0x31] sm:$0xff]
      %v1327 = vld [vmem:[%s1221 + $0x39] sm:$0xff]
      %v1328 = vld [vmem:[%s1221 + $0x49] sm:$0xff]
      %v1329 = vld [vmem:[%s1221 + $0x51] sm:$0xff]
      %v1330 = vld [vmem:[%s1221 + $0x61] sm:$0xff]
      %v1331 = vld [vmem:[%s1221 + $0x69] sm:$0xff]
      %v1332 = vld [vmem:[%s1221 + $0x79] sm:$0xff]
      %v1333 = vld [vmem:[%s1221 + $0x81] sm:$0xff]
      %v1334 = vld [vmem:[%s1221 + $0x91] sm:$0xff]
      %v1335 = vld [vmem:[%s1221 + $0x99] sm:$0xff]
      %v1336 = vld [vmem:[%s1221 + $0xa9] sm:$0xff]
      %v1337 = vld [vmem:[%s1221 + $0xb1] sm:$0xff]
      %v1338 = vld [vmem:[%s1221 + $0xc1] sm:$0xff]
      %v1339 = vld [vmem:[%s1221 + $0xc9] sm:$0xff]
      %v1340 = vld [vmem:[%s1221 + $0xd9] sm:$0xff]
      %v1341 = vld [vmem:[%s1221 + $0xe1] sm:$0xff]
      %v1342 = vld [vmem:[%s1221 + $0xf1] sm:$0xff]
      %v1343 = vld [vmem:[%s1221 + $0xf9] sm:$0xff]
      %v1344 = vld [vmem:[%s1221 + $0x109] sm:$0xff]
      %v1345 = vld [vmem:[%s1221 + $0x111] sm:$0xff]
      %v1346 = vld [vmem:[%s1221 + $0x121] sm:$0xff]
      %v1347 = vld [vmem:[%s1221 + $0x129] sm:$0xff]
      %v1348 = vld [vmem:[%s1221 + $0x139] sm:$0xff]
      %v1349 = vld [vmem:[%s1221 + $0x141] sm:$0xff]
      %v1350 = vld [vmem:[%s1221 + $0x151] sm:$0xff]
      %v1351 = vld [vmem:[%s1221 + $0x159] sm:$0xff]
      %v1352 = vld [vmem:[%s1221 + $0x169] sm:$0xff]
      %v1353 = vld [vmem:[%s1221 + $0x171] sm:$0xff]
      %v1354 = vlaneseq
      %v1355 = vshrl.u32 %v1354, 7
      %v1356 = vsub.s32 7, %v1355
      %v1357 = vrot.slane %v618, %v1356
      %v1358 = vmul.f32 %v1322, %v1357
      %v1359 = vmul.f32 %v1323, %v1357
      %v1360 = vmul.f32 %v1324, %v1357
      %v1361 = vmul.f32 %v1325, %v1357
      %v1362 = vmul.f32 %v1326, %v1357
      %v1363 = vmul.f32 %v1327, %v1357
      %v1364 = vmul.f32 %v1328, %v1357
      %v1365 = vmul.f32 %v1329, %v1357
      %v1366 = vmul.f32 %v1330, %v1357
      %v1367 = vmul.f32 %v1331, %v1357
      %v1368 = vmul.f32 %v1332, %v1357
      %v1369 = vmul.f32 %v1333, %v1357
      %v1370 = vmul.f32 %v1334, %v1357
      %v1371 = vmul.f32 %v1335, %v1357
      %v1372 = vmul.f32 %v1336, %v1357
      %v1373 = vmul.f32 %v1337, %v1357
      %v1374 = vmul.f32 %v1338, %v1357
      %v1375 = vmul.f32 %v1339, %v1357
      %v1376 = vmul.f32 %v1340, %v1357
      %v1377 = vmul.f32 %v1341, %v1357
      %v1378 = vmul.f32 %v1342, %v1357
      %v1379 = vmul.f32 %v1343, %v1357
      %v1380 = vmul.f32 %v1344, %v1357
      %v1381 = vmul.f32 %v1345, %v1357
      %v1382 = vmul.f32 %v1346, %v1357
      %v1383 = vmul.f32 %v1347, %v1357
      %v1384 = vmul.f32 %v1348, %v1357
      %v1385 = vmul.f32 %v1349, %v1357
      %v1386 = vmul.f32 %v1350, %v1357
      %v1387 = vmul.f32 %v1351, %v1357
      %v1388 = vmul.f32 %v1352, %v1357
      %v1389 = vmul.f32 %v1353, %v1357
      %v1390 = vadd.f32 %v1290, %v1358
      %v1391 = vadd.f32 %v1291, %v1359
      %v1392 = vadd.f32 %v1292, %v1360
      %v1393 = vadd.f32 %v1293, %v1361
      %v1394 = vadd.f32 %v1294, %v1362
      %v1395 = vadd.f32 %v1295, %v1363
      %v1396 = vadd.f32 %v1296, %v1364
      %v1397 = vadd.f32 %v1297, %v1365
      %v1398 = vadd.f32 %v1298, %v1366
      %v1399 = vadd.f32 %v1299, %v1367
      %v1400 = vadd.f32 %v1300, %v1368
      %v1401 = vadd.f32 %v1301, %v1369
      %v1402 = vadd.f32 %v1302, %v1370
      %v1403 = vadd.f32 %v1303, %v1371
      %v1404 = vadd.f32 %v1304, %v1372
      %v1405 = vadd.f32 %v1305, %v1373
      %v1406 = vadd.f32 %v1306, %v1374
      %v1407 = vadd.f32 %v1307, %v1375
      %v1408 = vadd.f32 %v1308, %v1376
      %v1409 = vadd.f32 %v1309, %v1377
      %v1410 = vadd.f32 %v1310, %v1378
      %v1411 = vadd.f32 %v1311, %v1379
      %v1412 = vadd.f32 %v1312, %v1380
      %v1413 = vadd.f32 %v1313, %v1381
      %v1414 = vadd.f32 %v1314, %v1382
      %v1415 = vadd.f32 %v1315, %v1383
      %v1416 = vadd.f32 %v1316, %v1384
      %v1417 = vadd.f32 %v1317, %v1385
      %v1418 = vadd.f32 %v1318, %v1386
      %v1419 = vadd.f32 %v1319, %v1387
      %v1420 = vadd.f32 %v1320, %v1388
      %v1421 = vadd.f32 %v1321, %v1389
      %v1422 = vld [vmem:[%s1221 + $0x2] sm:$0xff]
      %v1423 = vld [vmem:[%s1221 + $0xa] sm:$0xff]
      %v1424 = vld [vmem:[%s1221 + $0x1a] sm:$0xff]
      %v1425 = vld [vmem:[%s1221 + $0x22] sm:$0xff]
      %v1426 = vld [vmem:[%s1221 + $0x32] sm:$0xff]
      %v1427 = vld [vmem:[%s1221 + $0x3a] sm:$0xff]
      %v1428 = vld [vmem:[%s1221 + $0x4a] sm:$0xff]
      %v1429 = vld [vmem:[%s1221 + $0x52] sm:$0xff]
      %v1430 = vld [vmem:[%s1221 + $0x62] sm:$0xff]
      %v1431 = vld [vmem:[%s1221 + $0x6a] sm:$0xff]
      %v1432 = vld [vmem:[%s1221 + $0x7a] sm:$0xff]
      %v1433 = vld [vmem:[%s1221 + $0x82] sm:$0xff]
      %v1434 = vld [vmem:[%s1221 + $0x92] sm:$0xff]
      %v1435 = vld [vmem:[%s1221 + $0x9a] sm:$0xff]
      %v1436 = vld [vmem:[%s1221 + $0xaa] sm:$0xff]
      %v1437 = vld [vmem:[%s1221 + $0xb2] sm:$0xff]
      %v1438 = vld [vmem:[%s1221 + $0xc2] sm:$0xff]
      %v1439 = vld [vmem:[%s1221 + $0xca] sm:$0xff]
      %v1440 = vld [vmem:[%s1221 + $0xda] sm:$0xff]
      %v1441 = vld [vmem:[%s1221 + $0xe2] sm:$0xff]
      %v1442 = vld [vmem:[%s1221 + $0xf2] sm:$0xff]
      %v1443 = vld [vmem:[%s1221 + $0xfa] sm:$0xff]
      %v1444 = vld [vmem:[%s1221 + $0x10a] sm:$0xff]
      %v1445 = vld [vmem:[%s1221 + $0x112] sm:$0xff]
      %v1446 = vld [vmem:[%s1221 + $0x122] sm:$0xff]
      %v1447 = vld [vmem:[%s1221 + $0x12a] sm:$0xff]
      %v1448 = vld [vmem:[%s1221 + $0x13a] sm:$0xff]
      %v1449 = vld [vmem:[%s1221 + $0x142] sm:$0xff]
      %v1450 = vld [vmem:[%s1221 + $0x152] sm:$0xff]
      %v1451 = vld [vmem:[%s1221 + $0x15a] sm:$0xff]
      %v1452 = vld [vmem:[%s1221 + $0x16a] sm:$0xff]
      %v1453 = vld [vmem:[%s1221 + $0x172] sm:$0xff]
      %v1454 = vlaneseq
      %v1455 = vshrl.u32 %v1454, 7
      %v1456 = vsub.s32 0, %v1455
      %v1457 = vrot.slane %v619, %v1456
      %v1458 = vmul.f32 %v1422, %v1457
      %v1459 = vmul.f32 %v1423, %v1457
      %v1460 = vmul.f32 %v1424, %v1457
      %v1461 = vmul.f32 %v1425, %v1457
      %v1462 = vmul.f32 %v1426, %v1457
      %v1463 = vmul.f32 %v1427, %v1457
      %v1464 = vmul.f32 %v1428, %v1457
      %v1465 = vmul.f32 %v1429, %v1457
      %v1466 = vmul.f32 %v1430, %v1457
      %v1467 = vmul.f32 %v1431, %v1457
      %v1468 = vmul.f32 %v1432, %v1457
      %v1469 = vmul.f32 %v1433, %v1457
      %v1470 = vmul.f32 %v1434, %v1457
      %v1471 = vmul.f32 %v1435, %v1457
      %v1472 = vmul.f32 %v1436, %v1457
      %v1473 = vmul.f32 %v1437, %v1457
      %v1474 = vmul.f32 %v1438, %v1457
      %v1475 = vmul.f32 %v1439, %v1457
      %v1476 = vmul.f32 %v1440, %v1457
      %v1477 = vmul.f32 %v1441, %v1457
      %v1478 = vmul.f32 %v1442, %v1457
      %v1479 = vmul.f32 %v1443, %v1457
      %v1480 = vmul.f32 %v1444, %v1457
      %v1481 = vmul.f32 %v1445, %v1457
      %v1482 = vmul.f32 %v1446, %v1457
      %v1483 = vmul.f32 %v1447, %v1457
      %v1484 = vmul.f32 %v1448, %v1457
      %v1485 = vmul.f32 %v1449, %v1457
      %v1486 = vmul.f32 %v1450, %v1457
      %v1487 = vmul.f32 %v1451, %v1457
      %v1488 = vmul.f32 %v1452, %v1457
      %v1489 = vmul.f32 %v1453, %v1457
      %v1490 = vadd.f32 %v1390, %v1458
      %v1491 = vadd.f32 %v1391, %v1459
      %v1492 = vadd.f32 %v1392, %v1460
      %v1493 = vadd.f32 %v1393, %v1461
      %v1494 = vadd.f32 %v1394, %v1462
      %v1495 = vadd.f32 %v1395, %v1463
      %v1496 = vadd.f32 %v1396, %v1464
      %v1497 = vadd.f32 %v1397, %v1465
      %v1498 = vadd.f32 %v1398, %v1466
      %v1499 = vadd.f32 %v1399, %v1467
      %v1500 = vadd.f32 %v1400, %v1468
      %v1501 = vadd.f32 %v1401, %v1469
      %v1502 = vadd.f32 %v1402, %v1470
      %v1503 = vadd.f32 %v1403, %v1471
      %v1504 = vadd.f32 %v1404, %v1472
      %v1505 = vadd.f32 %v1405, %v1473
      %v1506 = vadd.f32 %v1406, %v1474
      %v1507 = vadd.f32 %v1407, %v1475
      %v1508 = vadd.f32 %v1408, %v1476
      %v1509 = vadd.f32 %v1409, %v1477
      %v1510 = vadd.f32 %v1410, %v1478
      %v1511 = vadd.f32 %v1411, %v1479
      %v1512 = vadd.f32 %v1412, %v1480
      %v1513 = vadd.f32 %v1413, %v1481
      %v1514 = vadd.f32 %v1414, %v1482
      %v1515 = vadd.f32 %v1415, %v1483
      %v1516 = vadd.f32 %v1416, %v1484
      %v1517 = vadd.f32 %v1417, %v1485
      %v1518 = vadd.f32 %v1418, %v1486
      %v1519 = vadd.f32 %v1419, %v1487
      %v1520 = vadd.f32 %v1420, %v1488
      %v1521 = vadd.f32 %v1421, %v1489
      %v1522 = vpack.c.bf16 %v1491, %v1490
      %v1523 = vpack.c.bf16 %v1493, %v1492
      %v1524 = vpack.c.bf16 %v1495, %v1494
      %v1525 = vpack.c.bf16 %v1497, %v1496
      %v1526 = vpack.c.bf16 %v1499, %v1498
      %v1527 = vpack.c.bf16 %v1501, %v1500
      %v1528 = vpack.c.bf16 %v1503, %v1502
      %v1529 = vpack.c.bf16 %v1505, %v1504
      %v1530 = vpack.c.bf16 %v1507, %v1506
      %v1531 = vpack.c.bf16 %v1509, %v1508
      %v1532 = vpack.c.bf16 %v1511, %v1510
      %v1533 = vpack.c.bf16 %v1513, %v1512
      %v1534 = vpack.c.bf16 %v1515, %v1514
      %v1535 = vpack.c.bf16 %v1517, %v1516
      %v1536 = vpack.c.bf16 %v1519, %v1518
      %v1537 = vpack.c.bf16 %v1521, %v1520
      %v1538 = vld [vmem:[%s2] sm:$0xf]
      %v1539 = vld [vmem:[%s2 + $0x4] sm:$0xf]
      %v1540 = vld [vmem:[%s2 + $0x8] sm:$0xf]
      %v1541 = vld [vmem:[%s2 + $0xc] sm:$0xf]
      %v1542 = vld [vmem:[%s2 + $0x10] sm:$0xf]
      %v1543 = vld [vmem:[%s2 + $0x14] sm:$0xf]
      %v1544 = vld [vmem:[%s2 + $0x18] sm:$0xf]
      %v1545 = vld [vmem:[%s2 + $0x1c] sm:$0xf]
      %v1546 = vld [vmem:[%s2 + $0x20] sm:$0xf]
      %v1547 = vld [vmem:[%s2 + $0x24] sm:$0xf]
      %v1548 = vld [vmem:[%s2 + $0x28] sm:$0xf]
      %v1549 = vld [vmem:[%s2 + $0x2c] sm:$0xf]
      %v1550 = vld [vmem:[%s2 + $0x30] sm:$0xf]
      %v1551 = vld [vmem:[%s2 + $0x34] sm:$0xf]
      %v1552 = vld [vmem:[%s2 + $0x38] sm:$0xf]
      %v1553 = vld [vmem:[%s2 + $0x3c] sm:$0xf]
      %v1570 = vunpack.c.l.b16 %v1538
      %v1571 = vunpack.c.l.b16 %v1539
      %v1572 = vunpack.c.l.b16 %v1540
      %v1573 = vunpack.c.l.b16 %v1541
      %v1574 = vunpack.c.l.b16 %v1542
      %v1575 = vunpack.c.l.b16 %v1543
      %v1576 = vunpack.c.l.b16 %v1544
      %v1577 = vunpack.c.l.b16 %v1545
      %v1578 = vunpack.c.l.b16 %v1546
      %v1579 = vunpack.c.l.b16 %v1547
      %v1580 = vunpack.c.l.b16 %v1548
      %v1581 = vunpack.c.l.b16 %v1549
      %v1582 = vunpack.c.l.b16 %v1550
      %v1583 = vunpack.c.l.b16 %v1551
      %v1584 = vunpack.c.l.b16 %v1552
      %v1585 = vunpack.c.l.b16 %v1553
      %v1586 = vpack.c.b16 %v1571, %v1570
      %v1587 = vpack.c.b16 %v1573, %v1572
      %v1588 = vpack.c.b16 %v1575, %v1574
      %v1589 = vpack.c.b16 %v1577, %v1576
      %v1590 = vpack.c.b16 %v1579, %v1578
      %v1591 = vpack.c.b16 %v1581, %v1580
      %v1592 = vpack.c.b16 %v1583, %v1582
      %v1593 = vpack.c.b16 %v1585, %v1584
      %1602 = vmatprep.subr.bf16.mxu0 0
      %1603 = vmatpush1.bf16.msra.mxu0 %v1586
      %1604 = vmatprep.subr.bf16.mxu0 0
      %1605 = vmatpush1.bf16.msra.mxu0 %v1587
      %1606 = vmatprep.subr.bf16.mxu0 0
      %1607 = vmatpush1.bf16.msra.mxu0 %v1588
      %1608 = vmatprep.subr.bf16.mxu0 0
      %1609 = vmatpush1.bf16.msra.mxu0 %v1589
      %1610 = vmatprep.subr.bf16.mxu0 0
      %1611 = vmatpush1.bf16.msra.mxu0 %v1590
      %1612 = vmatprep.subr.bf16.mxu0 0
      %1613 = vmatpush1.bf16.msra.mxu0 %v1591
      %1614 = vmatprep.subr.bf16.mxu0 0
      %1615 = vmatpush1.bf16.msra.mxu0 %v1592
      %1616 = vmatprep.subr.bf16.mxu0 0
      %1617 = vmatpush1.bf16.msra.mxu0 %v1593
      %1618 = vmatprep.subr.bf16.mxu0 0
      %1619 = vmatpush1.bf16.msra.mxu0 0
      %1620 = vmatprep.subr.bf16.mxu0 0
      %1621 = vmatpush1.bf16.msra.mxu0 0
      %1622 = vmatprep.subr.bf16.mxu0 0
      %1623 = vmatpush1.bf16.msra.mxu0 0
      %1624 = vmatprep.subr.bf16.mxu0 0
      %1625 = vmatpush1.bf16.msra.mxu0 0
      %1626 = vmatprep.subr.bf16.mxu0 0
      %1627 = vmatpush1.bf16.msra.mxu0 0
      %1628 = vmatprep.subr.bf16.mxu0 0
      %1629 = vmatpush1.bf16.msra.mxu0 0
      %1630 = vmatprep.subr.bf16.mxu0 0
      %1631 = vmatpush1.bf16.msra.mxu0 0
      %1632 = vmatprep.subr.bf16.mxu0 0
      %1633 = vmatpush1.bf16.msra.mxu0 0
      %1634 = vmatprep.mubr.bf16.mxu0 0
      %1635 = vmatmul.mubr.bf16.gmra.mrb[0].mxu0 %v1522
      %v1636 = vpop.f32.mrb[0].mxu0
      %v1637 = vadd.f32 0.0, %v1636
      %v1638 = vpop.f32.mrb[0].mxu0
      %v1639 = vpop.f32.mrb[0].mxu0
      %v1640 = vadd.f32 0.0, %v1639
      %v1641 = vpop.f32.mrb[0].mxu0
      %1642 = vmatprep.mubr.bf16.mxu0 0
      %1643 = vmatmul.mubr.bf16.gmra.mrb[0].mxu0 %v1523
      %v1644 = vpop.f32.mrb[0].mxu0
      %v1645 = vadd.f32 0.0, %v1644
      %v1646 = vpop.f32.mrb[0].mxu0
      %v1647 = vpop.f32.mrb[0].mxu0
      %v1648 = vadd.f32 0.0, %v1647
      %v1649 = vpop.f32.mrb[0].mxu0
      %1650 = vmatprep.mubr.bf16.mxu0 0
      %1651 = vmatmul.mubr.bf16.gmra.mrb[0].mxu0 %v1524
      %v1652 = vpop.f32.mrb[0].mxu0
      %v1653 = vadd.f32 0.0, %v1652
      %v1654 = vpop.f32.mrb[0].mxu0
      %v1655 = vpop.f32.mrb[0].mxu0
      %v1656 = vadd.f32 0.0, %v1655
      %v1657 = vpop.f32.mrb[0].mxu0
      %1658 = vmatprep.mubr.bf16.mxu0 0
      %1659 = vmatmul.mubr.bf16.gmra.mrb[0].mxu0 %v1525
      %v1660 = vpop.f32.mrb[0].mxu0
      %v1661 = vadd.f32 0.0, %v1660
      %v1662 = vpop.f32.mrb[0].mxu0
      %v1663 = vpop.f32.mrb[0].mxu0
      %v1664 = vadd.f32 0.0, %v1663
      %v1665 = vpop.f32.mrb[0].mxu0
      %1666 = vmatprep.mubr.bf16.mxu0 0
      %1667 = vmatmul.mubr.bf16.gmra.mrb[0].mxu0 %v1526
      %v1668 = vpop.f32.mrb[0].mxu0
      %v1669 = vadd.f32 0.0, %v1668
      %v1670 = vpop.f32.mrb[0].mxu0
      %v1671 = vpop.f32.mrb[0].mxu0
      %v1672 = vadd.f32 0.0, %v1671
      %v1673 = vpop.f32.mrb[0].mxu0
      %1674 = vmatprep.mubr.bf16.mxu0 0
      %1675 = vmatmul.mubr.bf16.gmra.mrb[0].mxu0 %v1527
      %v1676 = vpop.f32.mrb[0].mxu0
      %v1677 = vadd.f32 0.0, %v1676
      %v1678 = vpop.f32.mrb[0].mxu0
      %v1679 = vpop.f32.mrb[0].mxu0
      %v1680 = vadd.f32 0.0, %v1679
      %v1681 = vpop.f32.mrb[0].mxu0
      %1682 = vmatprep.mubr.bf16.mxu0 0
      %1683 = vmatmul.mubr.bf16.gmra.mrb[0].mxu0 %v1528
      %v1684 = vpop.f32.mrb[0].mxu0
      %v1685 = vadd.f32 0.0, %v1684
      %v1686 = vpop.f32.mrb[0].mxu0
      %v1687 = vpop.f32.mrb[0].mxu0
      %v1688 = vadd.f32 0.0, %v1687
      %v1689 = vpop.f32.mrb[0].mxu0
      %1690 = vmatprep.mubr.bf16.mxu0 0
      %1691 = vmatmul.mubr.bf16.gmra.mrb[0].mxu0 %v1529
      %v1692 = vpop.f32.mrb[0].mxu0
      %v1693 = vadd.f32 0.0, %v1692
      %v1694 = vpop.f32.mrb[0].mxu0
      %v1695 = vpop.f32.mrb[0].mxu0
      %v1696 = vadd.f32 0.0, %v1695
      %v1697 = vpop.f32.mrb[0].mxu0
      %1698 = vmatprep.mubr.bf16.mxu0 0
      %1699 = vmatmul.mubr.bf16.gmra.mrb[0].mxu0 %v1530
      %v1700 = vpop.f32.mrb[0].mxu0
      %v1701 = vadd.f32 0.0, %v1700
      %v1702 = vpop.f32.mrb[0].mxu0
      %v1703 = vpop.f32.mrb[0].mxu0
      %v1704 = vadd.f32 0.0, %v1703
      %v1705 = vpop.f32.mrb[0].mxu0
      %1706 = vmatprep.mubr.bf16.mxu0 0
      %1707 = vmatmul.mubr.bf16.gmra.mrb[0].mxu0 %v1531
      %v1708 = vpop.f32.mrb[0].mxu0
      %v1709 = vadd.f32 0.0, %v1708
      %v1710 = vpop.f32.mrb[0].mxu0
      %v1711 = vpop.f32.mrb[0].mxu0
      %v1712 = vadd.f32 0.0, %v1711
      %v1713 = vpop.f32.mrb[0].mxu0
      %1714 = vmatprep.mubr.bf16.mxu0 0
      %1715 = vmatmul.mubr.bf16.gmra.mrb[0].mxu0 %v1532
      %v1716 = vpop.f32.mrb[0].mxu0
      %v1717 = vadd.f32 0.0, %v1716
      %v1718 = vpop.f32.mrb[0].mxu0
      %v1719 = vpop.f32.mrb[0].mxu0
      %v1720 = vadd.f32 0.0, %v1719
      %v1721 = vpop.f32.mrb[0].mxu0
      %1722 = vmatprep.mubr.bf16.mxu0 0
      %1723 = vmatmul.mubr.bf16.gmra.mrb[0].mxu0 %v1533
      %v1724 = vpop.f32.mrb[0].mxu0
      %v1725 = vadd.f32 0.0, %v1724
      %v1726 = vpop.f32.mrb[0].mxu0
      %v1727 = vpop.f32.mrb[0].mxu0
      %v1728 = vadd.f32 0.0, %v1727
      %v1729 = vpop.f32.mrb[0].mxu0
      %1730 = vmatprep.mubr.bf16.mxu0 0
      %1731 = vmatmul.mubr.bf16.gmra.mrb[0].mxu0 %v1534
      %v1732 = vpop.f32.mrb[0].mxu0
      %v1733 = vadd.f32 0.0, %v1732
      %v1734 = vpop.f32.mrb[0].mxu0
      %v1735 = vpop.f32.mrb[0].mxu0
      %v1736 = vadd.f32 0.0, %v1735
      %v1737 = vpop.f32.mrb[0].mxu0
      %1738 = vmatprep.mubr.bf16.mxu0 0
      %1739 = vmatmul.mubr.bf16.gmra.mrb[0].mxu0 %v1535
      %v1740 = vpop.f32.mrb[0].mxu0
      %v1741 = vadd.f32 0.0, %v1740
      %v1742 = vpop.f32.mrb[0].mxu0
      %v1743 = vpop.f32.mrb[0].mxu0
      %v1744 = vadd.f32 0.0, %v1743
      %v1745 = vpop.f32.mrb[0].mxu0
      %1746 = vmatprep.mubr.bf16.mxu0 0
      %1747 = vmatmul.mubr.bf16.gmra.mrb[0].mxu0 %v1536
      %v1748 = vpop.f32.mrb[0].mxu0
      %v1749 = vadd.f32 0.0, %v1748
      %v1750 = vpop.f32.mrb[0].mxu0
      %v1751 = vpop.f32.mrb[0].mxu0
      %v1752 = vadd.f32 0.0, %v1751
      %v1753 = vpop.f32.mrb[0].mxu0
      %1754 = vmatprep.mubr.bf16.mxu0 0
      %1755 = vmatmul.mubr.bf16.gmra.mrb[0].mxu0 %v1537
      %v1756 = vpop.f32.mrb[0].mxu0
      %v1757 = vadd.f32 0.0, %v1756
      %v1758 = vpop.f32.mrb[0].mxu0
      %v1759 = vpop.f32.mrb[0].mxu0
      %v1760 = vadd.f32 0.0, %v1759
      %v1761 = vpop.f32.mrb[0].mxu0
      %1762 = vdwg.mxu0
      %v1763 = vpack.c.bf16 %v1640, %v1637
      %v1764 = vpack.c.bf16 %v1648, %v1645
      %v1765 = vpack.c.bf16 %v1656, %v1653
      %v1766 = vpack.c.bf16 %v1664, %v1661
      %v1767 = vpack.c.bf16 %v1672, %v1669
      %v1768 = vpack.c.bf16 %v1680, %v1677
      %v1769 = vpack.c.bf16 %v1688, %v1685
      %v1770 = vpack.c.bf16 %v1696, %v1693
      %v1771 = vpack.c.bf16 %v1704, %v1701
      %v1772 = vpack.c.bf16 %v1712, %v1709
      %v1773 = vpack.c.bf16 %v1720, %v1717
      %v1774 = vpack.c.bf16 %v1728, %v1725
      %v1775 = vpack.c.bf16 %v1736, %v1733
      %v1776 = vpack.c.bf16 %v1744, %v1741
      %v1777 = vpack.c.bf16 %v1752, %v1749
      %v1778 = vpack.c.bf16 %v1760, %v1757
      %v1795 = vunpack.c.l.b16 %v1763
      %v1796 = vunpack.c.h.b16 %v1763
      %v1797 = vunpack.c.l.b16 %v1764
      %v1798 = vunpack.c.h.b16 %v1764
      %v1799 = vunpack.c.l.b16 %v1765
      %v1800 = vunpack.c.h.b16 %v1765
      %v1801 = vunpack.c.l.b16 %v1766
      %v1802 = vunpack.c.h.b16 %v1766
      %v1803 = vunpack.c.l.b16 %v1767
      %v1804 = vunpack.c.h.b16 %v1767
      %v1805 = vunpack.c.l.b16 %v1768
      %v1806 = vunpack.c.h.b16 %v1768
      %v1807 = vunpack.c.l.b16 %v1769
      %v1808 = vunpack.c.h.b16 %v1769
      %v1809 = vunpack.c.l.b16 %v1770
      %v1810 = vunpack.c.h.b16 %v1770
      %v1811 = vunpack.c.l.b16 %v1771
      %v1812 = vunpack.c.h.b16 %v1771
      %v1813 = vunpack.c.l.b16 %v1772
      %v1814 = vunpack.c.h.b16 %v1772
      %v1815 = vunpack.c.l.b16 %v1773
      %v1816 = vunpack.c.h.b16 %v1773
      %v1817 = vunpack.c.l.b16 %v1774
      %v1818 = vunpack.c.h.b16 %v1774
      %v1819 = vunpack.c.l.b16 %v1775
      %v1820 = vunpack.c.h.b16 %v1775
      %v1821 = vunpack.c.l.b16 %v1776
      %v1822 = vunpack.c.h.b16 %v1776
      %v1823 = vunpack.c.l.b16 %v1777
      %v1824 = vunpack.c.h.b16 %v1777
      %v1825 = vunpack.c.l.b16 %v1778
      %v1826 = vunpack.c.h.b16 %v1778
      %v1827 = vpack.c.b16 %v1795, %v1795
      %v1828 = vpack.c.b16 %v1796, %v1796
      %v1829 = vpack.c.b16 %v1797, %v1797
      %v1830 = vpack.c.b16 %v1798, %v1798
      %v1831 = vpack.c.b16 %v1799, %v1799
      %v1832 = vpack.c.b16 %v1800, %v1800
      %v1833 = vpack.c.b16 %v1801, %v1801
      %v1834 = vpack.c.b16 %v1802, %v1802
      %v1835 = vpack.c.b16 %v1803, %v1803
      %v1836 = vpack.c.b16 %v1804, %v1804
      %v1837 = vpack.c.b16 %v1805, %v1805
      %v1838 = vpack.c.b16 %v1806, %v1806
      %v1839 = vpack.c.b16 %v1807, %v1807
      %v1840 = vpack.c.b16 %v1808, %v1808
      %v1841 = vpack.c.b16 %v1809, %v1809
      %v1842 = vpack.c.b16 %v1810, %v1810
      %v1843 = vpack.c.b16 %v1811, %v1811
      %v1844 = vpack.c.b16 %v1812, %v1812
      %v1845 = vpack.c.b16 %v1813, %v1813
      %v1846 = vpack.c.b16 %v1814, %v1814
      %v1847 = vpack.c.b16 %v1815, %v1815
      %v1848 = vpack.c.b16 %v1816, %v1816
      %v1849 = vpack.c.b16 %v1817, %v1817
      %v1850 = vpack.c.b16 %v1818, %v1818
      %v1851 = vpack.c.b16 %v1819, %v1819
      %v1852 = vpack.c.b16 %v1820, %v1820
      %v1853 = vpack.c.b16 %v1821, %v1821
      %v1854 = vpack.c.b16 %v1822, %v1822
      %v1855 = vpack.c.b16 %v1823, %v1823
      %v1856 = vpack.c.b16 %v1824, %v1824
      %v1857 = vpack.c.b16 %v1825, %v1825
      %v1858 = vpack.c.b16 %v1826, %v1826
      %1891 = vst [vmem:[%s185] sm:$0xf] %v1827
      %1892 = vst [vmem:[%s185 + $0x4] sm:$0xf] %v1828
      %1893 = vst [vmem:[%s185 + $0x8] sm:$0xf] %v1829
      %1894 = vst [vmem:[%s185 + $0xc] sm:$0xf] %v1830
      %1895 = vst [vmem:[%s185 + $0x10] sm:$0xf] %v1831
      %1896 = vst [vmem:[%s185 + $0x14] sm:$0xf] %v1832
      %1897 = vst [vmem:[%s185 + $0x18] sm:$0xf] %v1833
      %1898 = vst [vmem:[%s185 + $0x1c] sm:$0xf] %v1834
      %1899 = vst [vmem:[%s185 + $0x20] sm:$0xf] %v1835
      %1900 = vst [vmem:[%s185 + $0x24] sm:$0xf] %v1836
      %1901 = vst [vmem:[%s185 + $0x28] sm:$0xf] %v1837
      %1902 = vst [vmem:[%s185 + $0x2c] sm:$0xf] %v1838
      %1903 = vst [vmem:[%s185 + $0x30] sm:$0xf] %v1839
      %1904 = vst [vmem:[%s185 + $0x34] sm:$0xf] %v1840
      %1905 = vst [vmem:[%s185 + $0x38] sm:$0xf] %v1841
      %1906 = vst [vmem:[%s185 + $0x3c] sm:$0xf] %v1842
      %1907 = vst [vmem:[%s185 + $0x40] sm:$0xf] %v1843
      %1908 = vst [vmem:[%s185 + $0x44] sm:$0xf] %v1844
      %1909 = vst [vmem:[%s185 + $0x48] sm:$0xf] %v1845
      %1910 = vst [vmem:[%s185 + $0x4c] sm:$0xf] %v1846
      %1911 = vst [vmem:[%s185 + $0x50] sm:$0xf] %v1847
      %1912 = vst [vmem:[%s185 + $0x54] sm:$0xf] %v1848
      %1913 = vst [vmem:[%s185 + $0x58] sm:$0xf] %v1849
      %1914 = vst [vmem:[%s185 + $0x5c] sm:$0xf] %v1850
      %1915 = vst [vmem:[%s185 + $0x60] sm:$0xf] %v1851
      %1916 = vst [vmem:[%s185 + $0x64] sm:$0xf] %v1852
      %1917 = vst [vmem:[%s185 + $0x68] sm:$0xf] %v1853
      %1918 = vst [vmem:[%s185 + $0x6c] sm:$0xf] %v1854
      %1919 = vst [vmem:[%s185 + $0x70] sm:$0xf] %v1855
      %1920 = vst [vmem:[%s185 + $0x74] sm:$0xf] %v1856
      %1921 = vst [vmem:[%s185 + $0x78] sm:$0xf] %v1857
      %1922 = vst [vmem:[%s185 + $0x7c] sm:$0xf] %v1858
      %v1923 = vadd.f32 %v1637, %v1640
      %v1924 = vadd.f32 %v1923, %v1645
      %v1925 = vadd.f32 %v1924, %v1648
      %v1926 = vadd.f32 %v1925, %v1653
      %v1927 = vadd.f32 %v1926, %v1656
      %v1928 = vadd.f32 %v1927, %v1661
      %v1929 = vadd.f32 %v1928, %v1664
      %v1930 = vadd.f32 %v1929, %v1669
      %v1931 = vadd.f32 %v1930, %v1672
      %v1932 = vadd.f32 %v1931, %v1677
      %v1933 = vadd.f32 %v1932, %v1680
      %v1934 = vadd.f32 %v1933, %v1685
      %v1935 = vadd.f32 %v1934, %v1688
      %v1936 = vadd.f32 %v1935, %v1693
      %v1937 = vadd.f32 %v1936, %v1696
      %v1938 = vadd.f32 %v1937, %v1701
      %v1939 = vadd.f32 %v1938, %v1704
      %v1940 = vadd.f32 %v1939, %v1709
      %v1941 = vadd.f32 %v1940, %v1712
      %v1942 = vadd.f32 %v1941, %v1717
      %v1943 = vadd.f32 %v1942, %v1720
      %v1944 = vadd.f32 %v1943, %v1725
      %v1945 = vadd.f32 %v1944, %v1728
      %v1946 = vadd.f32 %v1945, %v1733
      %v1947 = vadd.f32 %v1946, %v1736
      %v1948 = vadd.f32 %v1947, %v1741
      %v1949 = vadd.f32 %v1948, %v1744
      %v1950 = vadd.f32 %v1949, %v1749
      %v1951 = vadd.f32 %v1950, %v1752
      %v1952 = vadd.f32 %v1951, %v1757
      %v1953 = vadd.f32 %v1952, %v1760
      %v1954 = vrot.slane %v1953, 4
      %v1955 = vadd.f32 %v1953, %v1954
      %v1956 = vrot.slane %v1955, 2
      %v1957 = vadd.f32 %v1955, %v1956
      %v1958 = vrot.slane %v1957, 1
      %v1959 = vadd.f32 %v1957, %v1958
      %v1960 = vrcp.pop 256.0
      %v1961 = vmul.f32 %v1959, %v1960
      %v1962 = vsub.f32 %v1637, %v1961
      %v1963 = vsub.f32 %v1640, %v1961
      %v1964 = vsub.f32 %v1645, %v1961
      %v1965 = vsub.f32 %v1648, %v1961
      %v1966 = vsub.f32 %v1653, %v1961
      %v1967 = vsub.f32 %v1656, %v1961
      %v1968 = vsub.f32 %v1661, %v1961
      %v1969 = vsub.f32 %v1664, %v1961
      %v1970 = vsub.f32 %v1669, %v1961
      %v1971 = vsub.f32 %v1672, %v1961
      %v1972 = vsub.f32 %v1677, %v1961
      %v1973 = vsub.f32 %v1680, %v1961
      %v1974 = vsub.f32 %v1685, %v1961
      %v1975 = vsub.f32 %v1688, %v1961
      %v1976 = vsub.f32 %v1693, %v1961
      %v1977 = vsub.f32 %v1696, %v1961
      %v1978 = vsub.f32 %v1701, %v1961
      %v1979 = vsub.f32 %v1704, %v1961
      %v1980 = vsub.f32 %v1709, %v1961
      %v1981 = vsub.f32 %v1712, %v1961
      %v1982 = vsub.f32 %v1717, %v1961
      %v1983 = vsub.f32 %v1720, %v1961
      %v1984 = vsub.f32 %v1725, %v1961
      %v1985 = vsub.f32 %v1728, %v1961
      %v1986 = vsub.f32 %v1733, %v1961
      %v1987 = vsub.f32 %v1736, %v1961
      %v1988 = vsub.f32 %v1741, %v1961
      %v1989 = vsub.f32 %v1744, %v1961
      %v1990 = vsub.f32 %v1749, %v1961
      %v1991 = vsub.f32 %v1752, %v1961
      %v1992 = vsub.f32 %v1757, %v1961
      %v1993 = vsub.f32 %v1760, %v1961
      %v1994 = vmul.f32 %v1962, %v1962
      %v1995 = vmul.f32 %v1963, %v1963
      %v1996 = vmul.f32 %v1964, %v1964
      %v1997 = vmul.f32 %v1965, %v1965
      %v1998 = vmul.f32 %v1966, %v1966
      %v1999 = vmul.f32 %v1967, %v1967
      %v2000 = vmul.f32 %v1968, %v1968
      %v2001 = vmul.f32 %v1969, %v1969
      %v2002 = vmul.f32 %v1970, %v1970
      %v2003 = vmul.f32 %v1971, %v1971
      %v2004 = vmul.f32 %v1972, %v1972
      %v2005 = vmul.f32 %v1973, %v1973
      %v2006 = vmul.f32 %v1974, %v1974
      %v2007 = vmul.f32 %v1975, %v1975
      %v2008 = vmul.f32 %v1976, %v1976
      %v2009 = vmul.f32 %v1977, %v1977
      %v2010 = vmul.f32 %v1978, %v1978
      %v2011 = vmul.f32 %v1979, %v1979
      %v2012 = vmul.f32 %v1980, %v1980
      %v2013 = vmul.f32 %v1981, %v1981
      %v2014 = vmul.f32 %v1982, %v1982
      %v2015 = vmul.f32 %v1983, %v1983
      %v2016 = vmul.f32 %v1984, %v1984
      %v2017 = vmul.f32 %v1985, %v1985
      %v2018 = vmul.f32 %v1986, %v1986
      %v2019 = vmul.f32 %v1987, %v1987
      %v2020 = vmul.f32 %v1988, %v1988
      %v2021 = vmul.f32 %v1989, %v1989
      %v2022 = vmul.f32 %v1990, %v1990
      %v2023 = vmul.f32 %v1991, %v1991
      %v2024 = vmul.f32 %v1992, %v1992
      %v2025 = vmul.f32 %v1993, %v1993
      %v2026 = vadd.f32 %v1994, %v1995
      %v2027 = vadd.f32 %v2026, %v1996
      %v2028 = vadd.f32 %v2027, %v1997
      %v2029 = vadd.f32 %v2028, %v1998
      %v2030 = vadd.f32 %v2029, %v1999
      %v2031 = vadd.f32 %v2030, %v2000
      %v2032 = vadd.f32 %v2031, %v2001
      %v2033 = vadd.f32 %v2032, %v2002
      %v2034 = vadd.f32 %v2033, %v2003
      %v2035 = vadd.f32 %v2034, %v2004
      %v2036 = vadd.f32 %v2035, %v2005
      %v2037 = vadd.f32 %v2036, %v2006
      %v2038 = vadd.f32 %v2037, %v2007
      %v2039 = vadd.f32 %v2038, %v2008
      %v2040 = vadd.f32 %v2039, %v2009
      %v2041 = vadd.f32 %v2040, %v2010
      %v2042 = vadd.f32 %v2041, %v2011
      %v2043 = vadd.f32 %v2042, %v2012
      %v2044 = vadd.f32 %v2043, %v2013
      %v2045 = vadd.f32 %v2044, %v2014
      %v2046 = vadd.f32 %v2045, %v2015
      %v2047 = vadd.f32 %v2046, %v2016
      %v2048 = vadd.f32 %v2047, %v2017
      %v2049 = vadd.f32 %v2048, %v2018
      %v2050 = vadd.f32 %v2049, %v2019
      %v2051 = vadd.f32 %v2050, %v2020
      %v2052 = vadd.f32 %v2051, %v2021
      %v2053 = vadd.f32 %v2052, %v2022
      %v2054 = vadd.f32 %v2053, %v2023
      %v2055 = vadd.f32 %v2054, %v2024
      %v2056 = vadd.f32 %v2055, %v2025
      %v2057 = vrot.slane %v2056, 4
      %v2058 = vadd.f32 %v2056, %v2057
      %v2059 = vrot.slane %v2058, 2
      %v2060 = vadd.f32 %v2058, %v2059
      %v2061 = vrot.slane %v2060, 1
      %v2062 = vadd.f32 %v2060, %v2061
      %vm2063 = vcmask 1040384
      %v2064 = vsel %vm2063, %v1959, %v2062
      %2065 = vst [vmem:[%s191] sm:$0x3] %v2064
      %s2066 = smul.u32 16, %s21
      %p2067 = scmp.lt.s32.totalorder %s20, 1
      %s2068 = scalar_select %p2067, %s20, 1
      %p2069 = scmp.lt.s32.totalorder %s2066, 15
      %s2070 = scalar_select %p2069, %s2066, 15
      %s2071 = smul.addr %s2070, 2
      %s2072 = smul.addr %s2068, 32
      %s2073 = sadd.s32 %s2071, %s2072
      %s2074 = smul.addr %s2073, 4
      %s2075 = scalar_lea.vmem %s3, %s2074
      %s2076 = sadd.s32 %s20, %s21
      %p2077 = scmp.lt.s32.totalorder %s2076, 1
      %s2078 = scalar_select %p2077, %s2076, 1
      %s2079 = smul.addr %s2078, 2
      %s2080 = scalar_lea.vmem %s4, %s2079
      // Predicated region
      $region111: #{separable_conv2d_bn.2} parent=27 // pred_check
        %p2081 = pneg %p90
      $region112: #{separable_conv2d_bn.2} parent=27 // pred_check_branch
        %2083 = sbr.rel (%p2081) target = $region114
      $region113: #{separable_conv2d_bn.2} parent=27 // pred_region
        %s2084 = smul.u32 16, %s21
      $region114: #{separable_conv2d_bn.2} parent=27 // pred_fallthru
        _
      // Predicated region
      $region115: #{separable_conv2d_bn.2} parent=27 // pred_check
        %p2085 = pneg %p118
      $region116: #{separable_conv2d_bn.2} parent=27 // pred_check_branch
        %2087 = sbr.rel (%p2085) target = $region118
      $region117: #{separable_conv2d_bn.2} parent=27 // pred_region
        %s2088 = sadd.s32 %s20, %s21
      $region118: #{separable_conv2d_bn.2} parent=27 // pred_fallthru
        _
    $region28: #{separable_conv2d_bn.2} parent=5 // pred_fallthru
      _
    %p2089 = scmp.le.s32.totalorder 2, %s11
    // Predicated region
    $region119: #{separable_conv2d_bn.2} parent=5 // pred_check
      %p2090 = pneg %p2089
    $region120: #{separable_conv2d_bn.2} parent=5 // pred_check_branch
      %2092 = sbr.rel (%p2090) target = $region122
    $region121: #{separable_conv2d_bn.2} parent=5 // pred_region
      %s2093 = ssub.s32 %s11, 2
      // Predicated region
      $region123: #{separable_conv2d_bn.2} parent=121 // pred_check
        %p2094 = pneg %p96
      $region124: #{separable_conv2d_bn.2} parent=121 // pred_check_branch
        %2096 = sbr.rel (%p2094) target = $region126
      $region125: #{separable_conv2d_bn.2} parent=121 // pred_region
        %s2097 = smul.u32 16, %s23
        %p2098 = scmp.lt.s32.totalorder %s22, 1
        %s2099 = scalar_select %p2098, %s22, 1
        %p2100 = scmp.lt.s32.totalorder %s2097, 15
        %s2101 = scalar_select %p2100, %s2097, 15
        %s2102 = smul.addr %s2101, 2
        %s2103 = smul.addr %s2099, 32
        %s2104 = sadd.s32 %s2102, %s2103
        %s2105 = smul.addr %s2104, 4
        %s2106 = scalar_lea.vmem %s3, %s2105
      $region126: #{separable_conv2d_bn.2} parent=121 // pred_fallthru
        _
      // Predicated region
      $region127: #{separable_conv2d_bn.2} parent=121 // pred_check
        %p2107 = pneg %p124
      $region128: #{separable_conv2d_bn.2} parent=121 // pred_check_branch
        %2109 = sbr.rel (%p2107) target = $region130
      $region129: #{separable_conv2d_bn.2} parent=121 // pred_region
        %s2110 = sadd.s32 %s22, %s23
        %p2111 = scmp.lt.s32.totalorder %s2110, 1
        %s2112 = scalar_select %p2111, %s2110, 1
        %s2113 = smul.addr %s2112, 2
        %s2114 = scalar_lea.vmem %s4, %s2113
      $region130: #{separable_conv2d_bn.2} parent=121 // pred_fallthru
        _
    $region122: #{separable_conv2d_bn.2} parent=5 // pred_fallthru
      _
  $region6: #{separable_conv2d_bn.2} parent=0 // loop_footer
    %s15 = sadd.s32 1, %s11
  $region7: #{separable_conv2d_bn.2} parent=0 // loop_footer_branch
    %10 = sbr.rel target = $region3
  $region8: #{separable_conv2d_bn.2} parent=0 // loop_exit
    _
  %2115 = vsyncmov [#allocation3]
  %s2116 = vpop.sfrf %2115
  %p2117 = scmp.eq.s32.totalorder %s2116, 0
  %p2118 = pneg %p2117
  %2120 = shalt.err (%p2118)
  %s2121 = scalar_lea.sflag [#allocation3], 1
  %2122 = vsyncmov %s2121
  %s2123 = vpop.sfrf %2122
  %p2124 = scmp.eq.s32.totalorder %s2123, 0
  %p2125 = pneg %p2124
  %2127 = shalt.err (%p2125)

</llo_original>
